<compile_context>
chip_gen: v5e
topology: v5e:2x2
jax: 0.10.0
libtpu: 0.0.40
codegen_flags: <defaults>
</compile_context>

<pallas_src>
import functools

import jax
import jax.numpy as jnp
from jax.experimental import pallas as pl
from jax.experimental.pallas import tpu as pltpu


# -----------------------------------------------------------------------------
# Single fused kernel: whole VAE forward in one invocation.
# -----------------------------------------------------------------------------
def _vae_kernel(xt_ref, yt_ref, x_ref, eps_ref,
                wxg_ref, bxg_ref, whg_ref, bhg_ref,
                ewo1_ref, ebo1_ref, ewo2_ref, ebo2_ref,
                wms_ref, bms_ref,
                dwo1_ref, dbo1_ref, dwo2_ref, dbo2_ref,
                wd1_ref, bd1_ref, wd2_ref, bd2_ref,
                y_ref, mu_ref, sig_ref, h0s_ref,
                gx_scr, hs_scr):
    T_x = xt_ref.shape[0]
    T_y = yt_ref.shape[0]
    B, D = mu_ref.shape
    H = whg_ref.shape[0]
    Hp = whg_ref.shape[1] // 3          # lane-tile padded per-gate width
    Dp = wms_ref.shape[1] // 2          # lane-tile padded mu/sigma width
    SB = eps_ref.shape[0]               # sample_hs * B
    S = SB // B
    R = 2 * SB                          # sampled rows + mean rows

    # ---- Encoder -----------------------------------------------------------
    # Hoisted fused GRU input projection for ALL timesteps: one MXU pass with
    # M = T_x*B, written to VMEM scratch (keeps it out of vregs in the loop).
    gx_scr[...] = (jnp.dot(x_ref[...], wxg_ref[...],
                           preferred_element_type=jnp.float32) + bxg_ref[...])

    Whg = whg_ref[...]
    Bhg = bhg_ref[...]
    EWo1 = ewo1_ref[...]
    EBo1 = ebo1_ref[...]
    EWo2 = ewo2_ref[...]
    EBo2 = ebo2_ref[...]

    h = jnp.zeros((B, H), jnp.float32)
    for t in range(T_x):                        # static unroll, T_x is tiny
        if t > 0:
            # Euler ODE step between observations (encoder diffeq: 2-layer MLP).
            dt = xt_ref[t] - xt_ref[t - 1]      # SMEM scalar math (dt[0] == 0 skipped)
            f1 = jnp.tanh(jnp.dot(h, EWo1, preferred_element_type=jnp.float32) + EBo1)
            f = jnp.dot(f1, EWo2, preferred_element_type=jnp.float32) + EBo2
            h = h + dt * f
        # GRU cell update; each gate lives in its own 128-lane tile so the
        # slices below start on lane-tile boundaries (no rotates on the chain).
        gx = gx_scr[t * B:(t + 1) * B, :]                               # (B, 3*Hp)
        gh = jnp.dot(h, Whg, preferred_element_type=jnp.float32) + Bhg  # (B, 3*Hp)
        gs = gx + gh
        z = jax.nn.sigmoid(gs[:, 0:H])
        r = jax.nn.sigmoid(gs[:, Hp:Hp + H])
        n = jnp.tanh(gx[:, 2 * Hp:2 * Hp + H] + r * gh[:, 2 * Hp:2 * Hp + H])
        h = (1.0 - z) * n + z * h

    # Fused h_last -> [mu | sigma] projection (one lane tile each).
    musig = jnp.dot(h, wms_ref[...], preferred_element_type=jnp.float32) + bms_ref[...]
    mu = musig[:, 0:D]
    sig = musig[:, Dp:Dp + D]
    mu_ref[...] = mu
    sig_ref[...] = sig

    # ---- Reparameterization + decoder initial states (fused in-kernel) -----
    mu_rep = jnp.concatenate([mu] * S, axis=0)          # (S*B, D)
    sig_rep = jnp.concatenate([sig] * S, axis=0)        # (S*B, D)
    # Matches reference ordering: sampling uses RAW sigma; abs() only for info.
    h0_samp = mu_rep + sig_rep * eps_ref[...]           # sample_standard_gaussian
    h0s_ref[...] = h0_samp
    hdec = jnp.concatenate([h0_samp, mu_rep], axis=0)   # (R, D): [samples | means]

    # ---- Decoder recurrence (hidden states only; output net hoisted) -------
    DWo1 = dwo1_ref[...]
    DBo1 = dbo1_ref[...]
    DWo2 = dwo2_ref[...]
    DBo2 = dbo2_ref[...]
    for t in range(T_y):                        # static unroll, T_y is tiny
        # y_time is prepended with x_time[-1] in the reference; the output at
        # that first time is discarded by forward's [:, :, 1:, :], so we only
        # integrate/emit for the T_y requested times.
        if t == 0:
            dt = yt_ref[0] - xt_ref[T_x - 1]
        else:
            dt = yt_ref[t] - yt_ref[t - 1]
        f1 = jnp.tanh(jnp.dot(hdec, DWo1, preferred_element_type=jnp.float32) + DBo1)
        f = jnp.dot(f1, DWo2, preferred_element_type=jnp.float32) + DBo2
        hdec = hdec + dt * f
        hs_scr[t * R:(t + 1) * R, :] = hdec     # store -> frees vregs each step

    # ---- Hoisted output net: ONE large-M pass (M = T_y*R) + single store ---
    h_all = hs_scr[...]
    o1 = jnp.tanh(jnp.dot(h_all, wd1_ref[...], preferred_element_type=jnp.float32)
                  + bd1_ref[...])
    y_ref[...] = jnp.dot(o1, wd2_ref[...], preferred_element_type=jnp.float32) + bd2_ref[...]


# -----------------------------------------------------------------------------
# Wrapper: mirrors VAE.forward; returns (y_pred, info).
# -----------------------------------------------------------------------------
def vae_forward(params, y_time, x_data, x_time, x_mask=None, sample_hs=1, *, sample_key):
    if x_mask is not None:
        x = x_data * x_mask
    else:
        x = x_data
    if y_time.ndim < 1:
        y_time = y_time[None]

    enc, dec = params["enc"], params["dec"]
    B, T_x, xd = x.shape
    T_y = y_time.shape[0]
    H = enc["whg"].shape[0]
    Hp = enc["whg"].shape[1] // 3
    Dp = enc["wms"].shape[1] // 2
    D = dec["wo1"].shape[0]
    n_out = dec["wd1"].shape[1]
    yd = dec["wd2"].shape[1]
    S = sample_hs
    R = 2 * S * B

    # TODO(synk): reference masks inputs only (x_data * x_mask); a mask-gated
    # hidden update inside the encoder is not part of the given forward().
    x_flat = jnp.transpose(x, (1, 0, 2)).reshape(T_x * B, xd).astype(jnp.float32)
    eps = jax.random.normal(sample_key, (S * B, D), jnp.float32)
    x_time = x_time.astype(jnp.float32)
    y_time = y_time.astype(jnp.float32)

    enc_w = [enc[k] for k in ("wxg", "bxg", "whg", "bhg",
                              "wo1", "bo1", "wo2", "bo2", "wms", "bms")]
    dec_w = [dec[k] for k in ("wo1", "bo1", "wo2", "bo2",
                              "wd1", "bd1", "wd2", "bd2")]
    weights = enc_w + dec_w

    flops = int(
        2 * T_x * B * xd * 3 * Hp                 # hoisted GRU input projection
        + T_x * 2 * B * H * 3 * Hp                # GRU h-path matmul per step
        + (T_x - 1) * 4 * B * H * H               # encoder ODE MLP
        + 2 * B * H * 2 * Dp                      # mu/sigma projection
        + T_y * 4 * R * D * D                     # decoder ODE MLP
        + 2 * T_y * R * D * n_out                 # hoisted output net L1
        + 2 * T_y * R * n_out * yd)               # hoisted output net L2
    transcendentals = int(T_x * B * 3 * H + (T_x - 1) * B * H
                          + T_y * R * D + T_y * R * n_out)
    bytes_accessed = int(4 * (x_flat.size + eps.size + T_x + T_y
                              + sum(w.size for w in weights)
                              + T_y * R * yd + 2 * B * D + S * B * D))

    y_flat, mu, sigma, h0_samp = pl.pallas_call(
        _vae_kernel,
        out_shape=(
            jax.ShapeDtypeStruct((T_y * R, yd), jnp.float32),   # decoder outputs (t-major)
            jax.ShapeDtypeStruct((B, D), jnp.float32),          # mu
            jax.ShapeDtypeStruct((B, D), jnp.float32),          # sigma (raw)
            jax.ShapeDtypeStruct((S * B, D), jnp.float32),      # dec_h_first (sampled)
        ),
        grid=(1,),
        in_specs=[
            pl.BlockSpec(memory_space=pltpu.MemorySpace.SMEM),  # x_time (T_x,)
            pl.BlockSpec(memory_space=pltpu.MemorySpace.SMEM),  # y_time (T_y,)
            pl.BlockSpec((T_x * B, xd), lambda i: (0, 0)),      # x (time-major, flat)
            pl.BlockSpec((S * B, D), lambda i: (0, 0)),         # eps
        ] + [pl.BlockSpec(w.shape, lambda i: (0, 0)) for w in weights],
        out_specs=[
            pl.BlockSpec((T_y * R, yd), lambda i: (0, 0)),
            pl.BlockSpec((B, D), lambda i: (0, 0)),
            pl.BlockSpec((B, D), lambda i: (0, 0)),
            pl.BlockSpec((S * B, D), lambda i: (0, 0)),
        ],
        scratch_shapes=[
            pltpu.VMEM((T_x * B, 3 * Hp), jnp.float32),         # projected GRU inputs
            pltpu.VMEM((T_y * R, D), jnp.float32),              # decoder hidden states
        ],
        compiler_params=pltpu.CompilerParams(dimension_semantics=("arbitrary",)),
        cost_estimate=pl.CostEstimate(flops=flops,
                                      transcendentals=transcendentals,
                                      bytes_accessed=bytes_accessed),
    )(x_time, y_time, x_flat, eps, *weights)

    # (T_y*R, yd) rows are ordered t-major: row = t*R + k*B + b, k in [0, 2S).
    y_all = y_flat.reshape(T_y, 2 * S, B, yd)
    y_pred = jnp.transpose(y_all[:, :S], (1, 2, 0, 3))          # (S, B, T_y, yd)
    y_pred_mean = jnp.transpose(y_all[:, S:], (1, 2, 0, 3))     # (S, B, T_y, yd)

    enc_mu = mu[None]                          # (1, B, D)
    enc_sigma_abs = jnp.abs(sigma)[None]       # (1, B, D)
    dec_h_first = h0_samp.reshape(S, B, D)

    info = {
        "C": (enc_mu, enc_sigma_abs, dec_h_first),
        "y_pred_mean": jnp.mean(y_pred_mean, 0),
    }
    return y_pred, info


# -----------------------------------------------------------------------------
# Deterministic parameter initialization (lane-tile padded fused-gate layout)
# -----------------------------------------------------------------------------
def init_params(key, x_dims, y_dims, enc_h, dec_h, n_out_units):
    ks = iter(jax.random.split(key, 32))

    def w(shape, scale=0.1):
        return (scale * jax.random.normal(next(ks), shape)).astype(jnp.float32)

    def b(shape):
        return jnp.zeros(shape, jnp.float32)

    lane = 128
    Hp = ((enc_h + lane - 1) // lane) * lane     # padded per-gate width
    Dp = ((dec_h + lane - 1) // lane) * lane     # padded mu/sigma width

    def gate_pack(mats):
        # mats: 3 arrays (rows, enc_h) -> (rows, 3*Hp), one lane tile per gate.
        rows = mats[0].shape[0]
        out = jnp.zeros((rows, 3 * Hp), jnp.float32)
        for g, m in enumerate(mats):
            out = out.at[:, g * Hp:g * Hp + enc_h].set(m)
        return out

    enc = dict(
        # Fused GRU gate weights, one lane tile per gate: [z | r | n].
        wxg=gate_pack([w((x_dims, enc_h)) for _ in range(3)]),
        bxg=b((1, 3 * Hp)),                       # input-path gate biases
        whg=gate_pack([w((enc_h, enc_h)) for _ in range(3)]),
        bhg=b((1, 3 * Hp)),                       # hidden-path gate biases
        # encoder ODE func (2-layer MLP on enc_h)
        wo1=w((enc_h, enc_h)), bo1=b((1, enc_h)),
        wo2=w((enc_h, enc_h)), bo2=b((1, enc_h)),
        # fused h_last -> [mu | sigma] projection (one lane tile each)
        wms=jnp.zeros((enc_h, 2 * Dp), jnp.float32)
            .at[:, 0:dec_h].set(w((enc_h, dec_h)))
            .at[:, Dp:Dp + dec_h].set(w((enc_h, dec_h))),
        bms=jnp.zeros((1, 2 * Dp), jnp.float32).at[:, Dp:Dp + dec_h].set(0.1),
    )
    dec = dict(
        # decoder ODE func (2-layer MLP on dec_h)
        wo1=w((dec_h, dec_h)), bo1=b((1, dec_h)),
        wo2=w((dec_h, dec_h)), bo2=b((1, dec_h)),
        # output net: Linear -> tanh -> Linear
        wd1=w((dec_h, n_out_units)), bd1=b((1, n_out_units)),
        wd2=w((n_out_units, y_dims)), bd2=b((1, y_dims)),
    )
    # TODO(synk): n_gru_units of the reference GRU_unit is folded into enc_h
    # (a standard GRUCell is used); gate ordering differs from PyTorch's (r,z,n)
    # but is irrelevant for freshly initialized weights.
    return {"enc": enc, "dec": dec}


# -----------------------------------------------------------------------------
if __name__ == "__main__":
    B, T_x, T_y = 8, 8, 6
    x_dims, y_dims = 8, 8
    enc_h, dec_h, n_out_units = 32, 32, 32
    sample_hs = 3

    root = jax.random.PRNGKey(0)
    k_par, k_x, k_mask, k_samp = jax.random.split(root, 4)

    params = init_params(k_par, x_dims, y_dims, enc_h, dec_h, n_out_units)

    x_data = jax.random.normal(k_x, (B, T_x, x_dims), jnp.float32)
    x_mask = (jax.random.uniform(k_mask, (B, T_x, x_dims)) > 0.1).astype(jnp.float32)
    x_time = jnp.linspace(0.0, 1.0, T_x).astype(jnp.float32)
    y_time = jnp.linspace(1.2, 2.0, T_y).astype(jnp.float32)

    fwd = jax.jit(functools.partial(vae_forward, sample_hs=sample_hs, sample_key=k_samp))
    y_pred, info = fwd(params, y_time, x_data, x_time, x_mask)
    jax.block_until_ready(y_pred)
    jax.block_until_ready(info["y_pred_mean"])

    assert y_pred.shape == (sample_hs, B, T_y, y_dims), y_pred.shape
    assert info["y_pred_mean"].shape == (B, T_y, y_dims)
    assert info["C"][0].shape == (1, B, dec_h)
    assert info["C"][1].shape == (1, B, dec_h)
    assert info["C"][2].shape == (sample_hs, B, dec_h)
    assert not bool(jnp.isnan(y_pred).any())
    assert not bool(jnp.isnan(info["y_pred_mean"]).any())
    assert bool((info["C"][1] >= 0).all())

    print("KERNEL_OK")
</pallas_src>

<mosaic_0001>
module attributes {stable_mosaic.version = 11 : i64} {
  func.func @_vae_kernel(%arg0: i32, %arg1: memref<8xf32, #tpu.memory_space<smem>>, %arg2: memref<6xf32, #tpu.memory_space<smem>>, %arg3: memref<64x8xf32, #tpu.memory_space<vmem>>, %arg4: memref<24x32xf32, #tpu.memory_space<vmem>>, %arg5: memref<8x384xf32, #tpu.memory_space<vmem>>, %arg6: memref<1x384xf32, #tpu.memory_space<vmem>>, %arg7: memref<32x384xf32, #tpu.memory_space<vmem>>, %arg8: memref<1x384xf32, #tpu.memory_space<vmem>>, %arg9: memref<32x32xf32, #tpu.memory_space<vmem>>, %arg10: memref<1x32xf32, #tpu.memory_space<vmem>>, %arg11: memref<32x32xf32, #tpu.memory_space<vmem>>, %arg12: memref<1x32xf32, #tpu.memory_space<vmem>>, %arg13: memref<32x256xf32, #tpu.memory_space<vmem>>, %arg14: memref<1x256xf32, #tpu.memory_space<vmem>>, %arg15: memref<32x32xf32, #tpu.memory_space<vmem>>, %arg16: memref<1x32xf32, #tpu.memory_space<vmem>>, %arg17: memref<32x32xf32, #tpu.memory_space<vmem>>, %arg18: memref<1x32xf32, #tpu.memory_space<vmem>>, %arg19: memref<32x32xf32, #tpu.memory_space<vmem>>, %arg20: memref<1x32xf32, #tpu.memory_space<vmem>>, %arg21: memref<32x8xf32, #tpu.memory_space<vmem>>, %arg22: memref<1x8xf32, #tpu.memory_space<vmem>>, %arg23: memref<288x8xf32, #tpu.memory_space<vmem>>, %arg24: memref<8x32xf32, #tpu.memory_space<vmem>>, %arg25: memref<8x32xf32, #tpu.memory_space<vmem>>, %arg26: memref<24x32xf32, #tpu.memory_space<vmem>>, %arg27: memref<64x384xf32, #tpu.memory_space<vmem>>, %arg28: memref<288x32xf32, #tpu.memory_space<vmem>>) attributes {dimension_semantics = [#tpu.dimension_semantics<arbitrary>], iteration_bounds = array<i64: 1>, scalar_prefetch = 0 : i64, scratch_operands = 2 : i64, tpu.core_type = #tpu.core_type<tc>, window_params = [{transform_indices = @transform_0, window_bounds = array<i64: 8>}, {transform_indices = @transform_1, window_bounds = array<i64: 6>}, {pipeline_mode = #tpu.pipeline_mode<synchronous>, transform_indices = @transform_2, window_bounds = array<i64: 64, 8>}, {pipeline_mode = #tpu.pipeline_mode<synchronous>, transform_indices = @transform_3, window_bounds = array<i64: 24, 32>}, {pipeline_mode = #tpu.pipeline_mode<synchronous>, transform_indices = @transform_4, window_bounds = array<i64: 8, 384>}, {pipeline_mode = #tpu.pipeline_mode<synchronous>, transform_indices = @transform_5, window_bounds = array<i64: 1, 384>}, {pipeline_mode = #tpu.pipeline_mode<synchronous>, transform_indices = @transform_6, window_bounds = array<i64: 32, 384>}, {pipeline_mode = #tpu.pipeline_mode<synchronous>, transform_indices = @transform_7, window_bounds = array<i64: 1, 384>}, {pipeline_mode = #tpu.pipeline_mode<synchronous>, transform_indices = @transform_8, window_bounds = array<i64: 32, 32>}, {pipeline_mode = #tpu.pipeline_mode<synchronous>, transform_indices = @transform_9, window_bounds = array<i64: 1, 32>}, {pipeline_mode = #tpu.pipeline_mode<synchronous>, transform_indices = @transform_10, window_bounds = array<i64: 32, 32>}, {pipeline_mode = #tpu.pipeline_mode<synchronous>, transform_indices = @transform_11, window_bounds = array<i64: 1, 32>}, {pipeline_mode = #tpu.pipeline_mode<synchronous>, transform_indices = @transform_12, window_bounds = array<i64: 32, 256>}, {pipeline_mode = #tpu.pipeline_mode<synchronous>, transform_indices = @transform_13, window_bounds = array<i64: 1, 256>}, {pipeline_mode = #tpu.pipeline_mode<synchronous>, transform_indices = @transform_14, window_bounds = array<i64: 32, 32>}, {pipeline_mode = #tpu.pipeline_mode<synchronous>, transform_indices = @transform_15, window_bounds = array<i64: 1, 32>}, {pipeline_mode = #tpu.pipeline_mode<synchronous>, transform_indices = @transform_16, window_bounds = array<i64: 32, 32>}, {pipeline_mode = #tpu.pipeline_mode<synchronous>, transform_indices = @transform_17, window_bounds = array<i64: 1, 32>}, {pipeline_mode = #tpu.pipeline_mode<synchronous>, transform_indices = @transform_18, window_bounds = array<i64: 32, 32>}, {pipeline_mode = #tpu.pipeline_mode<synchronous>, transform_indices = @transform_19, window_bounds = array<i64: 1, 32>}, {pipeline_mode = #tpu.pipeline_mode<synchronous>, transform_indices = @transform_20, window_bounds = array<i64: 32, 8>}, {pipeline_mode = #tpu.pipeline_mode<synchronous>, transform_indices = @transform_21, window_bounds = array<i64: 1, 8>}, {pipeline_mode = #tpu.pipeline_mode<synchronous>, transform_indices = @transform_22, window_bounds = array<i64: 288, 8>}, {pipeline_mode = #tpu.pipeline_mode<synchronous>, transform_indices = @transform_23, window_bounds = array<i64: 8, 32>}, {pipeline_mode = #tpu.pipeline_mode<synchronous>, transform_indices = @transform_24, window_bounds = array<i64: 8, 32>}, {pipeline_mode = #tpu.pipeline_mode<synchronous>, transform_indices = @transform_25, window_bounds = array<i64: 24, 32>}]} {
    %c0 = arith.constant 0 : index
    %c0_0 = arith.constant 0 : index
    %0 = vector.load %arg3[%c0, %c0_0] : memref<64x8xf32, #tpu.memory_space<vmem>>, vector<64x8xf32>
    %c0_1 = arith.constant 0 : index
    %c0_2 = arith.constant 0 : index
    %1 = vector.load %arg5[%c0_1, %c0_2] : memref<8x384xf32, #tpu.memory_space<vmem>>, vector<8x384xf32>
    %cst = arith.constant dense<0.000000e+00> : vector<64x384xf32>
    %2 = tpu.matmul %0, %1, %cst {dimension_numbers = #tpu.dot_dimension_numbers<[1], [0], [0], [1], [0, 0, 1, 1], [], []>} : vector<64x8xf32>, vector<8x384xf32>, vector<64x384xf32> -> vector<64x384xf32>
    %c0_3 = arith.constant 0 : index
    %c0_4 = arith.constant 0 : index
    %3 = vector.load %arg6[%c0_3, %c0_4] : memref<1x384xf32, #tpu.memory_space<vmem>>, vector<1x384xf32>
    %4 = vector.broadcast %3 : vector<1x384xf32> to vector<64x384xf32>
    %5 = arith.addf %2, %4 : vector<64x384xf32>
    %c0_5 = arith.constant 0 : index
    %c0_6 = arith.constant 0 : index
    %6 = vector.load %arg27[%c0_5, %c0_6] : memref<64x384xf32, #tpu.memory_space<vmem>>, vector<64x384xf32>
    tpu.vector_store %arg27[%c0_5, %c0_6], %5 {strides = array<i32>} : memref<64x384xf32, #tpu.memory_space<vmem>>, vector<64x384xf32>,
    %c0_7 = arith.constant 0 : index
    %c0_8 = arith.constant 0 : index
    %7 = vector.load %arg7[%c0_7, %c0_8] : memref<32x384xf32, #tpu.memory_space<vmem>>, vector<32x384xf32>
    %c0_9 = arith.constant 0 : index
    %c0_10 = arith.constant 0 : index
    %8 = vector.load %arg8[%c0_9, %c0_10] : memref<1x384xf32, #tpu.memory_space<vmem>>, vector<1x384xf32>
    %c0_11 = arith.constant 0 : index
    %c0_12 = arith.constant 0 : index
    %9 = vector.load %arg9[%c0_11, %c0_12] : memref<32x32xf32, #tpu.memory_space<vmem>>, vector<32x32xf32>
    %c0_13 = arith.constant 0 : index
    %c0_14 = arith.constant 0 : index
    %10 = vector.load %arg10[%c0_13, %c0_14] : memref<1x32xf32, #tpu.memory_space<vmem>>, vector<1x32xf32>
    %c0_15 = arith.constant 0 : index
    %c0_16 = arith.constant 0 : index
    %11 = vector.load %arg11[%c0_15, %c0_16] : memref<32x32xf32, #tpu.memory_space<vmem>>, vector<32x32xf32>
    %c0_17 = arith.constant 0 : index
    %c0_18 = arith.constant 0 : index
    %12 = vector.load %arg12[%c0_17, %c0_18] : memref<1x32xf32, #tpu.memory_space<vmem>>, vector<1x32xf32>
    %cst_19 = arith.constant 0.000000e+00 : f32
    %13 = vector.broadcast %cst_19 : f32 to vector<8x32xf32>
    %c0_20 = arith.constant 0 : index
    %c0_21 = arith.constant 0 : index
    %14 = vector.load %arg27[%c0_20, %c0_21] : memref<64x384xf32, #tpu.memory_space<vmem>>, vector<8x384xf32>
    %cst_22 = arith.constant dense<0.000000e+00> : vector<8x384xf32>
    %15 = tpu.matmul %13, %7, %cst_22 {dimension_numbers = #tpu.dot_dimension_numbers<[1], [0], [0], [1], [0, 0, 1, 1], [], []>} : vector<8x32xf32>, vector<32x384xf32>, vector<8x384xf32> -> vector<8x384xf32>
    %16 = vector.broadcast %8 : vector<1x384xf32> to vector<8x384xf32>
    %17 = arith.addf %15, %16 : vector<8x384xf32>
    %18 = arith.addf %14, %17 : vector<8x384xf32>
    %19 = vector.extract_strided_slice %18 {offsets = [0, 0], sizes = [8, 32], strides = [1, 1]} : vector<8x384xf32> to vector<8x32xf32>
    %20 = arith.negf %19 : vector<8x32xf32>
    %21 = math.exp %20 : vector<8x32xf32>
    %cst_23 = arith.constant 1.000000e+00 : f32
    %22 = vector.broadcast %cst_23 : f32 to vector<8x32xf32>
    %23 = arith.addf %22, %21 : vector<8x32xf32>
    %24 = arith.divf %22, %23 : vector<8x32xf32>
    %25 = vector.extract_strided_slice %18 {offsets = [0, 128], sizes = [8, 32], strides = [1, 1]} : vector<8x384xf32> to vector<8x32xf32>
    %26 = arith.negf %25 : vector<8x32xf32>
    %27 = math.exp %26 : vector<8x32xf32>
    %cst_24 = arith.constant 1.000000e+00 : f32
    %28 = vector.broadcast %cst_24 : f32 to vector<8x32xf32>
    %29 = arith.addf %28, %27 : vector<8x32xf32>
    %30 = arith.divf %28, %29 : vector<8x32xf32>
    %31 = vector.extract_strided_slice %14 {offsets = [0, 256], sizes = [8, 32], strides = [1, 1]} : vector<8x384xf32> to vector<8x32xf32>
    %32 = vector.extract_strided_slice %17 {offsets = [0, 256], sizes = [8, 32], strides = [1, 1]} : vector<8x384xf32> to vector<8x32xf32>
    %33 = arith.mulf %30, %32 : vector<8x32xf32>
    %34 = arith.addf %31, %33 : vector<8x32xf32>
    %35 = math.tanh %34 : vector<8x32xf32>
    %cst_25 = arith.constant 1.000000e+00 : f32
    %36 = vector.broadcast %cst_25 : f32 to vector<8x32xf32>
    %37 = arith.subf %36, %24 : vector<8x32xf32>
    %38 = arith.mulf %37, %35 : vector<8x32xf32>
    %39 = arith.mulf %24, %13 : vector<8x32xf32>
    %40 = arith.addf %38, %39 : vector<8x32xf32>
    %c1 = arith.constant 1 : index
    %41 = memref.load %arg1[%c1] : memref<8xf32, #tpu.memory_space<smem>>
    %c0_26 = arith.constant 0 : index
    %42 = memref.load %arg1[%c0_26] : memref<8xf32, #tpu.memory_space<smem>>
    %43 = arith.subf %41, %42 : f32
    %cst_27 = arith.constant dense<0.000000e+00> : vector<8x32xf32>
    %44 = tpu.matmul %40, %9, %cst_27 {dimension_numbers = #tpu.dot_dimension_numbers<[1], [0], [0], [1], [0, 0, 1, 1], [], []>} : vector<8x32xf32>, vector<32x32xf32>, vector<8x32xf32> -> vector<8x32xf32>
    %45 = vector.broadcast %10 : vector<1x32xf32> to vector<8x32xf32>
    %46 = arith.addf %44, %45 : vector<8x32xf32>
    %47 = math.tanh %46 : vector<8x32xf32>
    %cst_28 = arith.constant dense<0.000000e+00> : vector<8x32xf32>
    %48 = tpu.matmul %47, %11, %cst_28 {dimension_numbers = #tpu.dot_dimension_numbers<[1], [0], [0], [1], [0, 0, 1, 1], [], []>} : vector<8x32xf32>, vector<32x32xf32>, vector<8x32xf32> -> vector<8x32xf32>
    %49 = vector.broadcast %12 : vector<1x32xf32> to vector<8x32xf32>
    %50 = arith.addf %48, %49 : vector<8x32xf32>
    %51 = vector.broadcast %43 : f32 to vector<8x32xf32>
    %52 = arith.mulf %51, %50 : vector<8x32xf32>
    %53 = arith.addf %40, %52 : vector<8x32xf32>
    %c8 = arith.constant 8 : index
    %c0_29 = arith.constant 0 : index
    %54 = vector.load %arg27[%c8, %c0_29] : memref<64x384xf32, #tpu.memory_space<vmem>>, vector<8x384xf32>
    %cst_30 = arith.constant dense<0.000000e+00> : vector<8x384xf32>
    %55 = tpu.matmul %53, %7, %cst_30 {dimension_numbers = #tpu.dot_dimension_numbers<[1], [0], [0], [1], [0, 0, 1, 1], [], []>} : vector<8x32xf32>, vector<32x384xf32>, vector<8x384xf32> -> vector<8x384xf32>
    %56 = vector.broadcast %8 : vector<1x384xf32> to vector<8x384xf32>
    %57 = arith.addf %55, %56 : vector<8x384xf32>
    %58 = arith.addf %54, %57 : vector<8x384xf32>
    %59 = vector.extract_strided_slice %58 {offsets = [0, 0], sizes = [8, 32], strides = [1, 1]} : vector<8x384xf32> to vector<8x32xf32>
    %60 = arith.negf %59 : vector<8x32xf32>
    %61 = math.exp %60 : vector<8x32xf32>
    %cst_31 = arith.constant 1.000000e+00 : f32
    %62 = vector.broadcast %cst_31 : f32 to vector<8x32xf32>
    %63 = arith.addf %62, %61 : vector<8x32xf32>
    %64 = arith.divf %62, %63 : vector<8x32xf32>
    %65 = vector.extract_strided_slice %58 {offsets = [0, 128], sizes = [8, 32], strides = [1, 1]} : vector<8x384xf32> to vector<8x32xf32>
    %66 = arith.negf %65 : vector<8x32xf32>
    %67 = math.exp %66 : vector<8x32xf32>
    %cst_32 = arith.constant 1.000000e+00 : f32
    %68 = vector.broadcast %cst_32 : f32 to vector<8x32xf32>
    %69 = arith.addf %68, %67 : vector<8x32xf32>
    %70 = arith.divf %68, %69 : vector<8x32xf32>
    %71 = vector.extract_strided_slice %54 {offsets = [0, 256], sizes = [8, 32], strides = [1, 1]} : vector<8x384xf32> to vector<8x32xf32>
    %72 = vector.extract_strided_slice %57 {offsets = [0, 256], sizes = [8, 32], strides = [1, 1]} : vector<8x384xf32> to vector<8x32xf32>
    %73 = arith.mulf %70, %72 : vector<8x32xf32>
    %74 = arith.addf %71, %73 : vector<8x32xf32>
    %75 = math.tanh %74 : vector<8x32xf32>
    %cst_33 = arith.constant 1.000000e+00 : f32
    %76 = vector.broadcast %cst_33 : f32 to vector<8x32xf32>
    %77 = arith.subf %76, %64 : vector<8x32xf32>
    %78 = arith.mulf %77, %75 : vector<8x32xf32>
    %79 = arith.mulf %64, %53 : vector<8x32xf32>
    %80 = arith.addf %78, %79 : vector<8x32xf32>
    %c2 = arith.constant 2 : index
    %81 = memref.load %arg1[%c2] : memref<8xf32, #tpu.memory_space<smem>>
    %c1_34 = arith.constant 1 : index
    %82 = memref.load %arg1[%c1_34] : memref<8xf32, #tpu.memory_space<smem>>
    %83 = arith.subf %81, %82 : f32
    %cst_35 = arith.constant dense<0.000000e+00> : vector<8x32xf32>
    %84 = tpu.matmul %80, %9, %cst_35 {dimension_numbers = #tpu.dot_dimension_numbers<[1], [0], [0], [1], [0, 0, 1, 1], [], []>} : vector<8x32xf32>, vector<32x32xf32>, vector<8x32xf32> -> vector<8x32xf32>
    %85 = vector.broadcast %10 : vector<1x32xf32> to vector<8x32xf32>
    %86 = arith.addf %84, %85 : vector<8x32xf32>
    %87 = math.tanh %86 : vector<8x32xf32>
    %cst_36 = arith.constant dense<0.000000e+00> : vector<8x32xf32>
    %88 = tpu.matmul %87, %11, %cst_36 {dimension_numbers = #tpu.dot_dimension_numbers<[1], [0], [0], [1], [0, 0, 1, 1], [], []>} : vector<8x32xf32>, vector<32x32xf32>, vector<8x32xf32> -> vector<8x32xf32>
    %89 = vector.broadcast %12 : vector<1x32xf32> to vector<8x32xf32>
    %90 = arith.addf %88, %89 : vector<8x32xf32>
    %91 = vector.broadcast %83 : f32 to vector<8x32xf32>
    %92 = arith.mulf %91, %90 : vector<8x32xf32>
    %93 = arith.addf %80, %92 : vector<8x32xf32>
    %c16 = arith.constant 16 : index
    %c0_37 = arith.constant 0 : index
    %94 = vector.load %arg27[%c16, %c0_37] : memref<64x384xf32, #tpu.memory_space<vmem>>, vector<8x384xf32>
    %cst_38 = arith.constant dense<0.000000e+00> : vector<8x384xf32>
    %95 = tpu.matmul %93, %7, %cst_38 {dimension_numbers = #tpu.dot_dimension_numbers<[1], [0], [0], [1], [0, 0, 1, 1], [], []>} : vector<8x32xf32>, vector<32x384xf32>, vector<8x384xf32> -> vector<8x384xf32>
    %96 = vector.broadcast %8 : vector<1x384xf32> to vector<8x384xf32>
    %97 = arith.addf %95, %96 : vector<8x384xf32>
    %98 = arith.addf %94, %97 : vector<8x384xf32>
    %99 = vector.extract_strided_slice %98 {offsets = [0, 0], sizes = [8, 32], strides = [1, 1]} : vector<8x384xf32> to vector<8x32xf32>
    %100 = arith.negf %99 : vector<8x32xf32>
    %101 = math.exp %100 : vector<8x32xf32>
    %cst_39 = arith.constant 1.000000e+00 : f32
    %102 = vector.broadcast %cst_39 : f32 to vector<8x32xf32>
    %103 = arith.addf %102, %101 : vector<8x32xf32>
    %104 = arith.divf %102, %103 : vector<8x32xf32>
    %105 = vector.extract_strided_slice %98 {offsets = [0, 128], sizes = [8, 32], strides = [1, 1]} : vector<8x384xf32> to vector<8x32xf32>
    %106 = arith.negf %105 : vector<8x32xf32>
    %107 = math.exp %106 : vector<8x32xf32>
    %cst_40 = arith.constant 1.000000e+00 : f32
    %108 = vector.broadcast %cst_40 : f32 to vector<8x32xf32>
    %109 = arith.addf %108, %107 : vector<8x32xf32>
    %110 = arith.divf %108, %109 : vector<8x32xf32>
    %111 = vector.extract_strided_slice %94 {offsets = [0, 256], sizes = [8, 32], strides = [1, 1]} : vector<8x384xf32> to vector<8x32xf32>
    %112 = vector.extract_strided_slice %97 {offsets = [0, 256], sizes = [8, 32], strides = [1, 1]} : vector<8x384xf32> to vector<8x32xf32>
    %113 = arith.mulf %110, %112 : vector<8x32xf32>
    %114 = arith.addf %111, %113 : vector<8x32xf32>
    %115 = math.tanh %114 : vector<8x32xf32>
    %cst_41 = arith.constant 1.000000e+00 : f32
    %116 = vector.broadcast %cst_41 : f32 to vector<8x32xf32>
    %117 = arith.subf %116, %104 : vector<8x32xf32>
    %118 = arith.mulf %117, %115 : vector<8x32xf32>
    %119 = arith.mulf %104, %93 : vector<8x32xf32>
    %120 = arith.addf %118, %119 : vector<8x32xf32>
    %c3 = arith.constant 3 : index
    %121 = memref.load %arg1[%c3] : memref<8xf32, #tpu.memory_space<smem>>
    %c2_42 = arith.constant 2 : index
    %122 = memref.load %arg1[%c2_42] : memref<8xf32, #tpu.memory_space<smem>>
    %123 = arith.subf %121, %122 : f32
    %cst_43 = arith.constant dense<0.000000e+00> : vector<8x32xf32>
    %124 = tpu.matmul %120, %9, %cst_43 {dimension_numbers = #tpu.dot_dimension_numbers<[1], [0], [0], [1], [0, 0, 1, 1], [], []>} : vector<8x32xf32>, vector<32x32xf32>, vector<8x32xf32> -> vector<8x32xf32>
    %125 = vector.broadcast %10 : vector<1x32xf32> to vector<8x32xf32>
    %126 = arith.addf %124, %125 : vector<8x32xf32>
    %127 = math.tanh %126 : vector<8x32xf32>
    %cst_44 = arith.constant dense<0.000000e+00> : vector<8x32xf32>
    %128 = tpu.matmul %127, %11, %cst_44 {dimension_numbers = #tpu.dot_dimension_numbers<[1], [0], [0], [1], [0, 0, 1, 1], [], []>} : vector<8x32xf32>, vector<32x32xf32>, vector<8x32xf32> -> vector<8x32xf32>
    %129 = vector.broadcast %12 : vector<1x32xf32> to vector<8x32xf32>
    %130 = arith.addf %128, %129 : vector<8x32xf32>
    %131 = vector.broadcast %123 : f32 to vector<8x32xf32>
    %132 = arith.mulf %131, %130 : vector<8x32xf32>
    %133 = arith.addf %120, %132 : vector<8x32xf32>
    %c24 = arith.constant 24 : index
    %c0_45 = arith.constant 0 : index
    %134 = vector.load %arg27[%c24, %c0_45] : memref<64x384xf32, #tpu.memory_space<vmem>>, vector<8x384xf32>
    %cst_46 = arith.constant dense<0.000000e+00> : vector<8x384xf32>
    %135 = tpu.matmul %133, %7, %cst_46 {dimension_numbers = #tpu.dot_dimension_numbers<[1], [0], [0], [1], [0, 0, 1, 1], [], []>} : vector<8x32xf32>, vector<32x384xf32>, vector<8x384xf32> -> vector<8x384xf32>
    %136 = vector.broadcast %8 : vector<1x384xf32> to vector<8x384xf32>
    %137 = arith.addf %135, %136 : vector<8x384xf32>
    %138 = arith.addf %134, %137 : vector<8x384xf32>
    %139 = vector.extract_strided_slice %138 {offsets = [0, 0], sizes = [8, 32], strides = [1, 1]} : vector<8x384xf32> to vector<8x32xf32>
    %140 = arith.negf %139 : vector<8x32xf32>
    %141 = math.exp %140 : vector<8x32xf32>
    %cst_47 = arith.constant 1.000000e+00 : f32
    %142 = vector.broadcast %cst_47 : f32 to vector<8x32xf32>
    %143 = arith.addf %142, %141 : vector<8x32xf32>
    %144 = arith.divf %142, %143 : vector<8x32xf32>
    %145 = vector.extract_strided_slice %138 {offsets = [0, 128], sizes = [8, 32], strides = [1, 1]} : vector<8x384xf32> to vector<8x32xf32>
    %146 = arith.negf %145 : vector<8x32xf32>
    %147 = math.exp %146 : vector<8x32xf32>
    %cst_48 = arith.constant 1.000000e+00 : f32
    %148 = vector.broadcast %cst_48 : f32 to vector<8x32xf32>
    %149 = arith.addf %148, %147 : vector<8x32xf32>
    %150 = arith.divf %148, %149 : vector<8x32xf32>
    %151 = vector.extract_strided_slice %134 {offsets = [0, 256], sizes = [8, 32], strides = [1, 1]} : vector<8x384xf32> to vector<8x32xf32>
    %152 = vector.extract_strided_slice %137 {offsets = [0, 256], sizes = [8, 32], strides = [1, 1]} : vector<8x384xf32> to vector<8x32xf32>
    %153 = arith.mulf %150, %152 : vector<8x32xf32>
    %154 = arith.addf %151, %153 : vector<8x32xf32>
    %155 = math.tanh %154 : vector<8x32xf32>
    %cst_49 = arith.constant 1.000000e+00 : f32
    %156 = vector.broadcast %cst_49 : f32 to vector<8x32xf32>
    %157 = arith.subf %156, %144 : vector<8x32xf32>
    %158 = arith.mulf %157, %155 : vector<8x32xf32>
    %159 = arith.mulf %144, %133 : vector<8x32xf32>
    %160 = arith.addf %158, %159 : vector<8x32xf32>
    %c4 = arith.constant 4 : index
    %161 = memref.load %arg1[%c4] : memref<8xf32, #tpu.memory_space<smem>>
    %c3_50 = arith.constant 3 : index
    %162 = memref.load %arg1[%c3_50] : memref<8xf32, #tpu.memory_space<smem>>
    %163 = arith.subf %161, %162 : f32
    %cst_51 = arith.constant dense<0.000000e+00> : vector<8x32xf32>
    %164 = tpu.matmul %160, %9, %cst_51 {dimension_numbers = #tpu.dot_dimension_numbers<[1], [0], [0], [1], [0, 0, 1, 1], [], []>} : vector<8x32xf32>, vector<32x32xf32>, vector<8x32xf32> -> vector<8x32xf32>
    %165 = vector.broadcast %10 : vector<1x32xf32> to vector<8x32xf32>
    %166 = arith.addf %164, %165 : vector<8x32xf32>
    %167 = math.tanh %166 : vector<8x32xf32>
    %cst_52 = arith.constant dense<0.000000e+00> : vector<8x32xf32>
    %168 = tpu.matmul %167, %11, %cst_52 {dimension_numbers = #tpu.dot_dimension_numbers<[1], [0], [0], [1], [0, 0, 1, 1], [], []>} : vector<8x32xf32>, vector<32x32xf32>, vector<8x32xf32> -> vector<8x32xf32>
    %169 = vector.broadcast %12 : vector<1x32xf32> to vector<8x32xf32>
    %170 = arith.addf %168, %169 : vector<8x32xf32>
    %171 = vector.broadcast %163 : f32 to vector<8x32xf32>
    %172 = arith.mulf %171, %170 : vector<8x32xf32>
    %173 = arith.addf %160, %172 : vector<8x32xf32>
    %c32 = arith.constant 32 : index
    %c0_53 = arith.constant 0 : index
    %174 = vector.load %arg27[%c32, %c0_53] : memref<64x384xf32, #tpu.memory_space<vmem>>, vector<8x384xf32>
    %cst_54 = arith.constant dense<0.000000e+00> : vector<8x384xf32>
    %175 = tpu.matmul %173, %7, %cst_54 {dimension_numbers = #tpu.dot_dimension_numbers<[1], [0], [0], [1], [0, 0, 1, 1], [], []>} : vector<8x32xf32>, vector<32x384xf32>, vector<8x384xf32> -> vector<8x384xf32>
    %176 = vector.broadcast %8 : vector<1x384xf32> to vector<8x384xf32>
    %177 = arith.addf %175, %176 : vector<8x384xf32>
    %178 = arith.addf %174, %177 : vector<8x384xf32>
    %179 = vector.extract_strided_slice %178 {offsets = [0, 0], sizes = [8, 32], strides = [1, 1]} : vector<8x384xf32> to vector<8x32xf32>
    %180 = arith.negf %179 : vector<8x32xf32>
    %181 = math.exp %180 : vector<8x32xf32>
    %cst_55 = arith.constant 1.000000e+00 : f32
    %182 = vector.broadcast %cst_55 : f32 to vector<8x32xf32>
    %183 = arith.addf %182, %181 : vector<8x32xf32>
    %184 = arith.divf %182, %183 : vector<8x32xf32>
    %185 = vector.extract_strided_slice %178 {offsets = [0, 128], sizes = [8, 32], strides = [1, 1]} : vector<8x384xf32> to vector<8x32xf32>
    %186 = arith.negf %185 : vector<8x32xf32>
    %187 = math.exp %186 : vector<8x32xf32>
    %cst_56 = arith.constant 1.000000e+00 : f32
    %188 = vector.broadcast %cst_56 : f32 to vector<8x32xf32>
    %189 = arith.addf %188, %187 : vector<8x32xf32>
    %190 = arith.divf %188, %189 : vector<8x32xf32>
    %191 = vector.extract_strided_slice %174 {offsets = [0, 256], sizes = [8, 32], strides = [1, 1]} : vector<8x384xf32> to vector<8x32xf32>
    %192 = vector.extract_strided_slice %177 {offsets = [0, 256], sizes = [8, 32], strides = [1, 1]} : vector<8x384xf32> to vector<8x32xf32>
    %193 = arith.mulf %190, %192 : vector<8x32xf32>
    %194 = arith.addf %191, %193 : vector<8x32xf32>
    %195 = math.tanh %194 : vector<8x32xf32>
    %cst_57 = arith.constant 1.000000e+00 : f32
    %196 = vector.broadcast %cst_57 : f32 to vector<8x32xf32>
    %197 = arith.subf %196, %184 : vector<8x32xf32>
    %198 = arith.mulf %197, %195 : vector<8x32xf32>
    %199 = arith.mulf %184, %173 : vector<8x32xf32>
    %200 = arith.addf %198, %199 : vector<8x32xf32>
    %c5 = arith.constant 5 : index
    %201 = memref.load %arg1[%c5] : memref<8xf32, #tpu.memory_space<smem>>
    %c4_58 = arith.constant 4 : index
    %202 = memref.load %arg1[%c4_58] : memref<8xf32, #tpu.memory_space<smem>>
    %203 = arith.subf %201, %202 : f32
    %cst_59 = arith.constant dense<0.000000e+00> : vector<8x32xf32>
    %204 = tpu.matmul %200, %9, %cst_59 {dimension_numbers = #tpu.dot_dimension_numbers<[1], [0], [0], [1], [0, 0, 1, 1], [], []>} : vector<8x32xf32>, vector<32x32xf32>, vector<8x32xf32> -> vector<8x32xf32>
    %205 = vector.broadcast %10 : vector<1x32xf32> to vector<8x32xf32>
    %206 = arith.addf %204, %205 : vector<8x32xf32>
    %207 = math.tanh %206 : vector<8x32xf32>
    %cst_60 = arith.constant dense<0.000000e+00> : vector<8x32xf32>
    %208 = tpu.matmul %207, %11, %cst_60 {dimension_numbers = #tpu.dot_dimension_numbers<[1], [0], [0], [1], [0, 0, 1, 1], [], []>} : vector<8x32xf32>, vector<32x32xf32>, vector<8x32xf32> -> vector<8x32xf32>
    %209 = vector.broadcast %12 : vector<1x32xf32> to vector<8x32xf32>
    %210 = arith.addf %208, %209 : vector<8x32xf32>
    %211 = vector.broadcast %203 : f32 to vector<8x32xf32>
    %212 = arith.mulf %211, %210 : vector<8x32xf32>
    %213 = arith.addf %200, %212 : vector<8x32xf32>
    %c40 = arith.constant 40 : index
    %c0_61 = arith.constant 0 : index
    %214 = vector.load %arg27[%c40, %c0_61] : memref<64x384xf32, #tpu.memory_space<vmem>>, vector<8x384xf32>
    %cst_62 = arith.constant dense<0.000000e+00> : vector<8x384xf32>
    %215 = tpu.matmul %213, %7, %cst_62 {dimension_numbers = #tpu.dot_dimension_numbers<[1], [0], [0], [1], [0, 0, 1, 1], [], []>} : vector<8x32xf32>, vector<32x384xf32>, vector<8x384xf32> -> vector<8x384xf32>
    %216 = vector.broadcast %8 : vector<1x384xf32> to vector<8x384xf32>
    %217 = arith.addf %215, %216 : vector<8x384xf32>
    %218 = arith.addf %214, %217 : vector<8x384xf32>
    %219 = vector.extract_strided_slice %218 {offsets = [0, 0], sizes = [8, 32], strides = [1, 1]} : vector<8x384xf32> to vector<8x32xf32>
    %220 = arith.negf %219 : vector<8x32xf32>
    %221 = math.exp %220 : vector<8x32xf32>
    %cst_63 = arith.constant 1.000000e+00 : f32
    %222 = vector.broadcast %cst_63 : f32 to vector<8x32xf32>
    %223 = arith.addf %222, %221 : vector<8x32xf32>
    %224 = arith.divf %222, %223 : vector<8x32xf32>
    %225 = vector.extract_strided_slice %218 {offsets = [0, 128], sizes = [8, 32], strides = [1, 1]} : vector<8x384xf32> to vector<8x32xf32>
    %226 = arith.negf %225 : vector<8x32xf32>
    %227 = math.exp %226 : vector<8x32xf32>
    %cst_64 = arith.constant 1.000000e+00 : f32
    %228 = vector.broadcast %cst_64 : f32 to vector<8x32xf32>
    %229 = arith.addf %228, %227 : vector<8x32xf32>
    %230 = arith.divf %228, %229 : vector<8x32xf32>
    %231 = vector.extract_strided_slice %214 {offsets = [0, 256], sizes = [8, 32], strides = [1, 1]} : vector<8x384xf32> to vector<8x32xf32>
    %232 = vector.extract_strided_slice %217 {offsets = [0, 256], sizes = [8, 32], strides = [1, 1]} : vector<8x384xf32> to vector<8x32xf32>
    %233 = arith.mulf %230, %232 : vector<8x32xf32>
    %234 = arith.addf %231, %233 : vector<8x32xf32>
    %235 = math.tanh %234 : vector<8x32xf32>
    %cst_65 = arith.constant 1.000000e+00 : f32
    %236 = vector.broadcast %cst_65 : f32 to vector<8x32xf32>
    %237 = arith.subf %236, %224 : vector<8x32xf32>
    %238 = arith.mulf %237, %235 : vector<8x32xf32>
    %239 = arith.mulf %224, %213 : vector<8x32xf32>
    %240 = arith.addf %238, %239 : vector<8x32xf32>
    %c6 = arith.constant 6 : index
    %241 = memref.load %arg1[%c6] : memref<8xf32, #tpu.memory_space<smem>>
    %c5_66 = arith.constant 5 : index
    %242 = memref.load %arg1[%c5_66] : memref<8xf32, #tpu.memory_space<smem>>
    %243 = arith.subf %241, %242 : f32
    %cst_67 = arith.constant dense<0.000000e+00> : vector<8x32xf32>
    %244 = tpu.matmul %240, %9, %cst_67 {dimension_numbers = #tpu.dot_dimension_numbers<[1], [0], [0], [1], [0, 0, 1, 1], [], []>} : vector<8x32xf32>, vector<32x32xf32>, vector<8x32xf32> -> vector<8x32xf32>
    %245 = vector.broadcast %10 : vector<1x32xf32> to vector<8x32xf32>
    %246 = arith.addf %244, %245 : vector<8x32xf32>
    %247 = math.tanh %246 : vector<8x32xf32>
    %cst_68 = arith.constant dense<0.000000e+00> : vector<8x32xf32>
    %248 = tpu.matmul %247, %11, %cst_68 {dimension_numbers = #tpu.dot_dimension_numbers<[1], [0], [0], [1], [0, 0, 1, 1], [], []>} : vector<8x32xf32>, vector<32x32xf32>, vector<8x32xf32> -> vector<8x32xf32>
    %249 = vector.broadcast %12 : vector<1x32xf32> to vector<8x32xf32>
    %250 = arith.addf %248, %249 : vector<8x32xf32>
    %251 = vector.broadcast %243 : f32 to vector<8x32xf32>
    %252 = arith.mulf %251, %250 : vector<8x32xf32>
    %253 = arith.addf %240, %252 : vector<8x32xf32>
    %c48 = arith.constant 48 : index
    %c0_69 = arith.constant 0 : index
    %254 = vector.load %arg27[%c48, %c0_69] : memref<64x384xf32, #tpu.memory_space<vmem>>, vector<8x384xf32>
    %cst_70 = arith.constant dense<0.000000e+00> : vector<8x384xf32>
    %255 = tpu.matmul %253, %7, %cst_70 {dimension_numbers = #tpu.dot_dimension_numbers<[1], [0], [0], [1], [0, 0, 1, 1], [], []>} : vector<8x32xf32>, vector<32x384xf32>, vector<8x384xf32> -> vector<8x384xf32>
    %256 = vector.broadcast %8 : vector<1x384xf32> to vector<8x384xf32>
    %257 = arith.addf %255, %256 : vector<8x384xf32>
    %258 = arith.addf %254, %257 : vector<8x384xf32>
    %259 = vector.extract_strided_slice %258 {offsets = [0, 0], sizes = [8, 32], strides = [1, 1]} : vector<8x384xf32> to vector<8x32xf32>
    %260 = arith.negf %259 : vector<8x32xf32>
    %261 = math.exp %260 : vector<8x32xf32>
    %cst_71 = arith.constant 1.000000e+00 : f32
    %262 = vector.broadcast %cst_71 : f32 to vector<8x32xf32>
    %263 = arith.addf %262, %261 : vector<8x32xf32>
    %264 = arith.divf %262, %263 : vector<8x32xf32>
    %265 = vector.extract_strided_slice %258 {offsets = [0, 128], sizes = [8, 32], strides = [1, 1]} : vector<8x384xf32> to vector<8x32xf32>
    %266 = arith.negf %265 : vector<8x32xf32>
    %267 = math.exp %266 : vector<8x32xf32>
    %cst_72 = arith.constant 1.000000e+00 : f32
    %268 = vector.broadcast %cst_72 : f32 to vector<8x32xf32>
    %269 = arith.addf %268, %267 : vector<8x32xf32>
    %270 = arith.divf %268, %269 : vector<8x32xf32>
    %271 = vector.extract_strided_slice %254 {offsets = [0, 256], sizes = [8, 32], strides = [1, 1]} : vector<8x384xf32> to vector<8x32xf32>
    %272 = vector.extract_strided_slice %257 {offsets = [0, 256], sizes = [8, 32], strides = [1, 1]} : vector<8x384xf32> to vector<8x32xf32>
    %273 = arith.mulf %270, %272 : vector<8x32xf32>
    %274 = arith.addf %271, %273 : vector<8x32xf32>
    %275 = math.tanh %274 : vector<8x32xf32>
    %cst_73 = arith.constant 1.000000e+00 : f32
    %276 = vector.broadcast %cst_73 : f32 to vector<8x32xf32>
    %277 = arith.subf %276, %264 : vector<8x32xf32>
    %278 = arith.mulf %277, %275 : vector<8x32xf32>
    %279 = arith.mulf %264, %253 : vector<8x32xf32>
    %280 = arith.addf %278, %279 : vector<8x32xf32>
    %c7 = arith.constant 7 : index
    %281 = memref.load %arg1[%c7] : memref<8xf32, #tpu.memory_space<smem>>
    %c6_74 = arith.constant 6 : index
    %282 = memref.load %arg1[%c6_74] : memref<8xf32, #tpu.memory_space<smem>>
    %283 = arith.subf %281, %282 : f32
    %cst_75 = arith.constant dense<0.000000e+00> : vector<8x32xf32>
    %284 = tpu.matmul %280, %9, %cst_75 {dimension_numbers = #tpu.dot_dimension_numbers<[1], [0], [0], [1], [0, 0, 1, 1], [], []>} : vector<8x32xf32>, vector<32x32xf32>, vector<8x32xf32> -> vector<8x32xf32>
    %285 = vector.broadcast %10 : vector<1x32xf32> to vector<8x32xf32>
    %286 = arith.addf %284, %285 : vector<8x32xf32>
    %287 = math.tanh %286 : vector<8x32xf32>
    %cst_76 = arith.constant dense<0.000000e+00> : vector<8x32xf32>
    %288 = tpu.matmul %287, %11, %cst_76 {dimension_numbers = #tpu.dot_dimension_numbers<[1], [0], [0], [1], [0, 0, 1, 1], [], []>} : vector<8x32xf32>, vector<32x32xf32>, vector<8x32xf32> -> vector<8x32xf32>
    %289 = vector.broadcast %12 : vector<1x32xf32> to vector<8x32xf32>
    %290 = arith.addf %288, %289 : vector<8x32xf32>
    %291 = vector.broadcast %283 : f32 to vector<8x32xf32>
    %292 = arith.mulf %291, %290 : vector<8x32xf32>
    %293 = arith.addf %280, %292 : vector<8x32xf32>
    %c56 = arith.constant 56 : index
    %c0_77 = arith.constant 0 : index
    %294 = vector.load %arg27[%c56, %c0_77] : memref<64x384xf32, #tpu.memory_space<vmem>>, vector<8x384xf32>
    %cst_78 = arith.constant dense<0.000000e+00> : vector<8x384xf32>
    %295 = tpu.matmul %293, %7, %cst_78 {dimension_numbers = #tpu.dot_dimension_numbers<[1], [0], [0], [1], [0, 0, 1, 1], [], []>} : vector<8x32xf32>, vector<32x384xf32>, vector<8x384xf32> -> vector<8x384xf32>
    %296 = vector.broadcast %8 : vector<1x384xf32> to vector<8x384xf32>
    %297 = arith.addf %295, %296 : vector<8x384xf32>
    %298 = arith.addf %294, %297 : vector<8x384xf32>
    %299 = vector.extract_strided_slice %298 {offsets = [0, 0], sizes = [8, 32], strides = [1, 1]} : vector<8x384xf32> to vector<8x32xf32>
    %300 = arith.negf %299 : vector<8x32xf32>
    %301 = math.exp %300 : vector<8x32xf32>
    %cst_79 = arith.constant 1.000000e+00 : f32
    %302 = vector.broadcast %cst_79 : f32 to vector<8x32xf32>
    %303 = arith.addf %302, %301 : vector<8x32xf32>
    %304 = arith.divf %302, %303 : vector<8x32xf32>
    %305 = vector.extract_strided_slice %298 {offsets = [0, 128], sizes = [8, 32], strides = [1, 1]} : vector<8x384xf32> to vector<8x32xf32>
    %306 = arith.negf %305 : vector<8x32xf32>
    %307 = math.exp %306 : vector<8x32xf32>
    %cst_80 = arith.constant 1.000000e+00 : f32
    %308 = vector.broadcast %cst_80 : f32 to vector<8x32xf32>
    %309 = arith.addf %308, %307 : vector<8x32xf32>
    %310 = arith.divf %308, %309 : vector<8x32xf32>
    %311 = vector.extract_strided_slice %294 {offsets = [0, 256], sizes = [8, 32], strides = [1, 1]} : vector<8x384xf32> to vector<8x32xf32>
    %312 = vector.extract_strided_slice %297 {offsets = [0, 256], sizes = [8, 32], strides = [1, 1]} : vector<8x384xf32> to vector<8x32xf32>
    %313 = arith.mulf %310, %312 : vector<8x32xf32>
    %314 = arith.addf %311, %313 : vector<8x32xf32>
    %315 = math.tanh %314 : vector<8x32xf32>
    %cst_81 = arith.constant 1.000000e+00 : f32
    %316 = vector.broadcast %cst_81 : f32 to vector<8x32xf32>
    %317 = arith.subf %316, %304 : vector<8x32xf32>
    %318 = arith.mulf %317, %315 : vector<8x32xf32>
    %319 = arith.mulf %304, %293 : vector<8x32xf32>
    %320 = arith.addf %318, %319 : vector<8x32xf32>
    %c0_82 = arith.constant 0 : index
    %c0_83 = arith.constant 0 : index
    %321 = vector.load %arg13[%c0_82, %c0_83] : memref<32x256xf32, #tpu.memory_space<vmem>>, vector<32x256xf32>
    %cst_84 = arith.constant dense<0.000000e+00> : vector<8x256xf32>
    %322 = tpu.matmul %320, %321, %cst_84 {dimension_numbers = #tpu.dot_dimension_numbers<[1], [0], [0], [1], [0, 0, 1, 1], [], []>} : vector<8x32xf32>, vector<32x256xf32>, vector<8x256xf32> -> vector<8x256xf32>
    %c0_85 = arith.constant 0 : index
    %c0_86 = arith.constant 0 : index
    %323 = vector.load %arg14[%c0_85, %c0_86] : memref<1x256xf32, #tpu.memory_space<vmem>>, vector<1x256xf32>
    %324 = vector.broadcast %323 : vector<1x256xf32> to vector<8x256xf32>
    %325 = arith.addf %322, %324 : vector<8x256xf32>
    %326 = vector.extract_strided_slice %325 {offsets = [0, 0], sizes = [8, 32], strides = [1, 1]} : vector<8x256xf32> to vector<8x32xf32>
    %327 = vector.extract_strided_slice %325 {offsets = [0, 128], sizes = [8, 32], strides = [1, 1]} : vector<8x256xf32> to vector<8x32xf32>
    %c0_87 = arith.constant 0 : index
    %c0_88 = arith.constant 0 : index
    %328 = vector.load %arg24[%c0_87, %c0_88] : memref<8x32xf32, #tpu.memory_space<vmem>>, vector<8x32xf32>
    tpu.vector_store %arg24[%c0_87, %c0_88], %326 {strides = array<i32>} : memref<8x32xf32, #tpu.memory_space<vmem>>, vector<8x32xf32>,
    %c0_89 = arith.constant 0 : index
    %c0_90 = arith.constant 0 : index
    %329 = vector.load %arg25[%c0_89, %c0_90] : memref<8x32xf32, #tpu.memory_space<vmem>>, vector<8x32xf32>
    tpu.vector_store %arg25[%c0_89, %c0_90], %327 {strides = array<i32>} : memref<8x32xf32, #tpu.memory_space<vmem>>, vector<8x32xf32>,
    %330 = tpu.concatenate %326, %326, %326 in 0 : vector<8x32xf32>, vector<8x32xf32>, vector<8x32xf32> -> vector<24x32xf32>
    %331 = tpu.concatenate %327, %327, %327 in 0 : vector<8x32xf32>, vector<8x32xf32>, vector<8x32xf32> -> vector<24x32xf32>
    %c0_91 = arith.constant 0 : index
    %c0_92 = arith.constant 0 : index
    %332 = vector.load %arg4[%c0_91, %c0_92] : memref<24x32xf32, #tpu.memory_space<vmem>>, vector<24x32xf32>
    %333 = arith.mulf %331, %332 : vector<24x32xf32>
    %334 = arith.addf %330, %333 : vector<24x32xf32>
    %c0_93 = arith.constant 0 : index
    %c0_94 = arith.constant 0 : index
    %335 = vector.load %arg26[%c0_93, %c0_94] : memref<24x32xf32, #tpu.memory_space<vmem>>, vector<24x32xf32>
    tpu.vector_store %arg26[%c0_93, %c0_94], %334 {strides = array<i32>} : memref<24x32xf32, #tpu.memory_space<vmem>>, vector<24x32xf32>,
    %336 = tpu.concatenate %334, %330 in 0 : vector<24x32xf32>, vector<24x32xf32> -> vector<48x32xf32>
    %c0_95 = arith.constant 0 : index
    %c0_96 = arith.constant 0 : index
    %337 = vector.load %arg15[%c0_95, %c0_96] : memref<32x32xf32, #tpu.memory_space<vmem>>, vector<32x32xf32>
    %c0_97 = arith.constant 0 : index
    %c0_98 = arith.constant 0 : index
    %338 = vector.load %arg16[%c0_97, %c0_98] : memref<1x32xf32, #tpu.memory_space<vmem>>, vector<1x32xf32>
    %c0_99 = arith.constant 0 : index
    %c0_100 = arith.constant 0 : index
    %339 = vector.load %arg17[%c0_99, %c0_100] : memref<32x32xf32, #tpu.memory_space<vmem>>, vector<32x32xf32>
    %c0_101 = arith.constant 0 : index
    %c0_102 = arith.constant 0 : index
    %340 = vector.load %arg18[%c0_101, %c0_102] : memref<1x32xf32, #tpu.memory_space<vmem>>, vector<1x32xf32>
    %c0_103 = arith.constant 0 : index
    %341 = memref.load %arg2[%c0_103] : memref<6xf32, #tpu.memory_space<smem>>
    %c7_104 = arith.constant 7 : index
    %342 = memref.load %arg1[%c7_104] : memref<8xf32, #tpu.memory_space<smem>>
    %343 = arith.subf %341, %342 : f32
    %cst_105 = arith.constant dense<0.000000e+00> : vector<48x32xf32>
    %344 = tpu.matmul %336, %337, %cst_105 {dimension_numbers = #tpu.dot_dimension_numbers<[1], [0], [0], [1], [0, 0, 1, 1], [], []>} : vector<48x32xf32>, vector<32x32xf32>, vector<48x32xf32> -> vector<48x32xf32>
    %345 = vector.broadcast %338 : vector<1x32xf32> to vector<48x32xf32>
    %346 = arith.addf %344, %345 : vector<48x32xf32>
    %347 = math.tanh %346 : vector<48x32xf32>
    %cst_106 = arith.constant dense<0.000000e+00> : vector<48x32xf32>
    %348 = tpu.matmul %347, %339, %cst_106 {dimension_numbers = #tpu.dot_dimension_numbers<[1], [0], [0], [1], [0, 0, 1, 1], [], []>} : vector<48x32xf32>, vector<32x32xf32>, vector<48x32xf32> -> vector<48x32xf32>
    %349 = vector.broadcast %340 : vector<1x32xf32> to vector<48x32xf32>
    %350 = arith.addf %348, %349 : vector<48x32xf32>
    %351 = vector.broadcast %343 : f32 to vector<48x32xf32>
    %352 = arith.mulf %351, %350 : vector<48x32xf32>
    %353 = arith.addf %336, %352 : vector<48x32xf32>
    %c0_107 = arith.constant 0 : index
    %c0_108 = arith.constant 0 : index
    %354 = vector.load %arg28[%c0_107, %c0_108] : memref<288x32xf32, #tpu.memory_space<vmem>>, vector<48x32xf32>
    tpu.vector_store %arg28[%c0_107, %c0_108], %353 {strides = array<i32>} : memref<288x32xf32, #tpu.memory_space<vmem>>, vector<48x32xf32>,
    %c1_109 = arith.constant 1 : index
    %355 = memref.load %arg2[%c1_109] : memref<6xf32, #tpu.memory_space<smem>>
    %c0_110 = arith.constant 0 : index
    %356 = memref.load %arg2[%c0_110] : memref<6xf32, #tpu.memory_space<smem>>
    %357 = arith.subf %355, %356 : f32
    %cst_111 = arith.constant dense<0.000000e+00> : vector<48x32xf32>
    %358 = tpu.matmul %353, %337, %cst_111 {dimension_numbers = #tpu.dot_dimension_numbers<[1], [0], [0], [1], [0, 0, 1, 1], [], []>} : vector<48x32xf32>, vector<32x32xf32>, vector<48x32xf32> -> vector<48x32xf32>
    %359 = vector.broadcast %338 : vector<1x32xf32> to vector<48x32xf32>
    %360 = arith.addf %358, %359 : vector<48x32xf32>
    %361 = math.tanh %360 : vector<48x32xf32>
    %cst_112 = arith.constant dense<0.000000e+00> : vector<48x32xf32>
    %362 = tpu.matmul %361, %339, %cst_112 {dimension_numbers = #tpu.dot_dimension_numbers<[1], [0], [0], [1], [0, 0, 1, 1], [], []>} : vector<48x32xf32>, vector<32x32xf32>, vector<48x32xf32> -> vector<48x32xf32>
    %363 = vector.broadcast %340 : vector<1x32xf32> to vector<48x32xf32>
    %364 = arith.addf %362, %363 : vector<48x32xf32>
    %365 = vector.broadcast %357 : f32 to vector<48x32xf32>
    %366 = arith.mulf %365, %364 : vector<48x32xf32>
    %367 = arith.addf %353, %366 : vector<48x32xf32>
    %c48_113 = arith.constant 48 : index
    %c0_114 = arith.constant 0 : index
    %368 = vector.load %arg28[%c48_113, %c0_114] : memref<288x32xf32, #tpu.memory_space<vmem>>, vector<48x32xf32>
    tpu.vector_store %arg28[%c48_113, %c0_114], %367 {strides = array<i32>} : memref<288x32xf32, #tpu.memory_space<vmem>>, vector<48x32xf32>,
    %c2_115 = arith.constant 2 : index
    %369 = memref.load %arg2[%c2_115] : memref<6xf32, #tpu.memory_space<smem>>
    %c1_116 = arith.constant 1 : index
    %370 = memref.load %arg2[%c1_116] : memref<6xf32, #tpu.memory_space<smem>>
    %371 = arith.subf %369, %370 : f32
    %cst_117 = arith.constant dense<0.000000e+00> : vector<48x32xf32>
    %372 = tpu.matmul %367, %337, %cst_117 {dimension_numbers = #tpu.dot_dimension_numbers<[1], [0], [0], [1], [0, 0, 1, 1], [], []>} : vector<48x32xf32>, vector<32x32xf32>, vector<48x32xf32> -> vector<48x32xf32>
    %373 = vector.broadcast %338 : vector<1x32xf32> to vector<48x32xf32>
    %374 = arith.addf %372, %373 : vector<48x32xf32>
    %375 = math.tanh %374 : vector<48x32xf32>
    %cst_118 = arith.constant dense<0.000000e+00> : vector<48x32xf32>
    %376 = tpu.matmul %375, %339, %cst_118 {dimension_numbers = #tpu.dot_dimension_numbers<[1], [0], [0], [1], [0, 0, 1, 1], [], []>} : vector<48x32xf32>, vector<32x32xf32>, vector<48x32xf32> -> vector<48x32xf32>
    %377 = vector.broadcast %340 : vector<1x32xf32> to vector<48x32xf32>
    %378 = arith.addf %376, %377 : vector<48x32xf32>
    %379 = vector.broadcast %371 : f32 to vector<48x32xf32>
    %380 = arith.mulf %379, %378 : vector<48x32xf32>
    %381 = arith.addf %367, %380 : vector<48x32xf32>
    %c96 = arith.constant 96 : index
    %c0_119 = arith.constant 0 : index
    %382 = vector.load %arg28[%c96, %c0_119] : memref<288x32xf32, #tpu.memory_space<vmem>>, vector<48x32xf32>
    tpu.vector_store %arg28[%c96, %c0_119], %381 {strides = array<i32>} : memref<288x32xf32, #tpu.memory_space<vmem>>, vector<48x32xf32>,
    %c3_120 = arith.constant 3 : index
    %383 = memref.load %arg2[%c3_120] : memref<6xf32, #tpu.memory_space<smem>>
    %c2_121 = arith.constant 2 : index
    %384 = memref.load %arg2[%c2_121] : memref<6xf32, #tpu.memory_space<smem>>
    %385 = arith.subf %383, %384 : f32
    %cst_122 = arith.constant dense<0.000000e+00> : vector<48x32xf32>
    %386 = tpu.matmul %381, %337, %cst_122 {dimension_numbers = #tpu.dot_dimension_numbers<[1], [0], [0], [1], [0, 0, 1, 1], [], []>} : vector<48x32xf32>, vector<32x32xf32>, vector<48x32xf32> -> vector<48x32xf32>
    %387 = vector.broadcast %338 : vector<1x32xf32> to vector<48x32xf32>
    %388 = arith.addf %386, %387 : vector<48x32xf32>
    %389 = math.tanh %388 : vector<48x32xf32>
    %cst_123 = arith.constant dense<0.000000e+00> : vector<48x32xf32>
    %390 = tpu.matmul %389, %339, %cst_123 {dimension_numbers = #tpu.dot_dimension_numbers<[1], [0], [0], [1], [0, 0, 1, 1], [], []>} : vector<48x32xf32>, vector<32x32xf32>, vector<48x32xf32> -> vector<48x32xf32>
    %391 = vector.broadcast %340 : vector<1x32xf32> to vector<48x32xf32>
    %392 = arith.addf %390, %391 : vector<48x32xf32>
    %393 = vector.broadcast %385 : f32 to vector<48x32xf32>
    %394 = arith.mulf %393, %392 : vector<48x32xf32>
    %395 = arith.addf %381, %394 : vector<48x32xf32>
    %c144 = arith.constant 144 : index
    %c0_124 = arith.constant 0 : index
    %396 = vector.load %arg28[%c144, %c0_124] : memref<288x32xf32, #tpu.memory_space<vmem>>, vector<48x32xf32>
    tpu.vector_store %arg28[%c144, %c0_124], %395 {strides = array<i32>} : memref<288x32xf32, #tpu.memory_space<vmem>>, vector<48x32xf32>,
    %c4_125 = arith.constant 4 : index
    %397 = memref.load %arg2[%c4_125] : memref<6xf32, #tpu.memory_space<smem>>
    %c3_126 = arith.constant 3 : index
    %398 = memref.load %arg2[%c3_126] : memref<6xf32, #tpu.memory_space<smem>>
    %399 = arith.subf %397, %398 : f32
    %cst_127 = arith.constant dense<0.000000e+00> : vector<48x32xf32>
    %400 = tpu.matmul %395, %337, %cst_127 {dimension_numbers = #tpu.dot_dimension_numbers<[1], [0], [0], [1], [0, 0, 1, 1], [], []>} : vector<48x32xf32>, vector<32x32xf32>, vector<48x32xf32> -> vector<48x32xf32>
    %401 = vector.broadcast %338 : vector<1x32xf32> to vector<48x32xf32>
    %402 = arith.addf %400, %401 : vector<48x32xf32>
    %403 = math.tanh %402 : vector<48x32xf32>
    %cst_128 = arith.constant dense<0.000000e+00> : vector<48x32xf32>
    %404 = tpu.matmul %403, %339, %cst_128 {dimension_numbers = #tpu.dot_dimension_numbers<[1], [0], [0], [1], [0, 0, 1, 1], [], []>} : vector<48x32xf32>, vector<32x32xf32>, vector<48x32xf32> -> vector<48x32xf32>
    %405 = vector.broadcast %340 : vector<1x32xf32> to vector<48x32xf32>
    %406 = arith.addf %404, %405 : vector<48x32xf32>
    %407 = vector.broadcast %399 : f32 to vector<48x32xf32>
    %408 = arith.mulf %407, %406 : vector<48x32xf32>
    %409 = arith.addf %395, %408 : vector<48x32xf32>
    %c192 = arith.constant 192 : index
    %c0_129 = arith.constant 0 : index
    %410 = vector.load %arg28[%c192, %c0_129] : memref<288x32xf32, #tpu.memory_space<vmem>>, vector<48x32xf32>
    tpu.vector_store %arg28[%c192, %c0_129], %409 {strides = array<i32>} : memref<288x32xf32, #tpu.memory_space<vmem>>, vector<48x32xf32>,
    %c5_130 = arith.constant 5 : index
    %411 = memref.load %arg2[%c5_130] : memref<6xf32, #tpu.memory_space<smem>>
    %c4_131 = arith.constant 4 : index
    %412 = memref.load %arg2[%c4_131] : memref<6xf32, #tpu.memory_space<smem>>
    %413 = arith.subf %411, %412 : f32
    %cst_132 = arith.constant dense<0.000000e+00> : vector<48x32xf32>
    %414 = tpu.matmul %409, %337, %cst_132 {dimension_numbers = #tpu.dot_dimension_numbers<[1], [0], [0], [1], [0, 0, 1, 1], [], []>} : vector<48x32xf32>, vector<32x32xf32>, vector<48x32xf32> -> vector<48x32xf32>
    %415 = vector.broadcast %338 : vector<1x32xf32> to vector<48x32xf32>
    %416 = arith.addf %414, %415 : vector<48x32xf32>
    %417 = math.tanh %416 : vector<48x32xf32>
    %cst_133 = arith.constant dense<0.000000e+00> : vector<48x32xf32>
    %418 = tpu.matmul %417, %339, %cst_133 {dimension_numbers = #tpu.dot_dimension_numbers<[1], [0], [0], [1], [0, 0, 1, 1], [], []>} : vector<48x32xf32>, vector<32x32xf32>, vector<48x32xf32> -> vector<48x32xf32>
    %419 = vector.broadcast %340 : vector<1x32xf32> to vector<48x32xf32>
    %420 = arith.addf %418, %419 : vector<48x32xf32>
    %421 = vector.broadcast %413 : f32 to vector<48x32xf32>
    %422 = arith.mulf %421, %420 : vector<48x32xf32>
    %423 = arith.addf %409, %422 : vector<48x32xf32>
    %c240 = arith.constant 240 : index
    %c0_134 = arith.constant 0 : index
    %424 = vector.load %arg28[%c240, %c0_134] : memref<288x32xf32, #tpu.memory_space<vmem>>, vector<48x32xf32>
    tpu.vector_store %arg28[%c240, %c0_134], %423 {strides = array<i32>} : memref<288x32xf32, #tpu.memory_space<vmem>>, vector<48x32xf32>,
    %c0_135 = arith.constant 0 : index
    %c0_136 = arith.constant 0 : index
    %425 = vector.load %arg28[%c0_135, %c0_136] : memref<288x32xf32, #tpu.memory_space<vmem>>, vector<288x32xf32>
    %c0_137 = arith.constant 0 : index
    %c0_138 = arith.constant 0 : index
    %426 = vector.load %arg19[%c0_137, %c0_138] : memref<32x32xf32, #tpu.memory_space<vmem>>, vector<32x32xf32>
    %cst_139 = arith.constant dense<0.000000e+00> : vector<288x32xf32>
    %427 = tpu.matmul %425, %426, %cst_139 {dimension_numbers = #tpu.dot_dimension_numbers<[1], [0], [0], [1], [0, 0, 1, 1], [], []>} : vector<288x32xf32>, vector<32x32xf32>, vector<288x32xf32> -> vector<288x32xf32>
    %c0_140 = arith.constant 0 : index
    %c0_141 = arith.constant 0 : index
    %428 = vector.load %arg20[%c0_140, %c0_141] : memref<1x32xf32, #tpu.memory_space<vmem>>, vector<1x32xf32>
    %429 = vector.broadcast %428 : vector<1x32xf32> to vector<288x32xf32>
    %430 = arith.addf %427, %429 : vector<288x32xf32>
    %431 = math.tanh %430 : vector<288x32xf32>
    %c0_142 = arith.constant 0 : index
    %c0_143 = arith.constant 0 : index
    %432 = vector.load %arg21[%c0_142, %c0_143] : memref<32x8xf32, #tpu.memory_space<vmem>>, vector<32x8xf32>
    %cst_144 = arith.constant dense<0.000000e+00> : vector<288x8xf32>
    %433 = tpu.matmul %431, %432, %cst_144 {dimension_numbers = #tpu.dot_dimension_numbers<[1], [0], [0], [1], [0, 0, 1, 1], [], []>} : vector<288x32xf32>, vector<32x8xf32>, vector<288x8xf32> -> vector<288x8xf32>
    %c0_145 = arith.constant 0 : index
    %c0_146 = arith.constant 0 : index
    %434 = vector.load %arg22[%c0_145, %c0_146] : memref<1x8xf32, #tpu.memory_space<vmem>>, vector<1x8xf32>
    %435 = vector.broadcast %434 : vector<1x8xf32> to vector<288x8xf32>
    %436 = arith.addf %433, %435 : vector<288x8xf32>
    %c0_147 = arith.constant 0 : index
    %c0_148 = arith.constant 0 : index
    %437 = vector.load %arg23[%c0_147, %c0_148] : memref<288x8xf32, #tpu.memory_space<vmem>>, vector<288x8xf32>
    tpu.vector_store %arg23[%c0_147, %c0_148], %436 {strides = array<i32>} : memref<288x8xf32, #tpu.memory_space<vmem>>, vector<288x8xf32>,
    return
  }
  func.func @transform_0(%arg0: i32) -> i32 {
    %c0_i32 = arith.constant 0 : i32
    %c0_i32_0 = arith.constant 0 : i32
    return %c0_i32 : i32
  }
  func.func @transform_1(%arg0: i32) -> i32 {
    %c0_i32 = arith.constant 0 : i32
    %c0_i32_0 = arith.constant 0 : i32
    return %c0_i32 : i32
  }
  func.func @transform_2(%arg0: i32) -> (i32, i32) {
    %c0_i32 = arith.constant 0 : i32
    %c0_i32_0 = arith.constant 0 : i32
    %c0_i32_1 = arith.constant 0 : i32
    return %c0_i32, %c0_i32_0 : i32, i32
  }
  func.func @transform_3(%arg0: i32) -> (i32, i32) {
    %c0_i32 = arith.constant 0 : i32
    %c0_i32_0 = arith.constant 0 : i32
    %c0_i32_1 = arith.constant 0 : i32
    return %c0_i32, %c0_i32_0 : i32, i32
  }
  func.func @transform_4(%arg0: i32) -> (i32, i32) {
    %c0_i32 = arith.constant 0 : i32
    %c0_i32_0 = arith.constant 0 : i32
    %c0_i32_1 = arith.constant 0 : i32
    return %c0_i32, %c0_i32_0 : i32, i32
  }
  func.func @transform_5(%arg0: i32) -> (i32, i32) {
    %c0_i32 = arith.constant 0 : i32
    %c0_i32_0 = arith.constant 0 : i32
    %c0_i32_1 = arith.constant 0 : i32
    return %c0_i32, %c0_i32_0 : i32, i32
  }
  func.func @transform_6(%arg0: i32) -> (i32, i32) {
    %c0_i32 = arith.constant 0 : i32
    %c0_i32_0 = arith.constant 0 : i32
    %c0_i32_1 = arith.constant 0 : i32
    return %c0_i32, %c0_i32_0 : i32, i32
  }
  func.func @transform_7(%arg0: i32) -> (i32, i32) {
    %c0_i32 = arith.constant 0 : i32
    %c0_i32_0 = arith.constant 0 : i32
    %c0_i32_1 = arith.constant 0 : i32
    return %c0_i32, %c0_i32_0 : i32, i32
  }
  func.func @transform_8(%arg0: i32) -> (i32, i32) {
    %c0_i32 = arith.constant 0 : i32
    %c0_i32_0 = arith.constant 0 : i32
    %c0_i32_1 = arith.constant 0 : i32
    return %c0_i32, %c0_i32_0 : i32, i32
  }
  func.func @transform_9(%arg0: i32) -> (i32, i32) {
    %c0_i32 = arith.constant 0 : i32
    %c0_i32_0 = arith.constant 0 : i32
    %c0_i32_1 = arith.constant 0 : i32
    return %c0_i32, %c0_i32_0 : i32, i32
  }
  func.func @transform_10(%arg0: i32) -> (i32, i32) {
    %c0_i32 = arith.constant 0 : i32
    %c0_i32_0 = arith.constant 0 : i32
    %c0_i32_1 = arith.constant 0 : i32
    return %c0_i32, %c0_i32_0 : i32, i32
  }
  func.func @transform_11(%arg0: i32) -> (i32, i32) {
    %c0_i32 = arith.constant 0 : i32
    %c0_i32_0 = arith.constant 0 : i32
    %c0_i32_1 = arith.constant 0 : i32
    return %c0_i32, %c0_i32_0 : i32, i32
  }
  func.func @transform_12(%arg0: i32) -> (i32, i32) {
    %c0_i32 = arith.constant 0 : i32
    %c0_i32_0 = arith.constant 0 : i32
    %c0_i32_1 = arith.constant 0 : i32
    return %c0_i32, %c0_i32_0 : i32, i32
  }
  func.func @transform_13(%arg0: i32) -> (i32, i32) {
    %c0_i32 = arith.constant 0 : i32
    %c0_i32_0 = arith.constant 0 : i32
    %c0_i32_1 = arith.constant 0 : i32
    return %c0_i32, %c0_i32_0 : i32, i32
  }
  func.func @transform_14(%arg0: i32) -> (i32, i32) {
    %c0_i32 = arith.constant 0 : i32
    %c0_i32_0 = arith.constant 0 : i32
    %c0_i32_1 = arith.constant 0 : i32
    return %c0_i32, %c0_i32_0 : i32, i32
  }
  func.func @transform_15(%arg0: i32) -> (i32, i32) {
    %c0_i32 = arith.constant 0 : i32
    %c0_i32_0 = arith.constant 0 : i32
    %c0_i32_1 = arith.constant 0 : i32
    return %c0_i32, %c0_i32_0 : i32, i32
  }
  func.func @transform_16(%arg0: i32) -> (i32, i32) {
    %c0_i32 = arith.constant 0 : i32
    %c0_i32_0 = arith.constant 0 : i32
    %c0_i32_1 = arith.constant 0 : i32
    return %c0_i32, %c0_i32_0 : i32, i32
  }
  func.func @transform_17(%arg0: i32) -> (i32, i32) {
    %c0_i32 = arith.constant 0 : i32
    %c0_i32_0 = arith.constant 0 : i32
    %c0_i32_1 = arith.constant 0 : i32
    return %c0_i32, %c0_i32_0 : i32, i32
  }
  func.func @transform_18(%arg0: i32) -> (i32, i32) {
    %c0_i32 = arith.constant 0 : i32
    %c0_i32_0 = arith.constant 0 : i32
    %c0_i32_1 = arith.constant 0 : i32
    return %c0_i32, %c0_i32_0 : i32, i32
  }
  func.func @transform_19(%arg0: i32) -> (i32, i32) {
    %c0_i32 = arith.constant 0 : i32
    %c0_i32_0 = arith.constant 0 : i32
    %c0_i32_1 = arith.constant 0 : i32
    return %c0_i32, %c0_i32_0 : i32, i32
  }
  func.func @transform_20(%arg0: i32) -> (i32, i32) {
    %c0_i32 = arith.constant 0 : i32
    %c0_i32_0 = arith.constant 0 : i32
    %c0_i32_1 = arith.constant 0 : i32
    return %c0_i32, %c0_i32_0 : i32, i32
  }
  func.func @transform_21(%arg0: i32) -> (i32, i32) {
    %c0_i32 = arith.constant 0 : i32
    %c0_i32_0 = arith.constant 0 : i32
    %c0_i32_1 = arith.constant 0 : i32
    return %c0_i32, %c0_i32_0 : i32, i32
  }
  func.func @transform_22(%arg0: i32) -> (i32, i32) {
    %c0_i32 = arith.constant 0 : i32
    %c0_i32_0 = arith.constant 0 : i32
    %c0_i32_1 = arith.constant 0 : i32
    return %c0_i32, %c0_i32_0 : i32, i32
  }
  func.func @transform_23(%arg0: i32) -> (i32, i32) {
    %c0_i32 = arith.constant 0 : i32
    %c0_i32_0 = arith.constant 0 : i32
    %c0_i32_1 = arith.constant 0 : i32
    return %c0_i32, %c0_i32_0 : i32, i32
  }
  func.func @transform_24(%arg0: i32) -> (i32, i32) {
    %c0_i32 = arith.constant 0 : i32
    %c0_i32_0 = arith.constant 0 : i32
    %c0_i32_1 = arith.constant 0 : i32
    return %c0_i32, %c0_i32_0 : i32, i32
  }
  func.func @transform_25(%arg0: i32) -> (i32, i32) {
    %c0_i32 = arith.constant 0 : i32
    %c0_i32_0 = arith.constant 0 : i32
    %c0_i32_1 = arith.constant 0 : i32
    return %c0_i32, %c0_i32_0 : i32, i32
  }
}

</mosaic_0001>

<llo_original>
// kernel: vae_forward.1
$region0: #{vae_forward.1}
  #allocation0 [shape = 'u32[]', space=smem, size = 0x4, offset = 0x4, fixed_abs, tag = 'smem constant byte address 0x4 - core index']
  #allocation1 [shape = 'u32[72,128]{1,0:T(1,128)}', space=vmem, size = 0x9000, scoped, tag = 'internal scratch']
  #allocation2 [shape = 'f32[64,384]{1,0:T(8,128)}', space=vmem, size = 0x18000, scoped, tag = 'scratch operand']
  #allocation3 [shape = 'f32[288,32]{1,0:T(8,128)}', space=vmem, size = 0x24000, scoped, tag = 'scratch operand']
  %s0 = inlined_call_operand.hbm [shape: f32[8], index: 0, kind: input, shape index: {}]
  %s1 = inlined_call_operand.hbm [shape: f32[6], index: 1, kind: input, shape index: {}]
  %s2 = inlined_call_operand.vmem [shape: f32[64,8], index: 2, kind: input, shape index: {}]
  %s3 = inlined_call_operand.vmem [shape: f32[24,32], index: 3, kind: input, shape index: {}]
  %s4 = inlined_call_operand.hbm [shape: f32[8,384], index: 4, kind: input, shape index: {}]
  %s5 = inlined_call_operand.hbm [shape: f32[1,384], index: 5, kind: input, shape index: {}]
  %s6 = inlined_call_operand.vmem [shape: f32[32,384], index: 6, kind: input, shape index: {}]
  %s7 = inlined_call_operand.vmem [shape: f32[1,384], index: 7, kind: input, shape index: {}]
  %s8 = inlined_call_operand.vmem [shape: f32[32,32], index: 8, kind: input, shape index: {}]
  %s9 = inlined_call_operand.vmem [shape: f32[1,32], index: 9, kind: input, shape index: {}]
  %s10 = inlined_call_operand.vmem [shape: f32[32,32], index: 10, kind: input, shape index: {}]
  %s11 = inlined_call_operand.hbm [shape: f32[1,32], index: 11, kind: input, shape index: {}]
  %s12 = inlined_call_operand.vmem [shape: f32[32,256], index: 12, kind: input, shape index: {}]
  %s13 = inlined_call_operand.vmem [shape: f32[1,256], index: 13, kind: input, shape index: {}]
  %s14 = inlined_call_operand.vmem [shape: f32[32,32], index: 14, kind: input, shape index: {}]
  %s15 = inlined_call_operand.vmem [shape: f32[1,32], index: 15, kind: input, shape index: {}]
  %s16 = inlined_call_operand.vmem [shape: f32[32,32], index: 16, kind: input, shape index: {}]
  %s17 = inlined_call_operand.vmem [shape: f32[1,32], index: 17, kind: input, shape index: {}]
  %s18 = inlined_call_operand.vmem [shape: f32[32,32], index: 18, kind: input, shape index: {}]
  %s19 = inlined_call_operand.vmem [shape: f32[1,32], index: 19, kind: input, shape index: {}]
  %s20 = inlined_call_operand.vmem [shape: f32[32,8], index: 20, kind: input, shape index: {}]
  %s21 = inlined_call_operand.vmem [shape: f32[1,8], index: 21, kind: input, shape index: {}]
  %s22 = inlined_call_operand.vmem [shape: f32[288,8], index: 22, kind: output, shape index: {0}]
  %s23 = inlined_call_operand.hbm [shape: f32[8,32], index: 23, kind: output, shape index: {1}]
  %s24 = inlined_call_operand.vmem [shape: f32[8,32], index: 24, kind: output, shape index: {2}]
  %s25 = inlined_call_operand.hbm [shape: f32[24,32], index: 25, kind: output, shape index: {3}]
  %26 = xla_tuple %s22, %s23, %s24, %s25
  %s27 = sld [smem:[#allocation0]]
  $region142: #{vae_forward.1} parent=0
    _
  %s29 = ssub.s32 1, %s27
  %s30 = scalar_select 0, %s29, %s27
  $region1: #{vae_forward.1} parent=0
    #allocation4 [shape = 'u8[512]{0}', space=smem, size = 0x200, scoped, tag = 'input window, operand 0, single buffered']
    #allocation5 [shape = 's32[1]{0}', space=sflag, size = 0x4, scoped, tag = 'scoped memory for vae_forward.1']
    #allocation6 [shape = 's32[1]{0}', space=sflag, size = 0x4, scoped, tag = 'scoped memory for vae_forward.1']
    #allocation7 [shape = 's32[1]{0}', space=sflag, size = 0x4, scoped, tag = 'scoped memory for vae_forward.1']
    #allocation8 [shape = 'u8[512]{0}', space=smem, size = 0x200, scoped, tag = 'input window, operand 1, single buffered']
    #allocation9 [shape = 's32[1]{0}', space=sflag, size = 0x4, scoped, tag = 'scoped memory for vae_forward.1']
    #allocation10 [shape = 'u8[12288]{0}', space=vmem, size = 0x3000, scoped, tag = 'input window, operand 4, single buffered']
    #allocation11 [shape = 'u8[1536]{0}', space=vmem, size = 0x800, scoped, tag = 'input window, operand 5, single buffered']
    #allocation12 [shape = 's32[1]{0}', space=sflag, size = 0x4, scoped, tag = 'scoped memory for vae_forward.1']
    #allocation13 [shape = 'u8[512]{0}', space=vmem, size = 0x400, scoped, tag = 'input window, operand 11, single buffered']
    #allocation14 [shape = 'u8[4096]{0}', space=vmem, size = 0x1000, scoped, tag = 'output window, operand 1, single buffered']
    #allocation15 [shape = 'u8[12288]{0}', space=vmem, size = 0x3000, scoped, tag = 'output window, operand 3, single buffered']
    #allocation16 [shape = 's32[1]{0}', space=sflag, size = 0x4, scoped, tag = 'scoped memory for vae_forward.1']
    %31 = vsyncpa [#allocation7], 0
    %32 = vsyncpa [#allocation9], 0
    %33 = vsyncpa [#allocation5], 0
    %34 = vsyncpa [#allocation12], 0
    %35 = vsyncpa [#allocation6], 0
    %36 = vsyncpa [#allocation16], 0
    // Predicated region
    $region2: #{vae_forward.1} parent=1 // pred_check
      _
    $region3: #{vae_forward.1} parent=1 // pred_check_branch
      %38 = sbr.rel (0) target = $region5
    $region4: #{vae_forward.1} parent=1 // pred_region
      %40 = vsyncadd [#allocation7], 0
      %s42 = sshll.u32 %s0, 4
      %s43 = int_to_ptr.hbm [resolvable:$true] %s42
      %45 = dma.hbm_to_smem %s43, 16, [#allocation4], [#allocation7]
    $region5: #{vae_forward.1} parent=1 // pred_fallthru
      _
    // Predicated region
    $region6: #{vae_forward.1} parent=1 // pred_check
      _
    $region7: #{vae_forward.1} parent=1 // pred_check_branch
      %47 = sbr.rel (0) target = $region9
    $region8: #{vae_forward.1} parent=1 // pred_region
      %49 = vsyncadd [#allocation9], 0
      %s51 = sshll.u32 %s1, 4
      %s52 = int_to_ptr.hbm [resolvable:$true] %s51
      %54 = dma.hbm_to_smem %s52, 16, [#allocation8], [#allocation9]
    $region9: #{vae_forward.1} parent=1 // pred_fallthru
      _
    // Predicated region
    $region10: #{vae_forward.1} parent=1 // pred_check
      _
    $region11: #{vae_forward.1} parent=1 // pred_check_branch
      %56 = sbr.rel (0) target = $region13
    $region12: #{vae_forward.1} parent=1 // pred_region
      _
    $region13: #{vae_forward.1} parent=1 // pred_fallthru
      _
    // Predicated region
    $region14: #{vae_forward.1} parent=1 // pred_check
      _
    $region15: #{vae_forward.1} parent=1 // pred_check_branch
      %58 = sbr.rel (0) target = $region17
    $region16: #{vae_forward.1} parent=1 // pred_region
      _
    $region17: #{vae_forward.1} parent=1 // pred_fallthru
      _
    // Predicated region
    $region18: #{vae_forward.1} parent=1 // pred_check
      _
    $region19: #{vae_forward.1} parent=1 // pred_check_branch
      %60 = sbr.rel (0) target = $region21
    $region20: #{vae_forward.1} parent=1 // pred_region
      %62 = vsyncadd [#allocation5], 0
      %s64 = sshll.u32 %s4, 4
      %s65 = int_to_ptr.hbm [resolvable:$true] %s64
      %s66 = sshll.u32 [#allocation10], 4
      %s67 = int_to_ptr.vmem [resolvable:$true] %s66
      %69 = dma.hbm_to_vmem [thread:$0]  %s65, 384, %s67, [#allocation5]
    $region21: #{vae_forward.1} parent=1 // pred_fallthru
      _
    // Predicated region
    $region22: #{vae_forward.1} parent=1 // pred_check
      _
    $region23: #{vae_forward.1} parent=1 // pred_check_branch
      %71 = sbr.rel (0) target = $region25
    $region24: #{vae_forward.1} parent=1 // pred_region
      %73 = vsyncadd [#allocation12], 0
      %s75 = sshll.u32 %s5, 4
      %s76 = int_to_ptr.hbm [resolvable:$true] %s75
      %s77 = sshll.u32 [#allocation11], 4
      %s78 = int_to_ptr.vmem [resolvable:$true] %s77
      %80 = dma.hbm_to_vmem [thread:$0]  %s76, 48, %s78, [#allocation12]
    $region25: #{vae_forward.1} parent=1 // pred_fallthru
      _
    // Predicated region
    $region26: #{vae_forward.1} parent=1 // pred_check
      _
    $region27: #{vae_forward.1} parent=1 // pred_check_branch
      %82 = sbr.rel (0) target = $region29
    $region28: #{vae_forward.1} parent=1 // pred_region
      _
    $region29: #{vae_forward.1} parent=1 // pred_fallthru
      _
    // Predicated region
    $region30: #{vae_forward.1} parent=1 // pred_check
      _
    $region31: #{vae_forward.1} parent=1 // pred_check_branch
      %84 = sbr.rel (0) target = $region33
    $region32: #{vae_forward.1} parent=1 // pred_region
      _
    $region33: #{vae_forward.1} parent=1 // pred_fallthru
      _
    // Predicated region
    $region34: #{vae_forward.1} parent=1 // pred_check
      _
    $region35: #{vae_forward.1} parent=1 // pred_check_branch
      %86 = sbr.rel (0) target = $region37
    $region36: #{vae_forward.1} parent=1 // pred_region
      _
    $region37: #{vae_forward.1} parent=1 // pred_fallthru
      _
    // Predicated region
    $region38: #{vae_forward.1} parent=1 // pred_check
      _
    $region39: #{vae_forward.1} parent=1 // pred_check_branch
      %88 = sbr.rel (0) target = $region41
    $region40: #{vae_forward.1} parent=1 // pred_region
      _
    $region41: #{vae_forward.1} parent=1 // pred_fallthru
      _
    // Predicated region
    $region42: #{vae_forward.1} parent=1 // pred_check
      _
    $region43: #{vae_forward.1} parent=1 // pred_check_branch
      %90 = sbr.rel (0) target = $region45
    $region44: #{vae_forward.1} parent=1 // pred_region
      _
    $region45: #{vae_forward.1} parent=1 // pred_fallthru
      _
    // Predicated region
    $region46: #{vae_forward.1} parent=1 // pred_check
      _
    $region47: #{vae_forward.1} parent=1 // pred_check_branch
      %92 = sbr.rel (0) target = $region49
    $region48: #{vae_forward.1} parent=1 // pred_region
      %94 = vsyncadd [#allocation12], 0
      %s96 = sshll.u32 %s11, 4
      %s97 = int_to_ptr.hbm [resolvable:$true] %s96
      %s98 = sshll.u32 [#allocation13], 4
      %s99 = int_to_ptr.vmem [resolvable:$true] %s98
      %101 = dma.hbm_to_vmem [thread:$0]  %s97, 16, %s99, [#allocation12]
    $region49: #{vae_forward.1} parent=1 // pred_fallthru
      _
    // Predicated region
    $region50: #{vae_forward.1} parent=1 // pred_check
      _
    $region51: #{vae_forward.1} parent=1 // pred_check_branch
      %103 = sbr.rel (0) target = $region53
    $region52: #{vae_forward.1} parent=1 // pred_region
      _
    $region53: #{vae_forward.1} parent=1 // pred_fallthru
      _
    // Predicated region
    $region54: #{vae_forward.1} parent=1 // pred_check
      _
    $region55: #{vae_forward.1} parent=1 // pred_check_branch
      %105 = sbr.rel (0) target = $region57
    $region56: #{vae_forward.1} parent=1 // pred_region
      _
    $region57: #{vae_forward.1} parent=1 // pred_fallthru
      _
    // Predicated region
    $region58: #{vae_forward.1} parent=1 // pred_check
      _
    $region59: #{vae_forward.1} parent=1 // pred_check_branch
      %107 = sbr.rel (0) target = $region61
    $region60: #{vae_forward.1} parent=1 // pred_region
      _
    $region61: #{vae_forward.1} parent=1 // pred_fallthru
      _
    // Predicated region
    $region62: #{vae_forward.1} parent=1 // pred_check
      _
    $region63: #{vae_forward.1} parent=1 // pred_check_branch
      %109 = sbr.rel (0) target = $region65
    $region64: #{vae_forward.1} parent=1 // pred_region
      _
    $region65: #{vae_forward.1} parent=1 // pred_fallthru
      _
    // Predicated region
    $region66: #{vae_forward.1} parent=1 // pred_check
      _
    $region67: #{vae_forward.1} parent=1 // pred_check_branch
      %111 = sbr.rel (0) target = $region69
    $region68: #{vae_forward.1} parent=1 // pred_region
      _
    $region69: #{vae_forward.1} parent=1 // pred_fallthru
      _
    // Predicated region
    $region70: #{vae_forward.1} parent=1 // pred_check
      _
    $region71: #{vae_forward.1} parent=1 // pred_check_branch
      %113 = sbr.rel (0) target = $region73
    $region72: #{vae_forward.1} parent=1 // pred_region
      _
    $region73: #{vae_forward.1} parent=1 // pred_fallthru
      _
    // Predicated region
    $region74: #{vae_forward.1} parent=1 // pred_check
      _
    $region75: #{vae_forward.1} parent=1 // pred_check_branch
      %115 = sbr.rel (0) target = $region77
    $region76: #{vae_forward.1} parent=1 // pred_region
      _
    $region77: #{vae_forward.1} parent=1 // pred_fallthru
      _
    // Predicated region
    $region78: #{vae_forward.1} parent=1 // pred_check
      _
    $region79: #{vae_forward.1} parent=1 // pred_check_branch
      %117 = sbr.rel (0) target = $region81
    $region80: #{vae_forward.1} parent=1 // pred_region
      _
    $region81: #{vae_forward.1} parent=1 // pred_fallthru
      _
    // Predicated region
    $region82: #{vae_forward.1} parent=1 // pred_check
      _
    $region83: #{vae_forward.1} parent=1 // pred_check_branch
      %119 = sbr.rel (0) target = $region85
    $region84: #{vae_forward.1} parent=1 // pred_region
      _
    $region85: #{vae_forward.1} parent=1 // pred_fallthru
      _
    // Predicated region
    $region86: #{vae_forward.1} parent=1 // pred_check
      _
    $region87: #{vae_forward.1} parent=1 // pred_check_branch
      %121 = sbr.rel (0) target = $region89
    $region88: #{vae_forward.1} parent=1 // pred_region
      _
    $region89: #{vae_forward.1} parent=1 // pred_fallthru
      _
    // Predicated region
    $region90: #{vae_forward.1} parent=1 // pred_check
      _
    $region91: #{vae_forward.1} parent=1 // pred_check_branch
      %123 = sbr.rel (0) target = $region93
    $region92: #{vae_forward.1} parent=1 // pred_region
      %125 = dma.done [#allocation7], 16
    $region93: #{vae_forward.1} parent=1 // pred_fallthru
      _
    // Predicated region
    $region94: #{vae_forward.1} parent=1 // pred_check
      _
    $region95: #{vae_forward.1} parent=1 // pred_check_branch
      %127 = sbr.rel (0) target = $region97
    $region96: #{vae_forward.1} parent=1 // pred_region
      %129 = dma.done [#allocation9], 16
    $region97: #{vae_forward.1} parent=1 // pred_fallthru
      _
    // Predicated region
    $region98: #{vae_forward.1} parent=1 // pred_check
      _
    $region99: #{vae_forward.1} parent=1 // pred_check_branch
      %131 = sbr.rel (0) target = $region101
    $region100: #{vae_forward.1} parent=1 // pred_region
      %133 = dma.done [#allocation5], 384
    $region101: #{vae_forward.1} parent=1 // pred_fallthru
      _
    // Predicated region
    $region102: #{vae_forward.1} parent=1 // pred_check
      _
    $region103: #{vae_forward.1} parent=1 // pred_check_branch
      %135 = sbr.rel (0) target = $region105
    $region104: #{vae_forward.1} parent=1 // pred_region
      %137 = dma.done [#allocation12], 48
    $region105: #{vae_forward.1} parent=1 // pred_fallthru
      _
    // Predicated region
    $region106: #{vae_forward.1} parent=1 // pred_check
      _
    $region107: #{vae_forward.1} parent=1 // pred_check_branch
      %139 = sbr.rel (0) target = $region109
    $region108: #{vae_forward.1} parent=1 // pred_region
      %141 = dma.done [#allocation12], 16
    $region109: #{vae_forward.1} parent=1 // pred_fallthru
      _
    %142 = sfence
    %v143 = vld [vmem:[%s2] sm:$0xff]
    %v144 = vld [vmem:[%s2 + $0x8] sm:$0xff]
    %v145 = vld [vmem:[%s2 + $0x10] sm:$0xff]
    %v146 = vld [vmem:[%s2 + $0x18] sm:$0xff]
    %v147 = vld [vmem:[%s2 + $0x20] sm:$0xff]
    %v148 = vld [vmem:[%s2 + $0x28] sm:$0xff]
    %v149 = vld [vmem:[%s2 + $0x30] sm:$0xff]
    %v150 = vld [vmem:[%s2 + $0x38] sm:$0xff]
    %v151 = vld [vmem:[#allocation10] sm:$0xff]
    %v152 = vld [vmem:[#allocation10 + $0x8] sm:$0xff]
    %v153 = vld [vmem:[#allocation10 + $0x10] sm:$0xff]
    %v154 = vld [vmem:[#allocation11] sm:$0x7]
    %v156 = vperm.slane %v154, 0
    %v157 = vperm.slane %v154, 1
    %v158 = vperm.slane %v154, 2
    %vm162 = vcmask 64512
    %v164 = vsel %vm162, %v143, 0
    %v167 = vsel %vm162, %v144, 0
    %v170 = vsel %vm162, %v145, 0
    %v173 = vsel %vm162, %v146, 0
    %v176 = vsel %vm162, %v147, 0
    %v179 = vsel %vm162, %v148, 0
    %v182 = vsel %vm162, %v149, 0
    %v185 = vsel %vm162, %v150, 0
    %187 = vmatpush.msra.mxu0 0.0
    %188 = vmatpush.msra.mxu0 0.0
    %189 = vmatpush.msra.mxu0 0.0
    %190 = vmatpush.msra.mxu0 0.0
    %191 = vmatpush.msra.mxu0 0.0
    %192 = vmatpush.msra.mxu0 0.0
    %193 = vmatpush.msra.mxu0 0.0
    %194 = vmatpush.msra.mxu0 0.0
    %195 = vmatpush.msra.mxu0 0.0
    %196 = vmatpush.msra.mxu0 0.0
    %197 = vmatpush.msra.mxu0 0.0
    %198 = vmatpush.msra.mxu0 0.0
    %199 = vmatpush.msra.mxu0 0.0
    %200 = vmatpush.msra.mxu0 0.0
    %201 = vmatpush.msra.mxu0 0.0
    %202 = vmatpush.msra.mxu0 %v151
    %203 = vmatmul.f32.gmra.mxu0 %v164
    %v204 = vpop.f32.mrf.mxu0
    %v205 = vadd.f32 %v156, %v204
    %206 = vmatmul.f32.gmra.mxu0 %v167
    %v207 = vpop.f32.mrf.mxu0
    %v208 = vadd.f32 %v156, %v207
    %209 = vmatmul.f32.gmra.mxu0 %v170
    %v210 = vpop.f32.mrf.mxu0
    %v211 = vadd.f32 %v156, %v210
    %212 = vmatmul.f32.gmra.mxu0 %v173
    %v213 = vpop.f32.mrf.mxu0
    %v214 = vadd.f32 %v156, %v213
    %215 = vmatmul.f32.gmra.mxu0 %v176
    %v216 = vpop.f32.mrf.mxu0
    %v217 = vadd.f32 %v156, %v216
    %218 = vmatmul.f32.gmra.mxu0 %v179
    %v219 = vpop.f32.mrf.mxu0
    %v220 = vadd.f32 %v156, %v219
    %221 = vmatmul.f32.gmra.mxu0 %v182
    %v222 = vpop.f32.mrf.mxu0
    %v223 = vadd.f32 %v156, %v222
    %224 = vmatmul.f32.gmra.mxu0 %v185
    %v225 = vpop.f32.mrf.mxu0
    %v226 = vadd.f32 %v156, %v225
    %227 = vdwg.mxu0
    %228 = vmatpush.msra.mxu0 0.0
    %229 = vmatpush.msra.mxu0 0.0
    %230 = vmatpush.msra.mxu0 0.0
    %231 = vmatpush.msra.mxu0 0.0
    %232 = vmatpush.msra.mxu0 0.0
    %233 = vmatpush.msra.mxu0 0.0
    %234 = vmatpush.msra.mxu0 0.0
    %235 = vmatpush.msra.mxu0 0.0
    %236 = vmatpush.msra.mxu0 0.0
    %237 = vmatpush.msra.mxu0 0.0
    %238 = vmatpush.msra.mxu0 0.0
    %239 = vmatpush.msra.mxu0 0.0
    %240 = vmatpush.msra.mxu0 0.0
    %241 = vmatpush.msra.mxu0 0.0
    %242 = vmatpush.msra.mxu0 0.0
    %243 = vmatpush.msra.mxu0 %v152
    %244 = vmatmul.f32.gmra.mxu0 %v164
    %v245 = vpop.f32.mrf.mxu0
    %v246 = vadd.f32 %v157, %v245
    %247 = vmatmul.f32.gmra.mxu0 %v167
    %v248 = vpop.f32.mrf.mxu0
    %v249 = vadd.f32 %v157, %v248
    %250 = vmatmul.f32.gmra.mxu0 %v170
    %v251 = vpop.f32.mrf.mxu0
    %v252 = vadd.f32 %v157, %v251
    %253 = vmatmul.f32.gmra.mxu0 %v173
    %v254 = vpop.f32.mrf.mxu0
    %v255 = vadd.f32 %v157, %v254
    %256 = vmatmul.f32.gmra.mxu0 %v176
    %v257 = vpop.f32.mrf.mxu0
    %v258 = vadd.f32 %v157, %v257
    %259 = vmatmul.f32.gmra.mxu0 %v179
    %v260 = vpop.f32.mrf.mxu0
    %v261 = vadd.f32 %v157, %v260
    %262 = vmatmul.f32.gmra.mxu0 %v182
    %v263 = vpop.f32.mrf.mxu0
    %v264 = vadd.f32 %v157, %v263
    %265 = vmatmul.f32.gmra.mxu0 %v185
    %v266 = vpop.f32.mrf.mxu0
    %v267 = vadd.f32 %v157, %v266
    %268 = vdwg.mxu0
    %269 = vmatpush.msra.mxu0 0.0
    %270 = vmatpush.msra.mxu0 0.0
    %271 = vmatpush.msra.mxu0 0.0
    %272 = vmatpush.msra.mxu0 0.0
    %273 = vmatpush.msra.mxu0 0.0
    %274 = vmatpush.msra.mxu0 0.0
    %275 = vmatpush.msra.mxu0 0.0
    %276 = vmatpush.msra.mxu0 0.0
    %277 = vmatpush.msra.mxu0 0.0
    %278 = vmatpush.msra.mxu0 0.0
    %279 = vmatpush.msra.mxu0 0.0
    %280 = vmatpush.msra.mxu0 0.0
    %281 = vmatpush.msra.mxu0 0.0
    %282 = vmatpush.msra.mxu0 0.0
    %283 = vmatpush.msra.mxu0 0.0
    %284 = vmatpush.msra.mxu0 %v153
    %285 = vmatmul.f32.gmra.mxu0 %v164
    %v286 = vpop.f32.mrf.mxu0
    %v287 = vadd.f32 %v158, %v286
    %288 = vmatmul.f32.gmra.mxu0 %v167
    %v289 = vpop.f32.mrf.mxu0
    %v290 = vadd.f32 %v158, %v289
    %291 = vmatmul.f32.gmra.mxu0 %v170
    %v292 = vpop.f32.mrf.mxu0
    %v293 = vadd.f32 %v158, %v292
    %294 = vmatmul.f32.gmra.mxu0 %v173
    %v295 = vpop.f32.mrf.mxu0
    %v296 = vadd.f32 %v158, %v295
    %297 = vmatmul.f32.gmra.mxu0 %v176
    %v298 = vpop.f32.mrf.mxu0
    %v299 = vadd.f32 %v158, %v298
    %300 = vmatmul.f32.gmra.mxu0 %v179
    %v301 = vpop.f32.mrf.mxu0
    %v302 = vadd.f32 %v158, %v301
    %303 = vmatmul.f32.gmra.mxu0 %v182
    %v304 = vpop.f32.mrf.mxu0
    %v305 = vadd.f32 %v158, %v304
    %306 = vmatmul.f32.gmra.mxu0 %v185
    %v307 = vpop.f32.mrf.mxu0
    %v308 = vadd.f32 %v158, %v307
    %309 = vdwg.mxu0
    %310 = vst [vmem:[#allocation2] sm:$0xff] %v205
    %311 = vst [vmem:[#allocation2 + $0x8] sm:$0xff] %v246
    %312 = vst [vmem:[#allocation2 + $0x10] sm:$0xff] %v287
    %313 = vst [vmem:[#allocation2 + $0x18] sm:$0xff] %v208
    %314 = vst [vmem:[#allocation2 + $0x20] sm:$0xff] %v249
    %315 = vst [vmem:[#allocation2 + $0x28] sm:$0xff] %v290
    %316 = vst [vmem:[#allocation2 + $0x30] sm:$0xff] %v211
    %317 = vst [vmem:[#allocation2 + $0x38] sm:$0xff] %v252
    %318 = vst [vmem:[#allocation2 + $0x40] sm:$0xff] %v293
    %319 = vst [vmem:[#allocation2 + $0x48] sm:$0xff] %v214
    %320 = vst [vmem:[#allocation2 + $0x50] sm:$0xff] %v255
    %321 = vst [vmem:[#allocation2 + $0x58] sm:$0xff] %v296
    %322 = vst [vmem:[#allocation2 + $0x60] sm:$0xff] %v217
    %323 = vst [vmem:[#allocation2 + $0x68] sm:$0xff] %v258
    %324 = vst [vmem:[#allocation2 + $0x70] sm:$0xff] %v299
    %325 = vst [vmem:[#allocation2 + $0x78] sm:$0xff] %v220
    %326 = vst [vmem:[#allocation2 + $0x80] sm:$0xff] %v261
    %327 = vst [vmem:[#allocation2 + $0x88] sm:$0xff] %v302
    %328 = vst [vmem:[#allocation2 + $0x90] sm:$0xff] %v223
    %329 = vst [vmem:[#allocation2 + $0x98] sm:$0xff] %v264
    %330 = vst [vmem:[#allocation2 + $0xa0] sm:$0xff] %v305
    %331 = vst [vmem:[#allocation2 + $0xa8] sm:$0xff] %v226
    %332 = vst [vmem:[#allocation2 + $0xb0] sm:$0xff] %v267
    %333 = vst [vmem:[#allocation2 + $0xb8] sm:$0xff] %v308
    %v334 = vld [vmem:[%s6] sm:$0xff]
    %v335 = vld [vmem:[%s6 + $0x8] sm:$0xff]
    %v336 = vld [vmem:[%s6 + $0x10] sm:$0xff]
    %v337 = vld [vmem:[%s6 + $0x18] sm:$0xff]
    %v338 = vld [vmem:[%s6 + $0x20] sm:$0xff]
    %v339 = vld [vmem:[%s6 + $0x28] sm:$0xff]
    %v340 = vld [vmem:[%s6 + $0x30] sm:$0xff]
    %v341 = vld [vmem:[%s6 + $0x38] sm:$0xff]
    %v342 = vld [vmem:[%s6 + $0x40] sm:$0xff]
    %v343 = vld [vmem:[%s6 + $0x48] sm:$0xff]
    %v344 = vld [vmem:[%s6 + $0x50] sm:$0xff]
    %v345 = vld [vmem:[%s6 + $0x58] sm:$0xff]
    %v346 = vld [vmem:[%s7] sm:$0x7]
    %v347 = vld [vmem:[%s8] sm:$0xff]
    %v348 = vld [vmem:[%s8 + $0x8] sm:$0xff]
    %v349 = vld [vmem:[%s8 + $0x10] sm:$0xff]
    %v350 = vld [vmem:[%s8 + $0x18] sm:$0xff]
    %v351 = vld [vmem:[%s9] sm:$0x1]
    %v352 = vld [vmem:[%s10] sm:$0xff]
    %v353 = vld [vmem:[%s10 + $0x8] sm:$0xff]
    %v354 = vld [vmem:[%s10 + $0x10] sm:$0xff]
    %v355 = vld [vmem:[%s10 + $0x18] sm:$0xff]
    %v356 = vld [vmem:[#allocation13] sm:$0x1]
    %v357 = vld [vmem:[#allocation2] sm:$0xff]
    %v358 = vld [vmem:[#allocation2 + $0x8] sm:$0xff]
    %v359 = vld [vmem:[#allocation2 + $0x10] sm:$0xff]
    %v361 = vperm.slane %v346, 0
    %v362 = vperm.slane %v346, 1
    %v363 = vperm.slane %v346, 2
    %vm367 = vcmask 261120
    %v369 = vsel %vm367, 0.0, 0
    %371 = vmatpush.msra.mxu0 0.0
    %372 = vmatpush.msra.mxu0 0.0
    %373 = vmatpush.msra.mxu0 0.0
    %374 = vmatpush.msra.mxu0 0.0
    %375 = vmatpush.msra.mxu0 0.0
    %376 = vmatpush.msra.mxu0 0.0
    %377 = vmatpush.msra.mxu0 0.0
    %378 = vmatpush.msra.mxu0 0.0
    %379 = vmatpush.msra.mxu0 0.0
    %380 = vmatpush.msra.mxu0 0.0
    %381 = vmatpush.msra.mxu0 0.0
    %382 = vmatpush.msra.mxu0 0.0
    %383 = vmatpush.msra.mxu0 %v343
    %384 = vmatpush.msra.mxu0 %v340
    %385 = vmatpush.msra.mxu0 %v337
    %386 = vmatpush.msra.mxu0 %v334
    %387 = vmatmul.f32.gmra.mxu0 %v369
    %v388 = vpop.f32.mrf.mxu0
    %v389 = vadd.f32 %v361, %v388
    %390 = vdwg.mxu0
    %391 = vmatpush.msra.mxu0 0.0
    %392 = vmatpush.msra.mxu0 0.0
    %393 = vmatpush.msra.mxu0 0.0
    %394 = vmatpush.msra.mxu0 0.0
    %395 = vmatpush.msra.mxu0 0.0
    %396 = vmatpush.msra.mxu0 0.0
    %397 = vmatpush.msra.mxu0 0.0
    %398 = vmatpush.msra.mxu0 0.0
    %399 = vmatpush.msra.mxu0 0.0
    %400 = vmatpush.msra.mxu0 0.0
    %401 = vmatpush.msra.mxu0 0.0
    %402 = vmatpush.msra.mxu0 0.0
    %403 = vmatpush.msra.mxu0 %v344
    %404 = vmatpush.msra.mxu0 %v341
    %405 = vmatpush.msra.mxu0 %v338
    %406 = vmatpush.msra.mxu0 %v335
    %407 = vmatmul.f32.gmra.mxu0 %v369
    %v408 = vpop.f32.mrf.mxu0
    %v409 = vadd.f32 %v362, %v408
    %410 = vdwg.mxu0
    %411 = vmatpush.msra.mxu0 0.0
    %412 = vmatpush.msra.mxu0 0.0
    %413 = vmatpush.msra.mxu0 0.0
    %414 = vmatpush.msra.mxu0 0.0
    %415 = vmatpush.msra.mxu0 0.0
    %416 = vmatpush.msra.mxu0 0.0
    %417 = vmatpush.msra.mxu0 0.0
    %418 = vmatpush.msra.mxu0 0.0
    %419 = vmatpush.msra.mxu0 0.0
    %420 = vmatpush.msra.mxu0 0.0
    %421 = vmatpush.msra.mxu0 0.0
    %422 = vmatpush.msra.mxu0 0.0
    %423 = vmatpush.msra.mxu0 %v345
    %424 = vmatpush.msra.mxu0 %v342
    %425 = vmatpush.msra.mxu0 %v339
    %426 = vmatpush.msra.mxu0 %v336
    %427 = vmatmul.f32.gmra.mxu0 %v369
    %v428 = vpop.f32.mrf.mxu0
    %v429 = vadd.f32 %v363, %v428
    %430 = vdwg.mxu0
    %v431 = vadd.f32 %v357, %v389
    %v432 = vadd.f32 %v358, %v409
    %v433 = vxor.u32 %v431, 2147483648
    %v434 = vmul.f32 %v433, 1.442695
    %v435 = vpow.pop %v434
    %v436 = vadd.f32 %v435, 1.0
    %v437 = vrcp.pop %v436
    %v438 = vmul.f32 %v436, %v437
    %v439 = vsub.f32 1.0, %v438
    %v440 = vmul.f32 %v437, %v439
    %v441 = vadd.f32 %v437, %v440
    %vm442 = vweird.f32 %v436
    %vm443 = vweird.f32 %v437
    %vm444 = vmor %vm442, %vm443
    %v445 = vsel %vm444, %v437, %v441
    %v446 = vand.u32 2147483647, %v436
    %vm447 = vcmp.eq.f32.partialorder %v446, 8.507059e+37
    %v448 = vand.u32 %v436, 2147483648
    %v449 = vor.u32 1.1754944e-38, %v448
    %v450 = vsel %vm447, %v449, %v445
    %v451 = vmul.f32 1.0, %v450
    %v452 = vxor.u32 %v432, 2147483648
    %v453 = vmul.f32 %v452, 1.442695
    %v454 = vpow.pop %v453
    %v455 = vadd.f32 %v454, 1.0
    %v456 = vrcp.pop %v455
    %v457 = vmul.f32 %v455, %v456
    %v458 = vsub.f32 1.0, %v457
    %v459 = vmul.f32 %v456, %v458
    %v460 = vadd.f32 %v456, %v459
    %vm461 = vweird.f32 %v455
    %vm462 = vweird.f32 %v456
    %vm463 = vmor %vm461, %vm462
    %v464 = vsel %vm463, %v456, %v460
    %v465 = vand.u32 2147483647, %v455
    %vm466 = vcmp.eq.f32.partialorder %v465, 8.507059e+37
    %v467 = vand.u32 %v455, 2147483648
    %v468 = vor.u32 1.1754944e-38, %v467
    %v469 = vsel %vm466, %v468, %v464
    %v470 = vmul.f32 1.0, %v469
    %v471 = vmul.f32 %v470, %v429
    %v472 = vadd.f32 %v359, %v471
    %v473 = vtanh.pop %v472
    %v474 = vsub.f32 1.0, %v451
    %v475 = vmul.f32 %v474, %v473
    %v476 = vmul.f32 %v451, 0.0
    %v477 = vadd.f32 %v475, %v476
    %s478 = sld [smem:[#allocation4 + $0x1]]
    %s479 = sld [smem:[#allocation4]]
    %s480 = ssub.f32 %s478, %s479
    %v482 = vperm.slane %v351, 0
    %v485 = vsel %vm367, %v477, 0
    %487 = vmatpush.msra.mxu0 0.0
    %488 = vmatpush.msra.mxu0 0.0
    %489 = vmatpush.msra.mxu0 0.0
    %490 = vmatpush.msra.mxu0 0.0
    %491 = vmatpush.msra.mxu0 0.0
    %492 = vmatpush.msra.mxu0 0.0
    %493 = vmatpush.msra.mxu0 0.0
    %494 = vmatpush.msra.mxu0 0.0
    %495 = vmatpush.msra.mxu0 0.0
    %496 = vmatpush.msra.mxu0 0.0
    %497 = vmatpush.msra.mxu0 0.0
    %498 = vmatpush.msra.mxu0 0.0
    %499 = vmatpush.msra.mxu0 %v350
    %500 = vmatpush.msra.mxu0 %v349
    %501 = vmatpush.msra.mxu0 %v348
    %502 = vmatpush.msra.mxu0 %v347
    %503 = vmatmul.f32.gmra.mxu0 %v485
    %v504 = vpop.f32.mrf.mxu0
    %v505 = vadd.f32 %v482, %v504
    %506 = vdwg.mxu0
    %v507 = vtanh.pop %v505
    %v509 = vperm.slane %v356, 0
    %v512 = vsel %vm367, %v507, 0
    %514 = vmatpush.msra.mxu0 0.0
    %515 = vmatpush.msra.mxu0 0.0
    %516 = vmatpush.msra.mxu0 0.0
    %517 = vmatpush.msra.mxu0 0.0
    %518 = vmatpush.msra.mxu0 0.0
    %519 = vmatpush.msra.mxu0 0.0
    %520 = vmatpush.msra.mxu0 0.0
    %521 = vmatpush.msra.mxu0 0.0
    %522 = vmatpush.msra.mxu0 0.0
    %523 = vmatpush.msra.mxu0 0.0
    %524 = vmatpush.msra.mxu0 0.0
    %525 = vmatpush.msra.mxu0 0.0
    %526 = vmatpush.msra.mxu0 %v355
    %527 = vmatpush.msra.mxu0 %v354
    %528 = vmatpush.msra.mxu0 %v353
    %529 = vmatpush.msra.mxu0 %v352
    %530 = vmatmul.f32.gmra.mxu0 %v512
    %v531 = vpop.f32.mrf.mxu0
    %v532 = vadd.f32 %v509, %v531
    %533 = vdwg.mxu0
    %v534 = vstv %s480
    %v535 = vmul.f32 %v534, %v532
    %v536 = vadd.f32 %v477, %v535
    %v537 = vld [vmem:[#allocation2 + $0x18] sm:$0xff]
    %v538 = vld [vmem:[#allocation2 + $0x20] sm:$0xff]
    %v539 = vld [vmem:[#allocation2 + $0x28] sm:$0xff]
    %v541 = vsel %vm367, %v536, 0
    %543 = vmatpush.msra.mxu0 0.0
    %544 = vmatpush.msra.mxu0 0.0
    %545 = vmatpush.msra.mxu0 0.0
    %546 = vmatpush.msra.mxu0 0.0
    %547 = vmatpush.msra.mxu0 0.0
    %548 = vmatpush.msra.mxu0 0.0
    %549 = vmatpush.msra.mxu0 0.0
    %550 = vmatpush.msra.mxu0 0.0
    %551 = vmatpush.msra.mxu0 0.0
    %552 = vmatpush.msra.mxu0 0.0
    %553 = vmatpush.msra.mxu0 0.0
    %554 = vmatpush.msra.mxu0 0.0
    %555 = vmatpush.msra.mxu0 %v343
    %556 = vmatpush.msra.mxu0 %v340
    %557 = vmatpush.msra.mxu0 %v337
    %558 = vmatpush.msra.mxu0 %v334
    %559 = vmatmul.f32.gmra.mxu0 %v541
    %v560 = vpop.f32.mrf.mxu0
    %v561 = vadd.f32 %v361, %v560
    %562 = vdwg.mxu0
    %563 = vmatpush.msra.mxu0 0.0
    %564 = vmatpush.msra.mxu0 0.0
    %565 = vmatpush.msra.mxu0 0.0
    %566 = vmatpush.msra.mxu0 0.0
    %567 = vmatpush.msra.mxu0 0.0
    %568 = vmatpush.msra.mxu0 0.0
    %569 = vmatpush.msra.mxu0 0.0
    %570 = vmatpush.msra.mxu0 0.0
    %571 = vmatpush.msra.mxu0 0.0
    %572 = vmatpush.msra.mxu0 0.0
    %573 = vmatpush.msra.mxu0 0.0
    %574 = vmatpush.msra.mxu0 0.0
    %575 = vmatpush.msra.mxu0 %v344
    %576 = vmatpush.msra.mxu0 %v341
    %577 = vmatpush.msra.mxu0 %v338
    %578 = vmatpush.msra.mxu0 %v335
    %579 = vmatmul.f32.gmra.mxu0 %v541
    %v580 = vpop.f32.mrf.mxu0
    %v581 = vadd.f32 %v362, %v580
    %582 = vdwg.mxu0
    %583 = vmatpush.msra.mxu0 0.0
    %584 = vmatpush.msra.mxu0 0.0
    %585 = vmatpush.msra.mxu0 0.0
    %586 = vmatpush.msra.mxu0 0.0
    %587 = vmatpush.msra.mxu0 0.0
    %588 = vmatpush.msra.mxu0 0.0
    %589 = vmatpush.msra.mxu0 0.0
    %590 = vmatpush.msra.mxu0 0.0
    %591 = vmatpush.msra.mxu0 0.0
    %592 = vmatpush.msra.mxu0 0.0
    %593 = vmatpush.msra.mxu0 0.0
    %594 = vmatpush.msra.mxu0 0.0
    %595 = vmatpush.msra.mxu0 %v345
    %596 = vmatpush.msra.mxu0 %v342
    %597 = vmatpush.msra.mxu0 %v339
    %598 = vmatpush.msra.mxu0 %v336
    %599 = vmatmul.f32.gmra.mxu0 %v541
    %v600 = vpop.f32.mrf.mxu0
    %v601 = vadd.f32 %v363, %v600
    %602 = vdwg.mxu0
    %v603 = vadd.f32 %v537, %v561
    %v604 = vadd.f32 %v538, %v581
    %v605 = vxor.u32 %v603, 2147483648
    %v606 = vmul.f32 %v605, 1.442695
    %v607 = vpow.pop %v606
    %v608 = vadd.f32 %v607, 1.0
    %v609 = vrcp.pop %v608
    %v610 = vmul.f32 %v608, %v609
    %v611 = vsub.f32 1.0, %v610
    %v612 = vmul.f32 %v609, %v611
    %v613 = vadd.f32 %v609, %v612
    %vm614 = vweird.f32 %v608
    %vm615 = vweird.f32 %v609
    %vm616 = vmor %vm614, %vm615
    %v617 = vsel %vm616, %v609, %v613
    %v618 = vand.u32 2147483647, %v608
    %vm619 = vcmp.eq.f32.partialorder %v618, 8.507059e+37
    %v620 = vand.u32 %v608, 2147483648
    %v621 = vor.u32 1.1754944e-38, %v620
    %v622 = vsel %vm619, %v621, %v617
    %v623 = vmul.f32 1.0, %v622
    %v624 = vxor.u32 %v604, 2147483648
    %v625 = vmul.f32 %v624, 1.442695
    %v626 = vpow.pop %v625
    %v627 = vadd.f32 %v626, 1.0
    %v628 = vrcp.pop %v627
    %v629 = vmul.f32 %v627, %v628
    %v630 = vsub.f32 1.0, %v629
    %v631 = vmul.f32 %v628, %v630
    %v632 = vadd.f32 %v628, %v631
    %vm633 = vweird.f32 %v627
    %vm634 = vweird.f32 %v628
    %vm635 = vmor %vm633, %vm634
    %v636 = vsel %vm635, %v628, %v632
    %v637 = vand.u32 2147483647, %v627
    %vm638 = vcmp.eq.f32.partialorder %v637, 8.507059e+37
    %v639 = vand.u32 %v627, 2147483648
    %v640 = vor.u32 1.1754944e-38, %v639
    %v641 = vsel %vm638, %v640, %v636
    %v642 = vmul.f32 1.0, %v641
    %v643 = vmul.f32 %v642, %v601
    %v644 = vadd.f32 %v539, %v643
    %v645 = vtanh.pop %v644
    %v646 = vsub.f32 1.0, %v623
    %v647 = vmul.f32 %v646, %v645
    %v648 = vmul.f32 %v623, %v536
    %v649 = vadd.f32 %v647, %v648
    %s650 = sld [smem:[#allocation4 + $0x2]]
    %s651 = ssub.f32 %s650, %s478
    %v653 = vsel %vm367, %v649, 0
    %655 = vmatpush.msra.mxu0 0.0
    %656 = vmatpush.msra.mxu0 0.0
    %657 = vmatpush.msra.mxu0 0.0
    %658 = vmatpush.msra.mxu0 0.0
    %659 = vmatpush.msra.mxu0 0.0
    %660 = vmatpush.msra.mxu0 0.0
    %661 = vmatpush.msra.mxu0 0.0
    %662 = vmatpush.msra.mxu0 0.0
    %663 = vmatpush.msra.mxu0 0.0
    %664 = vmatpush.msra.mxu0 0.0
    %665 = vmatpush.msra.mxu0 0.0
    %666 = vmatpush.msra.mxu0 0.0
    %667 = vmatpush.msra.mxu0 %v350
    %668 = vmatpush.msra.mxu0 %v349
    %669 = vmatpush.msra.mxu0 %v348
    %670 = vmatpush.msra.mxu0 %v347
    %671 = vmatmul.f32.gmra.mxu0 %v653
    %v672 = vpop.f32.mrf.mxu0
    %v673 = vadd.f32 %v482, %v672
    %674 = vdwg.mxu0
    %v675 = vtanh.pop %v673
    %v677 = vsel %vm367, %v675, 0
    %679 = vmatpush.msra.mxu0 0.0
    %680 = vmatpush.msra.mxu0 0.0
    %681 = vmatpush.msra.mxu0 0.0
    %682 = vmatpush.msra.mxu0 0.0
    %683 = vmatpush.msra.mxu0 0.0
    %684 = vmatpush.msra.mxu0 0.0
    %685 = vmatpush.msra.mxu0 0.0
    %686 = vmatpush.msra.mxu0 0.0
    %687 = vmatpush.msra.mxu0 0.0
    %688 = vmatpush.msra.mxu0 0.0
    %689 = vmatpush.msra.mxu0 0.0
    %690 = vmatpush.msra.mxu0 0.0
    %691 = vmatpush.msra.mxu0 %v355
    %692 = vmatpush.msra.mxu0 %v354
    %693 = vmatpush.msra.mxu0 %v353
    %694 = vmatpush.msra.mxu0 %v352
    %695 = vmatmul.f32.gmra.mxu0 %v677
    %v696 = vpop.f32.mrf.mxu0
    %v697 = vadd.f32 %v509, %v696
    %698 = vdwg.mxu0
    %v699 = vstv %s651
    %v700 = vmul.f32 %v699, %v697
    %v701 = vadd.f32 %v649, %v700
    %v702 = vld [vmem:[#allocation2 + $0x30] sm:$0xff]
    %v703 = vld [vmem:[#allocation2 + $0x38] sm:$0xff]
    %v704 = vld [vmem:[#allocation2 + $0x40] sm:$0xff]
    %v706 = vsel %vm367, %v701, 0
    %708 = vmatpush.msra.mxu0 0.0
    %709 = vmatpush.msra.mxu0 0.0
    %710 = vmatpush.msra.mxu0 0.0
    %711 = vmatpush.msra.mxu0 0.0
    %712 = vmatpush.msra.mxu0 0.0
    %713 = vmatpush.msra.mxu0 0.0
    %714 = vmatpush.msra.mxu0 0.0
    %715 = vmatpush.msra.mxu0 0.0
    %716 = vmatpush.msra.mxu0 0.0
    %717 = vmatpush.msra.mxu0 0.0
    %718 = vmatpush.msra.mxu0 0.0
    %719 = vmatpush.msra.mxu0 0.0
    %720 = vmatpush.msra.mxu0 %v343
    %721 = vmatpush.msra.mxu0 %v340
    %722 = vmatpush.msra.mxu0 %v337
    %723 = vmatpush.msra.mxu0 %v334
    %724 = vmatmul.f32.gmra.mxu0 %v706
    %v725 = vpop.f32.mrf.mxu0
    %v726 = vadd.f32 %v361, %v725
    %727 = vdwg.mxu0
    %728 = vmatpush.msra.mxu0 0.0
    %729 = vmatpush.msra.mxu0 0.0
    %730 = vmatpush.msra.mxu0 0.0
    %731 = vmatpush.msra.mxu0 0.0
    %732 = vmatpush.msra.mxu0 0.0
    %733 = vmatpush.msra.mxu0 0.0
    %734 = vmatpush.msra.mxu0 0.0
    %735 = vmatpush.msra.mxu0 0.0
    %736 = vmatpush.msra.mxu0 0.0
    %737 = vmatpush.msra.mxu0 0.0
    %738 = vmatpush.msra.mxu0 0.0
    %739 = vmatpush.msra.mxu0 0.0
    %740 = vmatpush.msra.mxu0 %v344
    %741 = vmatpush.msra.mxu0 %v341
    %742 = vmatpush.msra.mxu0 %v338
    %743 = vmatpush.msra.mxu0 %v335
    %744 = vmatmul.f32.gmra.mxu0 %v706
    %v745 = vpop.f32.mrf.mxu0
    %v746 = vadd.f32 %v362, %v745
    %747 = vdwg.mxu0
    %748 = vmatpush.msra.mxu0 0.0
    %749 = vmatpush.msra.mxu0 0.0
    %750 = vmatpush.msra.mxu0 0.0
    %751 = vmatpush.msra.mxu0 0.0
    %752 = vmatpush.msra.mxu0 0.0
    %753 = vmatpush.msra.mxu0 0.0
    %754 = vmatpush.msra.mxu0 0.0
    %755 = vmatpush.msra.mxu0 0.0
    %756 = vmatpush.msra.mxu0 0.0
    %757 = vmatpush.msra.mxu0 0.0
    %758 = vmatpush.msra.mxu0 0.0
    %759 = vmatpush.msra.mxu0 0.0
    %760 = vmatpush.msra.mxu0 %v345
    %761 = vmatpush.msra.mxu0 %v342
    %762 = vmatpush.msra.mxu0 %v339
    %763 = vmatpush.msra.mxu0 %v336
    %764 = vmatmul.f32.gmra.mxu0 %v706
    %v765 = vpop.f32.mrf.mxu0
    %v766 = vadd.f32 %v363, %v765
    %767 = vdwg.mxu0
    %v768 = vadd.f32 %v702, %v726
    %v769 = vadd.f32 %v703, %v746
    %v770 = vxor.u32 %v768, 2147483648
    %v771 = vmul.f32 %v770, 1.442695
    %v772 = vpow.pop %v771
    %v773 = vadd.f32 %v772, 1.0
    %v774 = vrcp.pop %v773
    %v775 = vmul.f32 %v773, %v774
    %v776 = vsub.f32 1.0, %v775
    %v777 = vmul.f32 %v774, %v776
    %v778 = vadd.f32 %v774, %v777
    %vm779 = vweird.f32 %v773
    %vm780 = vweird.f32 %v774
    %vm781 = vmor %vm779, %vm780
    %v782 = vsel %vm781, %v774, %v778
    %v783 = vand.u32 2147483647, %v773
    %vm784 = vcmp.eq.f32.partialorder %v783, 8.507059e+37
    %v785 = vand.u32 %v773, 2147483648
    %v786 = vor.u32 1.1754944e-38, %v785
    %v787 = vsel %vm784, %v786, %v782
    %v788 = vmul.f32 1.0, %v787
    %v789 = vxor.u32 %v769, 2147483648
    %v790 = vmul.f32 %v789, 1.442695
    %v791 = vpow.pop %v790
    %v792 = vadd.f32 %v791, 1.0
    %v793 = vrcp.pop %v792
    %v794 = vmul.f32 %v792, %v793
    %v795 = vsub.f32 1.0, %v794
    %v796 = vmul.f32 %v793, %v795
    %v797 = vadd.f32 %v793, %v796
    %vm798 = vweird.f32 %v792
    %vm799 = vweird.f32 %v793
    %vm800 = vmor %vm798, %vm799
    %v801 = vsel %vm800, %v793, %v797
    %v802 = vand.u32 2147483647, %v792
    %vm803 = vcmp.eq.f32.partialorder %v802, 8.507059e+37
    %v804 = vand.u32 %v792, 2147483648
    %v805 = vor.u32 1.1754944e-38, %v804
    %v806 = vsel %vm803, %v805, %v801
    %v807 = vmul.f32 1.0, %v806
    %v808 = vmul.f32 %v807, %v766
    %v809 = vadd.f32 %v704, %v808
    %v810 = vtanh.pop %v809
    %v811 = vsub.f32 1.0, %v788
    %v812 = vmul.f32 %v811, %v810
    %v813 = vmul.f32 %v788, %v701
    %v814 = vadd.f32 %v812, %v813
    %s815 = sld [smem:[#allocation4 + $0x3]]
    %s816 = ssub.f32 %s815, %s650
    %v818 = vsel %vm367, %v814, 0
    %820 = vmatpush.msra.mxu0 0.0
    %821 = vmatpush.msra.mxu0 0.0
    %822 = vmatpush.msra.mxu0 0.0
    %823 = vmatpush.msra.mxu0 0.0
    %824 = vmatpush.msra.mxu0 0.0
    %825 = vmatpush.msra.mxu0 0.0
    %826 = vmatpush.msra.mxu0 0.0
    %827 = vmatpush.msra.mxu0 0.0
    %828 = vmatpush.msra.mxu0 0.0
    %829 = vmatpush.msra.mxu0 0.0
    %830 = vmatpush.msra.mxu0 0.0
    %831 = vmatpush.msra.mxu0 0.0
    %832 = vmatpush.msra.mxu0 %v350
    %833 = vmatpush.msra.mxu0 %v349
    %834 = vmatpush.msra.mxu0 %v348
    %835 = vmatpush.msra.mxu0 %v347
    %836 = vmatmul.f32.gmra.mxu0 %v818
    %v837 = vpop.f32.mrf.mxu0
    %v838 = vadd.f32 %v482, %v837
    %839 = vdwg.mxu0
    %v840 = vtanh.pop %v838
    %v842 = vsel %vm367, %v840, 0
    %844 = vmatpush.msra.mxu0 0.0
    %845 = vmatpush.msra.mxu0 0.0
    %846 = vmatpush.msra.mxu0 0.0
    %847 = vmatpush.msra.mxu0 0.0
    %848 = vmatpush.msra.mxu0 0.0
    %849 = vmatpush.msra.mxu0 0.0
    %850 = vmatpush.msra.mxu0 0.0
    %851 = vmatpush.msra.mxu0 0.0
    %852 = vmatpush.msra.mxu0 0.0
    %853 = vmatpush.msra.mxu0 0.0
    %854 = vmatpush.msra.mxu0 0.0
    %855 = vmatpush.msra.mxu0 0.0
    %856 = vmatpush.msra.mxu0 %v355
    %857 = vmatpush.msra.mxu0 %v354
    %858 = vmatpush.msra.mxu0 %v353
    %859 = vmatpush.msra.mxu0 %v352
    %860 = vmatmul.f32.gmra.mxu0 %v842
    %v861 = vpop.f32.mrf.mxu0
    %v862 = vadd.f32 %v509, %v861
    %863 = vdwg.mxu0
    %v864 = vstv %s816
    %v865 = vmul.f32 %v864, %v862
    %v866 = vadd.f32 %v814, %v865
    %v867 = vld [vmem:[#allocation2 + $0x48] sm:$0xff]
    %v868 = vld [vmem:[#allocation2 + $0x50] sm:$0xff]
    %v869 = vld [vmem:[#allocation2 + $0x58] sm:$0xff]
    %v871 = vsel %vm367, %v866, 0
    %873 = vmatpush.msra.mxu0 0.0
    %874 = vmatpush.msra.mxu0 0.0
    %875 = vmatpush.msra.mxu0 0.0
    %876 = vmatpush.msra.mxu0 0.0
    %877 = vmatpush.msra.mxu0 0.0
    %878 = vmatpush.msra.mxu0 0.0
    %879 = vmatpush.msra.mxu0 0.0
    %880 = vmatpush.msra.mxu0 0.0
    %881 = vmatpush.msra.mxu0 0.0
    %882 = vmatpush.msra.mxu0 0.0
    %883 = vmatpush.msra.mxu0 0.0
    %884 = vmatpush.msra.mxu0 0.0
    %885 = vmatpush.msra.mxu0 %v343
    %886 = vmatpush.msra.mxu0 %v340
    %887 = vmatpush.msra.mxu0 %v337
    %888 = vmatpush.msra.mxu0 %v334
    %889 = vmatmul.f32.gmra.mxu0 %v871
    %v890 = vpop.f32.mrf.mxu0
    %v891 = vadd.f32 %v361, %v890
    %892 = vdwg.mxu0
    %893 = vmatpush.msra.mxu0 0.0
    %894 = vmatpush.msra.mxu0 0.0
    %895 = vmatpush.msra.mxu0 0.0
    %896 = vmatpush.msra.mxu0 0.0
    %897 = vmatpush.msra.mxu0 0.0
    %898 = vmatpush.msra.mxu0 0.0
    %899 = vmatpush.msra.mxu0 0.0
    %900 = vmatpush.msra.mxu0 0.0
    %901 = vmatpush.msra.mxu0 0.0
    %902 = vmatpush.msra.mxu0 0.0
    %903 = vmatpush.msra.mxu0 0.0
    %904 = vmatpush.msra.mxu0 0.0
    %905 = vmatpush.msra.mxu0 %v344
    %906 = vmatpush.msra.mxu0 %v341
    %907 = vmatpush.msra.mxu0 %v338
    %908 = vmatpush.msra.mxu0 %v335
    %909 = vmatmul.f32.gmra.mxu0 %v871
    %v910 = vpop.f32.mrf.mxu0
    %v911 = vadd.f32 %v362, %v910
    %912 = vdwg.mxu0
    %913 = vmatpush.msra.mxu0 0.0
    %914 = vmatpush.msra.mxu0 0.0
    %915 = vmatpush.msra.mxu0 0.0
    %916 = vmatpush.msra.mxu0 0.0
    %917 = vmatpush.msra.mxu0 0.0
    %918 = vmatpush.msra.mxu0 0.0
    %919 = vmatpush.msra.mxu0 0.0
    %920 = vmatpush.msra.mxu0 0.0
    %921 = vmatpush.msra.mxu0 0.0
    %922 = vmatpush.msra.mxu0 0.0
    %923 = vmatpush.msra.mxu0 0.0
    %924 = vmatpush.msra.mxu0 0.0
    %925 = vmatpush.msra.mxu0 %v345
    %926 = vmatpush.msra.mxu0 %v342
    %927 = vmatpush.msra.mxu0 %v339
    %928 = vmatpush.msra.mxu0 %v336
    %929 = vmatmul.f32.gmra.mxu0 %v871
    %v930 = vpop.f32.mrf.mxu0
    %v931 = vadd.f32 %v363, %v930
    %932 = vdwg.mxu0
    %v933 = vadd.f32 %v867, %v891
    %v934 = vadd.f32 %v868, %v911
    %v935 = vxor.u32 %v933, 2147483648
    %v936 = vmul.f32 %v935, 1.442695
    %v937 = vpow.pop %v936
    %v938 = vadd.f32 %v937, 1.0
    %v939 = vrcp.pop %v938
    %v940 = vmul.f32 %v938, %v939
    %v941 = vsub.f32 1.0, %v940
    %v942 = vmul.f32 %v939, %v941
    %v943 = vadd.f32 %v939, %v942
    %vm944 = vweird.f32 %v938
    %vm945 = vweird.f32 %v939
    %vm946 = vmor %vm944, %vm945
    %v947 = vsel %vm946, %v939, %v943
    %v948 = vand.u32 2147483647, %v938
    %vm949 = vcmp.eq.f32.partialorder %v948, 8.507059e+37
    %v950 = vand.u32 %v938, 2147483648
    %v951 = vor.u32 1.1754944e-38, %v950
    %v952 = vsel %vm949, %v951, %v947
    %v953 = vmul.f32 1.0, %v952
    %v954 = vxor.u32 %v934, 2147483648
    %v955 = vmul.f32 %v954, 1.442695
    %v956 = vpow.pop %v955
    %v957 = vadd.f32 %v956, 1.0
    %v958 = vrcp.pop %v957
    %v959 = vmul.f32 %v957, %v958
    %v960 = vsub.f32 1.0, %v959
    %v961 = vmul.f32 %v958, %v960
    %v962 = vadd.f32 %v958, %v961
    %vm963 = vweird.f32 %v957
    %vm964 = vweird.f32 %v958
    %vm965 = vmor %vm963, %vm964
    %v966 = vsel %vm965, %v958, %v962
    %v967 = vand.u32 2147483647, %v957
    %vm968 = vcmp.eq.f32.partialorder %v967, 8.507059e+37
    %v969 = vand.u32 %v957, 2147483648
    %v970 = vor.u32 1.1754944e-38, %v969
    %v971 = vsel %vm968, %v970, %v966
    %v972 = vmul.f32 1.0, %v971
    %v973 = vmul.f32 %v972, %v931
    %v974 = vadd.f32 %v869, %v973
    %v975 = vtanh.pop %v974
    %v976 = vsub.f32 1.0, %v953
    %v977 = vmul.f32 %v976, %v975
    %v978 = vmul.f32 %v953, %v866
    %v979 = vadd.f32 %v977, %v978
    %s980 = sld [smem:[#allocation4 + $0x4]]
    %s981 = ssub.f32 %s980, %s815
    %v983 = vsel %vm367, %v979, 0
    %985 = vmatpush.msra.mxu0 0.0
    %986 = vmatpush.msra.mxu0 0.0
    %987 = vmatpush.msra.mxu0 0.0
    %988 = vmatpush.msra.mxu0 0.0
    %989 = vmatpush.msra.mxu0 0.0
    %990 = vmatpush.msra.mxu0 0.0
    %991 = vmatpush.msra.mxu0 0.0
    %992 = vmatpush.msra.mxu0 0.0
    %993 = vmatpush.msra.mxu0 0.0
    %994 = vmatpush.msra.mxu0 0.0
    %995 = vmatpush.msra.mxu0 0.0
    %996 = vmatpush.msra.mxu0 0.0
    %997 = vmatpush.msra.mxu0 %v350
    %998 = vmatpush.msra.mxu0 %v349
    %999 = vmatpush.msra.mxu0 %v348
    %1000 = vmatpush.msra.mxu0 %v347
    %1001 = vmatmul.f32.gmra.mxu0 %v983
    %v1002 = vpop.f32.mrf.mxu0
    %v1003 = vadd.f32 %v482, %v1002
    %1004 = vdwg.mxu0
    %v1005 = vtanh.pop %v1003
    %v1007 = vsel %vm367, %v1005, 0
    %1009 = vmatpush.msra.mxu0 0.0
    %1010 = vmatpush.msra.mxu0 0.0
    %1011 = vmatpush.msra.mxu0 0.0
    %1012 = vmatpush.msra.mxu0 0.0
    %1013 = vmatpush.msra.mxu0 0.0
    %1014 = vmatpush.msra.mxu0 0.0
    %1015 = vmatpush.msra.mxu0 0.0
    %1016 = vmatpush.msra.mxu0 0.0
    %1017 = vmatpush.msra.mxu0 0.0
    %1018 = vmatpush.msra.mxu0 0.0
    %1019 = vmatpush.msra.mxu0 0.0
    %1020 = vmatpush.msra.mxu0 0.0
    %1021 = vmatpush.msra.mxu0 %v355
    %1022 = vmatpush.msra.mxu0 %v354
    %1023 = vmatpush.msra.mxu0 %v353
    %1024 = vmatpush.msra.mxu0 %v352
    %1025 = vmatmul.f32.gmra.mxu0 %v1007
    %v1026 = vpop.f32.mrf.mxu0
    %v1027 = vadd.f32 %v509, %v1026
    %1028 = vdwg.mxu0
    %v1029 = vstv %s981
    %v1030 = vmul.f32 %v1029, %v1027
    %v1031 = vadd.f32 %v979, %v1030
    %v1032 = vld [vmem:[#allocation2 + $0x60] sm:$0xff]
    %v1033 = vld [vmem:[#allocation2 + $0x68] sm:$0xff]
    %v1034 = vld [vmem:[#allocation2 + $0x70] sm:$0xff]
    %v1036 = vsel %vm367, %v1031, 0
    %1038 = vmatpush.msra.mxu0 0.0
    %1039 = vmatpush.msra.mxu0 0.0
    %1040 = vmatpush.msra.mxu0 0.0
    %1041 = vmatpush.msra.mxu0 0.0
    %1042 = vmatpush.msra.mxu0 0.0
    %1043 = vmatpush.msra.mxu0 0.0
    %1044 = vmatpush.msra.mxu0 0.0
    %1045 = vmatpush.msra.mxu0 0.0
    %1046 = vmatpush.msra.mxu0 0.0
    %1047 = vmatpush.msra.mxu0 0.0
    %1048 = vmatpush.msra.mxu0 0.0
    %1049 = vmatpush.msra.mxu0 0.0
    %1050 = vmatpush.msra.mxu0 %v343
    %1051 = vmatpush.msra.mxu0 %v340
    %1052 = vmatpush.msra.mxu0 %v337
    %1053 = vmatpush.msra.mxu0 %v334
    %1054 = vmatmul.f32.gmra.mxu0 %v1036
    %v1055 = vpop.f32.mrf.mxu0
    %v1056 = vadd.f32 %v361, %v1055
    %1057 = vdwg.mxu0
    %1058 = vmatpush.msra.mxu0 0.0
    %1059 = vmatpush.msra.mxu0 0.0
    %1060 = vmatpush.msra.mxu0 0.0
    %1061 = vmatpush.msra.mxu0 0.0
    %1062 = vmatpush.msra.mxu0 0.0
    %1063 = vmatpush.msra.mxu0 0.0
    %1064 = vmatpush.msra.mxu0 0.0
    %1065 = vmatpush.msra.mxu0 0.0
    %1066 = vmatpush.msra.mxu0 0.0
    %1067 = vmatpush.msra.mxu0 0.0
    %1068 = vmatpush.msra.mxu0 0.0
    %1069 = vmatpush.msra.mxu0 0.0
    %1070 = vmatpush.msra.mxu0 %v344
    %1071 = vmatpush.msra.mxu0 %v341
    %1072 = vmatpush.msra.mxu0 %v338
    %1073 = vmatpush.msra.mxu0 %v335
    %1074 = vmatmul.f32.gmra.mxu0 %v1036
    %v1075 = vpop.f32.mrf.mxu0
    %v1076 = vadd.f32 %v362, %v1075
    %1077 = vdwg.mxu0
    %1078 = vmatpush.msra.mxu0 0.0
    %1079 = vmatpush.msra.mxu0 0.0
    %1080 = vmatpush.msra.mxu0 0.0
    %1081 = vmatpush.msra.mxu0 0.0
    %1082 = vmatpush.msra.mxu0 0.0
    %1083 = vmatpush.msra.mxu0 0.0
    %1084 = vmatpush.msra.mxu0 0.0
    %1085 = vmatpush.msra.mxu0 0.0
    %1086 = vmatpush.msra.mxu0 0.0
    %1087 = vmatpush.msra.mxu0 0.0
    %1088 = vmatpush.msra.mxu0 0.0
    %1089 = vmatpush.msra.mxu0 0.0
    %1090 = vmatpush.msra.mxu0 %v345
    %1091 = vmatpush.msra.mxu0 %v342
    %1092 = vmatpush.msra.mxu0 %v339
    %1093 = vmatpush.msra.mxu0 %v336
    %1094 = vmatmul.f32.gmra.mxu0 %v1036
    %v1095 = vpop.f32.mrf.mxu0
    %v1096 = vadd.f32 %v363, %v1095
    %1097 = vdwg.mxu0
    %v1098 = vadd.f32 %v1032, %v1056
    %v1099 = vadd.f32 %v1033, %v1076
    %v1100 = vxor.u32 %v1098, 2147483648
    %v1101 = vmul.f32 %v1100, 1.442695
    %v1102 = vpow.pop %v1101
    %v1103 = vadd.f32 %v1102, 1.0
    %v1104 = vrcp.pop %v1103
    %v1105 = vmul.f32 %v1103, %v1104
    %v1106 = vsub.f32 1.0, %v1105
    %v1107 = vmul.f32 %v1104, %v1106
    %v1108 = vadd.f32 %v1104, %v1107
    %vm1109 = vweird.f32 %v1103
    %vm1110 = vweird.f32 %v1104
    %vm1111 = vmor %vm1109, %vm1110
    %v1112 = vsel %vm1111, %v1104, %v1108
    %v1113 = vand.u32 2147483647, %v1103
    %vm1114 = vcmp.eq.f32.partialorder %v1113, 8.507059e+37
    %v1115 = vand.u32 %v1103, 2147483648
    %v1116 = vor.u32 1.1754944e-38, %v1115
    %v1117 = vsel %vm1114, %v1116, %v1112
    %v1118 = vmul.f32 1.0, %v1117
    %v1119 = vxor.u32 %v1099, 2147483648
    %v1120 = vmul.f32 %v1119, 1.442695
    %v1121 = vpow.pop %v1120
    %v1122 = vadd.f32 %v1121, 1.0
    %v1123 = vrcp.pop %v1122
    %v1124 = vmul.f32 %v1122, %v1123
    %v1125 = vsub.f32 1.0, %v1124
    %v1126 = vmul.f32 %v1123, %v1125
    %v1127 = vadd.f32 %v1123, %v1126
    %vm1128 = vweird.f32 %v1122
    %vm1129 = vweird.f32 %v1123
    %vm1130 = vmor %vm1128, %vm1129
    %v1131 = vsel %vm1130, %v1123, %v1127
    %v1132 = vand.u32 2147483647, %v1122
    %vm1133 = vcmp.eq.f32.partialorder %v1132, 8.507059e+37
    %v1134 = vand.u32 %v1122, 2147483648
    %v1135 = vor.u32 1.1754944e-38, %v1134
    %v1136 = vsel %vm1133, %v1135, %v1131
    %v1137 = vmul.f32 1.0, %v1136
    %v1138 = vmul.f32 %v1137, %v1096
    %v1139 = vadd.f32 %v1034, %v1138
    %v1140 = vtanh.pop %v1139
    %v1141 = vsub.f32 1.0, %v1118
    %v1142 = vmul.f32 %v1141, %v1140
    %v1143 = vmul.f32 %v1118, %v1031
    %v1144 = vadd.f32 %v1142, %v1143
    %s1145 = sld [smem:[#allocation4 + $0x5]]
    %s1146 = ssub.f32 %s1145, %s980
    %v1148 = vsel %vm367, %v1144, 0
    %1150 = vmatpush.msra.mxu0 0.0
    %1151 = vmatpush.msra.mxu0 0.0
    %1152 = vmatpush.msra.mxu0 0.0
    %1153 = vmatpush.msra.mxu0 0.0
    %1154 = vmatpush.msra.mxu0 0.0
    %1155 = vmatpush.msra.mxu0 0.0
    %1156 = vmatpush.msra.mxu0 0.0
    %1157 = vmatpush.msra.mxu0 0.0
    %1158 = vmatpush.msra.mxu0 0.0
    %1159 = vmatpush.msra.mxu0 0.0
    %1160 = vmatpush.msra.mxu0 0.0
    %1161 = vmatpush.msra.mxu0 0.0
    %1162 = vmatpush.msra.mxu0 %v350
    %1163 = vmatpush.msra.mxu0 %v349
    %1164 = vmatpush.msra.mxu0 %v348
    %1165 = vmatpush.msra.mxu0 %v347
    %1166 = vmatmul.f32.gmra.mxu0 %v1148
    %v1167 = vpop.f32.mrf.mxu0
    %v1168 = vadd.f32 %v482, %v1167
    %1169 = vdwg.mxu0
    %v1170 = vtanh.pop %v1168
    %v1172 = vsel %vm367, %v1170, 0
    %1174 = vmatpush.msra.mxu0 0.0
    %1175 = vmatpush.msra.mxu0 0.0
    %1176 = vmatpush.msra.mxu0 0.0
    %1177 = vmatpush.msra.mxu0 0.0
    %1178 = vmatpush.msra.mxu0 0.0
    %1179 = vmatpush.msra.mxu0 0.0
    %1180 = vmatpush.msra.mxu0 0.0
    %1181 = vmatpush.msra.mxu0 0.0
    %1182 = vmatpush.msra.mxu0 0.0
    %1183 = vmatpush.msra.mxu0 0.0
    %1184 = vmatpush.msra.mxu0 0.0
    %1185 = vmatpush.msra.mxu0 0.0
    %1186 = vmatpush.msra.mxu0 %v355
    %1187 = vmatpush.msra.mxu0 %v354
    %1188 = vmatpush.msra.mxu0 %v353
    %1189 = vmatpush.msra.mxu0 %v352
    %1190 = vmatmul.f32.gmra.mxu0 %v1172
    %v1191 = vpop.f32.mrf.mxu0
    %v1192 = vadd.f32 %v509, %v1191
    %1193 = vdwg.mxu0
    %v1194 = vstv %s1146
    %v1195 = vmul.f32 %v1194, %v1192
    %v1196 = vadd.f32 %v1144, %v1195
    %v1197 = vld [vmem:[#allocation2 + $0x78] sm:$0xff]
    %v1198 = vld [vmem:[#allocation2 + $0x80] sm:$0xff]
    %v1199 = vld [vmem:[#allocation2 + $0x88] sm:$0xff]
    %v1201 = vsel %vm367, %v1196, 0
    %1203 = vmatpush.msra.mxu0 0.0
    %1204 = vmatpush.msra.mxu0 0.0
    %1205 = vmatpush.msra.mxu0 0.0
    %1206 = vmatpush.msra.mxu0 0.0
    %1207 = vmatpush.msra.mxu0 0.0
    %1208 = vmatpush.msra.mxu0 0.0
    %1209 = vmatpush.msra.mxu0 0.0
    %1210 = vmatpush.msra.mxu0 0.0
    %1211 = vmatpush.msra.mxu0 0.0
    %1212 = vmatpush.msra.mxu0 0.0
    %1213 = vmatpush.msra.mxu0 0.0
    %1214 = vmatpush.msra.mxu0 0.0
    %1215 = vmatpush.msra.mxu0 %v343
    %1216 = vmatpush.msra.mxu0 %v340
    %1217 = vmatpush.msra.mxu0 %v337
    %1218 = vmatpush.msra.mxu0 %v334
    %1219 = vmatmul.f32.gmra.mxu0 %v1201
    %v1220 = vpop.f32.mrf.mxu0
    %v1221 = vadd.f32 %v361, %v1220
    %1222 = vdwg.mxu0
    %1223 = vmatpush.msra.mxu0 0.0
    %1224 = vmatpush.msra.mxu0 0.0
    %1225 = vmatpush.msra.mxu0 0.0
    %1226 = vmatpush.msra.mxu0 0.0
    %1227 = vmatpush.msra.mxu0 0.0
    %1228 = vmatpush.msra.mxu0 0.0
    %1229 = vmatpush.msra.mxu0 0.0
    %1230 = vmatpush.msra.mxu0 0.0
    %1231 = vmatpush.msra.mxu0 0.0
    %1232 = vmatpush.msra.mxu0 0.0
    %1233 = vmatpush.msra.mxu0 0.0
    %1234 = vmatpush.msra.mxu0 0.0
    %1235 = vmatpush.msra.mxu0 %v344
    %1236 = vmatpush.msra.mxu0 %v341
    %1237 = vmatpush.msra.mxu0 %v338
    %1238 = vmatpush.msra.mxu0 %v335
    %1239 = vmatmul.f32.gmra.mxu0 %v1201
    %v1240 = vpop.f32.mrf.mxu0
    %v1241 = vadd.f32 %v362, %v1240
    %1242 = vdwg.mxu0
    %1243 = vmatpush.msra.mxu0 0.0
    %1244 = vmatpush.msra.mxu0 0.0
    %1245 = vmatpush.msra.mxu0 0.0
    %1246 = vmatpush.msra.mxu0 0.0
    %1247 = vmatpush.msra.mxu0 0.0
    %1248 = vmatpush.msra.mxu0 0.0
    %1249 = vmatpush.msra.mxu0 0.0
    %1250 = vmatpush.msra.mxu0 0.0
    %1251 = vmatpush.msra.mxu0 0.0
    %1252 = vmatpush.msra.mxu0 0.0
    %1253 = vmatpush.msra.mxu0 0.0
    %1254 = vmatpush.msra.mxu0 0.0
    %1255 = vmatpush.msra.mxu0 %v345
    %1256 = vmatpush.msra.mxu0 %v342
    %1257 = vmatpush.msra.mxu0 %v339
    %1258 = vmatpush.msra.mxu0 %v336
    %1259 = vmatmul.f32.gmra.mxu0 %v1201
    %v1260 = vpop.f32.mrf.mxu0
    %v1261 = vadd.f32 %v363, %v1260
    %1262 = vdwg.mxu0
    %v1263 = vadd.f32 %v1197, %v1221
    %v1264 = vadd.f32 %v1198, %v1241
    %v1265 = vxor.u32 %v1263, 2147483648
    %v1266 = vmul.f32 %v1265, 1.442695
    %v1267 = vpow.pop %v1266
    %v1268 = vadd.f32 %v1267, 1.0
    %v1269 = vrcp.pop %v1268
    %v1270 = vmul.f32 %v1268, %v1269
    %v1271 = vsub.f32 1.0, %v1270
    %v1272 = vmul.f32 %v1269, %v1271
    %v1273 = vadd.f32 %v1269, %v1272
    %vm1274 = vweird.f32 %v1268
    %vm1275 = vweird.f32 %v1269
    %vm1276 = vmor %vm1274, %vm1275
    %v1277 = vsel %vm1276, %v1269, %v1273
    %v1278 = vand.u32 2147483647, %v1268
    %vm1279 = vcmp.eq.f32.partialorder %v1278, 8.507059e+37
    %v1280 = vand.u32 %v1268, 2147483648
    %v1281 = vor.u32 1.1754944e-38, %v1280
    %v1282 = vsel %vm1279, %v1281, %v1277
    %v1283 = vmul.f32 1.0, %v1282
    %v1284 = vxor.u32 %v1264, 2147483648
    %v1285 = vmul.f32 %v1284, 1.442695
    %v1286 = vpow.pop %v1285
    %v1287 = vadd.f32 %v1286, 1.0
    %v1288 = vrcp.pop %v1287
    %v1289 = vmul.f32 %v1287, %v1288
    %v1290 = vsub.f32 1.0, %v1289
    %v1291 = vmul.f32 %v1288, %v1290
    %v1292 = vadd.f32 %v1288, %v1291
    %vm1293 = vweird.f32 %v1287
    %vm1294 = vweird.f32 %v1288
    %vm1295 = vmor %vm1293, %vm1294
    %v1296 = vsel %vm1295, %v1288, %v1292
    %v1297 = vand.u32 2147483647, %v1287
    %vm1298 = vcmp.eq.f32.partialorder %v1297, 8.507059e+37
    %v1299 = vand.u32 %v1287, 2147483648
    %v1300 = vor.u32 1.1754944e-38, %v1299
    %v1301 = vsel %vm1298, %v1300, %v1296
    %v1302 = vmul.f32 1.0, %v1301
    %v1303 = vmul.f32 %v1302, %v1261
    %v1304 = vadd.f32 %v1199, %v1303
    %v1305 = vtanh.pop %v1304
    %v1306 = vsub.f32 1.0, %v1283
    %v1307 = vmul.f32 %v1306, %v1305
    %v1308 = vmul.f32 %v1283, %v1196
    %v1309 = vadd.f32 %v1307, %v1308
    %s1310 = sld [smem:[#allocation4 + $0x6]]
    %s1311 = ssub.f32 %s1310, %s1145
    %v1313 = vsel %vm367, %v1309, 0
    %1315 = vmatpush.msra.mxu0 0.0
    %1316 = vmatpush.msra.mxu0 0.0
    %1317 = vmatpush.msra.mxu0 0.0
    %1318 = vmatpush.msra.mxu0 0.0
    %1319 = vmatpush.msra.mxu0 0.0
    %1320 = vmatpush.msra.mxu0 0.0
    %1321 = vmatpush.msra.mxu0 0.0
    %1322 = vmatpush.msra.mxu0 0.0
    %1323 = vmatpush.msra.mxu0 0.0
    %1324 = vmatpush.msra.mxu0 0.0
    %1325 = vmatpush.msra.mxu0 0.0
    %1326 = vmatpush.msra.mxu0 0.0
    %1327 = vmatpush.msra.mxu0 %v350
    %1328 = vmatpush.msra.mxu0 %v349
    %1329 = vmatpush.msra.mxu0 %v348
    %1330 = vmatpush.msra.mxu0 %v347
    %1331 = vmatmul.f32.gmra.mxu0 %v1313
    %v1332 = vpop.f32.mrf.mxu0
    %v1333 = vadd.f32 %v482, %v1332
    %1334 = vdwg.mxu0
    %v1335 = vtanh.pop %v1333
    %v1337 = vsel %vm367, %v1335, 0
    %1339 = vmatpush.msra.mxu0 0.0
    %1340 = vmatpush.msra.mxu0 0.0
    %1341 = vmatpush.msra.mxu0 0.0
    %1342 = vmatpush.msra.mxu0 0.0
    %1343 = vmatpush.msra.mxu0 0.0
    %1344 = vmatpush.msra.mxu0 0.0
    %1345 = vmatpush.msra.mxu0 0.0
    %1346 = vmatpush.msra.mxu0 0.0
    %1347 = vmatpush.msra.mxu0 0.0
    %1348 = vmatpush.msra.mxu0 0.0
    %1349 = vmatpush.msra.mxu0 0.0
    %1350 = vmatpush.msra.mxu0 0.0
    %1351 = vmatpush.msra.mxu0 %v355
    %1352 = vmatpush.msra.mxu0 %v354
    %1353 = vmatpush.msra.mxu0 %v353
    %1354 = vmatpush.msra.mxu0 %v352
    %1355 = vmatmul.f32.gmra.mxu0 %v1337
    %v1356 = vpop.f32.mrf.mxu0
    %v1357 = vadd.f32 %v509, %v1356
    %1358 = vdwg.mxu0
    %v1359 = vstv %s1311
    %v1360 = vmul.f32 %v1359, %v1357
    %v1361 = vadd.f32 %v1309, %v1360
    %v1362 = vld [vmem:[#allocation2 + $0x90] sm:$0xff]
    %v1363 = vld [vmem:[#allocation2 + $0x98] sm:$0xff]
    %v1364 = vld [vmem:[#allocation2 + $0xa0] sm:$0xff]
    %v1366 = vsel %vm367, %v1361, 0
    %1368 = vmatpush.msra.mxu0 0.0
    %1369 = vmatpush.msra.mxu0 0.0
    %1370 = vmatpush.msra.mxu0 0.0
    %1371 = vmatpush.msra.mxu0 0.0
    %1372 = vmatpush.msra.mxu0 0.0
    %1373 = vmatpush.msra.mxu0 0.0
    %1374 = vmatpush.msra.mxu0 0.0
    %1375 = vmatpush.msra.mxu0 0.0
    %1376 = vmatpush.msra.mxu0 0.0
    %1377 = vmatpush.msra.mxu0 0.0
    %1378 = vmatpush.msra.mxu0 0.0
    %1379 = vmatpush.msra.mxu0 0.0
    %1380 = vmatpush.msra.mxu0 %v343
    %1381 = vmatpush.msra.mxu0 %v340
    %1382 = vmatpush.msra.mxu0 %v337
    %1383 = vmatpush.msra.mxu0 %v334
    %1384 = vmatmul.f32.gmra.mxu0 %v1366
    %v1385 = vpop.f32.mrf.mxu0
    %v1386 = vadd.f32 %v361, %v1385
    %1387 = vdwg.mxu0
    %1388 = vmatpush.msra.mxu0 0.0
    %1389 = vmatpush.msra.mxu0 0.0
    %1390 = vmatpush.msra.mxu0 0.0
    %1391 = vmatpush.msra.mxu0 0.0
    %1392 = vmatpush.msra.mxu0 0.0
    %1393 = vmatpush.msra.mxu0 0.0
    %1394 = vmatpush.msra.mxu0 0.0
    %1395 = vmatpush.msra.mxu0 0.0
    %1396 = vmatpush.msra.mxu0 0.0
    %1397 = vmatpush.msra.mxu0 0.0
    %1398 = vmatpush.msra.mxu0 0.0
    %1399 = vmatpush.msra.mxu0 0.0
    %1400 = vmatpush.msra.mxu0 %v344
    %1401 = vmatpush.msra.mxu0 %v341
    %1402 = vmatpush.msra.mxu0 %v338
    %1403 = vmatpush.msra.mxu0 %v335
    %1404 = vmatmul.f32.gmra.mxu0 %v1366
    %v1405 = vpop.f32.mrf.mxu0
    %v1406 = vadd.f32 %v362, %v1405
    %1407 = vdwg.mxu0
    %1408 = vmatpush.msra.mxu0 0.0
    %1409 = vmatpush.msra.mxu0 0.0
    %1410 = vmatpush.msra.mxu0 0.0
    %1411 = vmatpush.msra.mxu0 0.0
    %1412 = vmatpush.msra.mxu0 0.0
    %1413 = vmatpush.msra.mxu0 0.0
    %1414 = vmatpush.msra.mxu0 0.0
    %1415 = vmatpush.msra.mxu0 0.0
    %1416 = vmatpush.msra.mxu0 0.0
    %1417 = vmatpush.msra.mxu0 0.0
    %1418 = vmatpush.msra.mxu0 0.0
    %1419 = vmatpush.msra.mxu0 0.0
    %1420 = vmatpush.msra.mxu0 %v345
    %1421 = vmatpush.msra.mxu0 %v342
    %1422 = vmatpush.msra.mxu0 %v339
    %1423 = vmatpush.msra.mxu0 %v336
    %1424 = vmatmul.f32.gmra.mxu0 %v1366
    %v1425 = vpop.f32.mrf.mxu0
    %v1426 = vadd.f32 %v363, %v1425
    %1427 = vdwg.mxu0
    %v1428 = vadd.f32 %v1362, %v1386
    %v1429 = vadd.f32 %v1363, %v1406
    %v1430 = vxor.u32 %v1428, 2147483648
    %v1431 = vmul.f32 %v1430, 1.442695
    %v1432 = vpow.pop %v1431
    %v1433 = vadd.f32 %v1432, 1.0
    %v1434 = vrcp.pop %v1433
    %v1435 = vmul.f32 %v1433, %v1434
    %v1436 = vsub.f32 1.0, %v1435
    %v1437 = vmul.f32 %v1434, %v1436
    %v1438 = vadd.f32 %v1434, %v1437
    %vm1439 = vweird.f32 %v1433
    %vm1440 = vweird.f32 %v1434
    %vm1441 = vmor %vm1439, %vm1440
    %v1442 = vsel %vm1441, %v1434, %v1438
    %v1443 = vand.u32 2147483647, %v1433
    %vm1444 = vcmp.eq.f32.partialorder %v1443, 8.507059e+37
    %v1445 = vand.u32 %v1433, 2147483648
    %v1446 = vor.u32 1.1754944e-38, %v1445
    %v1447 = vsel %vm1444, %v1446, %v1442
    %v1448 = vmul.f32 1.0, %v1447
    %v1449 = vxor.u32 %v1429, 2147483648
    %v1450 = vmul.f32 %v1449, 1.442695
    %v1451 = vpow.pop %v1450
    %v1452 = vadd.f32 %v1451, 1.0
    %v1453 = vrcp.pop %v1452
    %v1454 = vmul.f32 %v1452, %v1453
    %v1455 = vsub.f32 1.0, %v1454
    %v1456 = vmul.f32 %v1453, %v1455
    %v1457 = vadd.f32 %v1453, %v1456
    %vm1458 = vweird.f32 %v1452
    %vm1459 = vweird.f32 %v1453
    %vm1460 = vmor %vm1458, %vm1459
    %v1461 = vsel %vm1460, %v1453, %v1457
    %v1462 = vand.u32 2147483647, %v1452
    %vm1463 = vcmp.eq.f32.partialorder %v1462, 8.507059e+37
    %v1464 = vand.u32 %v1452, 2147483648
    %v1465 = vor.u32 1.1754944e-38, %v1464
    %v1466 = vsel %vm1463, %v1465, %v1461
    %v1467 = vmul.f32 1.0, %v1466
    %v1468 = vmul.f32 %v1467, %v1426
    %v1469 = vadd.f32 %v1364, %v1468
    %v1470 = vtanh.pop %v1469
    %v1471 = vsub.f32 1.0, %v1448
    %v1472 = vmul.f32 %v1471, %v1470
    %v1473 = vmul.f32 %v1448, %v1361
    %v1474 = vadd.f32 %v1472, %v1473
    %s1475 = sld [smem:[#allocation4 + $0x7]]
    %s1476 = ssub.f32 %s1475, %s1310
    %v1478 = vsel %vm367, %v1474, 0
    %1480 = vmatpush.msra.mxu0 0.0
    %1481 = vmatpush.msra.mxu0 0.0
    %1482 = vmatpush.msra.mxu0 0.0
    %1483 = vmatpush.msra.mxu0 0.0
    %1484 = vmatpush.msra.mxu0 0.0
    %1485 = vmatpush.msra.mxu0 0.0
    %1486 = vmatpush.msra.mxu0 0.0
    %1487 = vmatpush.msra.mxu0 0.0
    %1488 = vmatpush.msra.mxu0 0.0
    %1489 = vmatpush.msra.mxu0 0.0
    %1490 = vmatpush.msra.mxu0 0.0
    %1491 = vmatpush.msra.mxu0 0.0
    %1492 = vmatpush.msra.mxu0 %v350
    %1493 = vmatpush.msra.mxu0 %v349
    %1494 = vmatpush.msra.mxu0 %v348
    %1495 = vmatpush.msra.mxu0 %v347
    %1496 = vmatmul.f32.gmra.mxu0 %v1478
    %v1497 = vpop.f32.mrf.mxu0
    %v1498 = vadd.f32 %v482, %v1497
    %1499 = vdwg.mxu0
    %v1500 = vtanh.pop %v1498
    %v1502 = vsel %vm367, %v1500, 0
    %1504 = vmatpush.msra.mxu0 0.0
    %1505 = vmatpush.msra.mxu0 0.0
    %1506 = vmatpush.msra.mxu0 0.0
    %1507 = vmatpush.msra.mxu0 0.0
    %1508 = vmatpush.msra.mxu0 0.0
    %1509 = vmatpush.msra.mxu0 0.0
    %1510 = vmatpush.msra.mxu0 0.0
    %1511 = vmatpush.msra.mxu0 0.0
    %1512 = vmatpush.msra.mxu0 0.0
    %1513 = vmatpush.msra.mxu0 0.0
    %1514 = vmatpush.msra.mxu0 0.0
    %1515 = vmatpush.msra.mxu0 0.0
    %1516 = vmatpush.msra.mxu0 %v355
    %1517 = vmatpush.msra.mxu0 %v354
    %1518 = vmatpush.msra.mxu0 %v353
    %1519 = vmatpush.msra.mxu0 %v352
    %1520 = vmatmul.f32.gmra.mxu0 %v1502
    %v1521 = vpop.f32.mrf.mxu0
    %v1522 = vadd.f32 %v509, %v1521
    %1523 = vdwg.mxu0
    %v1524 = vstv %s1476
    %v1525 = vmul.f32 %v1524, %v1522
    %v1526 = vadd.f32 %v1474, %v1525
    %v1527 = vld [vmem:[#allocation2 + $0xa8] sm:$0xff]
    %v1528 = vld [vmem:[#allocation2 + $0xb0] sm:$0xff]
    %v1529 = vld [vmem:[#allocation2 + $0xb8] sm:$0xff]
    %v1531 = vsel %vm367, %v1526, 0
    %1533 = vmatpush.msra.mxu0 0.0
    %1534 = vmatpush.msra.mxu0 0.0
    %1535 = vmatpush.msra.mxu0 0.0
    %1536 = vmatpush.msra.mxu0 0.0
    %1537 = vmatpush.msra.mxu0 0.0
    %1538 = vmatpush.msra.mxu0 0.0
    %1539 = vmatpush.msra.mxu0 0.0
    %1540 = vmatpush.msra.mxu0 0.0
    %1541 = vmatpush.msra.mxu0 0.0
    %1542 = vmatpush.msra.mxu0 0.0
    %1543 = vmatpush.msra.mxu0 0.0
    %1544 = vmatpush.msra.mxu0 0.0
    %1545 = vmatpush.msra.mxu0 %v343
    %1546 = vmatpush.msra.mxu0 %v340
    %1547 = vmatpush.msra.mxu0 %v337
    %1548 = vmatpush.msra.mxu0 %v334
    %1549 = vmatmul.f32.gmra.mxu0 %v1531
    %v1550 = vpop.f32.mrf.mxu0
    %v1551 = vadd.f32 %v361, %v1550
    %1552 = vdwg.mxu0
    %1553 = vmatpush.msra.mxu0 0.0
    %1554 = vmatpush.msra.mxu0 0.0
    %1555 = vmatpush.msra.mxu0 0.0
    %1556 = vmatpush.msra.mxu0 0.0
    %1557 = vmatpush.msra.mxu0 0.0
    %1558 = vmatpush.msra.mxu0 0.0
    %1559 = vmatpush.msra.mxu0 0.0
    %1560 = vmatpush.msra.mxu0 0.0
    %1561 = vmatpush.msra.mxu0 0.0
    %1562 = vmatpush.msra.mxu0 0.0
    %1563 = vmatpush.msra.mxu0 0.0
    %1564 = vmatpush.msra.mxu0 0.0
    %1565 = vmatpush.msra.mxu0 %v344
    %1566 = vmatpush.msra.mxu0 %v341
    %1567 = vmatpush.msra.mxu0 %v338
    %1568 = vmatpush.msra.mxu0 %v335
    %1569 = vmatmul.f32.gmra.mxu0 %v1531
    %v1570 = vpop.f32.mrf.mxu0
    %v1571 = vadd.f32 %v362, %v1570
    %1572 = vdwg.mxu0
    %1573 = vmatpush.msra.mxu0 0.0
    %1574 = vmatpush.msra.mxu0 0.0
    %1575 = vmatpush.msra.mxu0 0.0
    %1576 = vmatpush.msra.mxu0 0.0
    %1577 = vmatpush.msra.mxu0 0.0
    %1578 = vmatpush.msra.mxu0 0.0
    %1579 = vmatpush.msra.mxu0 0.0
    %1580 = vmatpush.msra.mxu0 0.0
    %1581 = vmatpush.msra.mxu0 0.0
    %1582 = vmatpush.msra.mxu0 0.0
    %1583 = vmatpush.msra.mxu0 0.0
    %1584 = vmatpush.msra.mxu0 0.0
    %1585 = vmatpush.msra.mxu0 %v345
    %1586 = vmatpush.msra.mxu0 %v342
    %1587 = vmatpush.msra.mxu0 %v339
    %1588 = vmatpush.msra.mxu0 %v336
    %1589 = vmatmul.f32.gmra.mxu0 %v1531
    %v1590 = vpop.f32.mrf.mxu0
    %v1591 = vadd.f32 %v363, %v1590
    %1592 = vdwg.mxu0
    %v1593 = vadd.f32 %v1527, %v1551
    %v1594 = vadd.f32 %v1528, %v1571
    %v1595 = vxor.u32 %v1593, 2147483648
    %v1596 = vmul.f32 %v1595, 1.442695
    %v1597 = vpow.pop %v1596
    %v1598 = vadd.f32 %v1597, 1.0
    %v1599 = vrcp.pop %v1598
    %v1600 = vmul.f32 %v1598, %v1599
    %v1601 = vsub.f32 1.0, %v1600
    %v1602 = vmul.f32 %v1599, %v1601
    %v1603 = vadd.f32 %v1599, %v1602
    %vm1604 = vweird.f32 %v1598
    %vm1605 = vweird.f32 %v1599
    %vm1606 = vmor %vm1604, %vm1605
    %v1607 = vsel %vm1606, %v1599, %v1603
    %v1608 = vand.u32 2147483647, %v1598
    %vm1609 = vcmp.eq.f32.partialorder %v1608, 8.507059e+37
    %v1610 = vand.u32 %v1598, 2147483648
    %v1611 = vor.u32 1.1754944e-38, %v1610
    %v1612 = vsel %vm1609, %v1611, %v1607
    %v1613 = vmul.f32 1.0, %v1612
    %v1614 = vxor.u32 %v1594, 2147483648
    %v1615 = vmul.f32 %v1614, 1.442695
    %v1616 = vpow.pop %v1615
    %v1617 = vadd.f32 %v1616, 1.0
    %v1618 = vrcp.pop %v1617
    %v1619 = vmul.f32 %v1617, %v1618
    %v1620 = vsub.f32 1.0, %v1619
    %v1621 = vmul.f32 %v1618, %v1620
    %v1622 = vadd.f32 %v1618, %v1621
    %vm1623 = vweird.f32 %v1617
    %vm1624 = vweird.f32 %v1618
    %vm1625 = vmor %vm1623, %vm1624
    %v1626 = vsel %vm1625, %v1618, %v1622
    %v1627 = vand.u32 2147483647, %v1617
    %vm1628 = vcmp.eq.f32.partialorder %v1627, 8.507059e+37
    %v1629 = vand.u32 %v1617, 2147483648
    %v1630 = vor.u32 1.1754944e-38, %v1629
    %v1631 = vsel %vm1628, %v1630, %v1626
    %v1632 = vmul.f32 1.0, %v1631
    %v1633 = vmul.f32 %v1632, %v1591
    %v1634 = vadd.f32 %v1529, %v1633
    %v1635 = vtanh.pop %v1634
    %v1636 = vsub.f32 1.0, %v1613
    %v1637 = vmul.f32 %v1636, %v1635
    %v1638 = vmul.f32 %v1613, %v1526
    %v1639 = vadd.f32 %v1637, %v1638
    %v1640 = vld [vmem:[%s12] sm:$0xff]
    %v1641 = vld [vmem:[%s12 + $0x8] sm:$0xff]
    %v1642 = vld [vmem:[%s12 + $0x10] sm:$0xff]
    %v1643 = vld [vmem:[%s12 + $0x18] sm:$0xff]
    %v1644 = vld [vmem:[%s12 + $0x20] sm:$0xff]
    %v1645 = vld [vmem:[%s12 + $0x28] sm:$0xff]
    %v1646 = vld [vmem:[%s12 + $0x30] sm:$0xff]
    %v1647 = vld [vmem:[%s12 + $0x38] sm:$0xff]
    %v1648 = vld [vmem:[%s13] sm:$0x3]
    %v1650 = vperm.slane %v1648, 0
    %v1651 = vperm.slane %v1648, 1
    %v1655 = vsel %vm367, %v1639, 0
    %1657 = vmatpush.msra.mxu0 0.0
    %1658 = vmatpush.msra.mxu0 0.0
    %1659 = vmatpush.msra.mxu0 0.0
    %1660 = vmatpush.msra.mxu0 0.0
    %1661 = vmatpush.msra.mxu0 0.0
    %1662 = vmatpush.msra.mxu0 0.0
    %1663 = vmatpush.msra.mxu0 0.0
    %1664 = vmatpush.msra.mxu0 0.0
    %1665 = vmatpush.msra.mxu0 0.0
    %1666 = vmatpush.msra.mxu0 0.0
    %1667 = vmatpush.msra.mxu0 0.0
    %1668 = vmatpush.msra.mxu0 0.0
    %1669 = vmatpush.msra.mxu0 %v1646
    %1670 = vmatpush.msra.mxu0 %v1644
    %1671 = vmatpush.msra.mxu0 %v1642
    %1672 = vmatpush.msra.mxu0 %v1640
    %1673 = vmatmul.f32.gmra.mxu0 %v1655
    %v1674 = vpop.f32.mrf.mxu0
    %v1675 = vadd.f32 %v1650, %v1674
    %1676 = vdwg.mxu0
    %1677 = vmatpush.msra.mxu0 0.0
    %1678 = vmatpush.msra.mxu0 0.0
    %1679 = vmatpush.msra.mxu0 0.0
    %1680 = vmatpush.msra.mxu0 0.0
    %1681 = vmatpush.msra.mxu0 0.0
    %1682 = vmatpush.msra.mxu0 0.0
    %1683 = vmatpush.msra.mxu0 0.0
    %1684 = vmatpush.msra.mxu0 0.0
    %1685 = vmatpush.msra.mxu0 0.0
    %1686 = vmatpush.msra.mxu0 0.0
    %1687 = vmatpush.msra.mxu0 0.0
    %1688 = vmatpush.msra.mxu0 0.0
    %1689 = vmatpush.msra.mxu0 %v1647
    %1690 = vmatpush.msra.mxu0 %v1645
    %1691 = vmatpush.msra.mxu0 %v1643
    %1692 = vmatpush.msra.mxu0 %v1641
    %1693 = vmatmul.f32.gmra.mxu0 %v1655
    %v1694 = vpop.f32.mrf.mxu0
    %v1695 = vadd.f32 %v1651, %v1694
    %1696 = vdwg.mxu0
    %1697 = vst.msk [vmem:[#allocation14] sm:$0xff] %vm367, %v1675
    %1698 = vst.msk [vmem:[%s24] sm:$0xff] %vm367, %v1695
    %v1699 = vld [vmem:[%s3] sm:$0xff]
    %v1700 = vld [vmem:[%s3 + $0x8] sm:$0xff]
    %v1701 = vld [vmem:[%s3 + $0x10] sm:$0xff]
    %v1702 = vmul.f32 %v1695, %v1699
    %v1703 = vmul.f32 %v1695, %v1700
    %v1704 = vmul.f32 %v1695, %v1701
    %v1705 = vadd.f32 %v1675, %v1702
    %v1706 = vadd.f32 %v1675, %v1703
    %v1707 = vadd.f32 %v1675, %v1704
    %1708 = vst.msk [vmem:[#allocation15] sm:$0xff] %vm367, %v1705
    %1709 = vst.msk [vmem:[#allocation15 + $0x8] sm:$0xff] %vm367, %v1706
    %1710 = vst.msk [vmem:[#allocation15 + $0x10] sm:$0xff] %vm367, %v1707
    %v1711 = vld [vmem:[%s14] sm:$0xff]
    %v1712 = vld [vmem:[%s14 + $0x8] sm:$0xff]
    %v1713 = vld [vmem:[%s14 + $0x10] sm:$0xff]
    %v1714 = vld [vmem:[%s14 + $0x18] sm:$0xff]
    %v1715 = vld [vmem:[%s15] sm:$0x1]
    %v1716 = vld [vmem:[%s16] sm:$0xff]
    %v1717 = vld [vmem:[%s16 + $0x8] sm:$0xff]
    %v1718 = vld [vmem:[%s16 + $0x10] sm:$0xff]
    %v1719 = vld [vmem:[%s16 + $0x18] sm:$0xff]
    %v1720 = vld [vmem:[%s17] sm:$0x1]
    %s1721 = sld [smem:[#allocation8]]
    %s1722 = sld [smem:[#allocation4 + $0x7]]
    %s1723 = ssub.f32 %s1721, %s1722
    %v1725 = vperm.slane %v1715, 0
    %v1728 = vsel %vm367, %v1705, 0
    %v1731 = vsel %vm367, %v1706, 0
    %v1734 = vsel %vm367, %v1707, 0
    %v1737 = vsel %vm367, %v1675, 0
    %1739 = vmatpush.msra.mxu0 0.0
    %1740 = vmatpush.msra.mxu0 0.0
    %1741 = vmatpush.msra.mxu0 0.0
    %1742 = vmatpush.msra.mxu0 0.0
    %1743 = vmatpush.msra.mxu0 0.0
    %1744 = vmatpush.msra.mxu0 0.0
    %1745 = vmatpush.msra.mxu0 0.0
    %1746 = vmatpush.msra.mxu0 0.0
    %1747 = vmatpush.msra.mxu0 0.0
    %1748 = vmatpush.msra.mxu0 0.0
    %1749 = vmatpush.msra.mxu0 0.0
    %1750 = vmatpush.msra.mxu0 0.0
    %1751 = vmatpush.msra.mxu0 %v1714
    %1752 = vmatpush.msra.mxu0 %v1713
    %1753 = vmatpush.msra.mxu0 %v1712
    %1754 = vmatpush.msra.mxu0 %v1711
    %1755 = vmatmul.f32.gmra.mxu0 %v1728
    %v1756 = vpop.f32.mrf.mxu0
    %v1757 = vadd.f32 %v1725, %v1756
    %1758 = vmatmul.f32.gmra.mxu0 %v1731
    %v1759 = vpop.f32.mrf.mxu0
    %v1760 = vadd.f32 %v1725, %v1759
    %1761 = vmatmul.f32.gmra.mxu0 %v1734
    %v1762 = vpop.f32.mrf.mxu0
    %v1763 = vadd.f32 %v1725, %v1762
    %1764 = vmatmul.f32.gmra.mxu0 %v1737
    %v1765 = vpop.f32.mrf.mxu0
    %v1766 = vadd.f32 %v1725, %v1765
    %1767 = vmatmul.f32.gmra.mxu0 %v1737
    %v1768 = vpop.f32.mrf.mxu0
    %v1769 = vadd.f32 %v1725, %v1768
    %1770 = vmatmul.f32.gmra.mxu0 %v1737
    %v1771 = vpop.f32.mrf.mxu0
    %v1772 = vadd.f32 %v1725, %v1771
    %1773 = vdwg.mxu0
    %v1774 = vtanh.pop %v1757
    %v1775 = vtanh.pop %v1760
    %v1776 = vtanh.pop %v1763
    %v1777 = vtanh.pop %v1766
    %v1778 = vtanh.pop %v1769
    %v1779 = vtanh.pop %v1772
    %v1781 = vperm.slane %v1720, 0
    %v1784 = vsel %vm367, %v1774, 0
    %v1787 = vsel %vm367, %v1775, 0
    %v1790 = vsel %vm367, %v1776, 0
    %v1793 = vsel %vm367, %v1777, 0
    %v1796 = vsel %vm367, %v1778, 0
    %v1799 = vsel %vm367, %v1779, 0
    %1801 = vmatpush.msra.mxu0 0.0
    %1802 = vmatpush.msra.mxu0 0.0
    %1803 = vmatpush.msra.mxu0 0.0
    %1804 = vmatpush.msra.mxu0 0.0
    %1805 = vmatpush.msra.mxu0 0.0
    %1806 = vmatpush.msra.mxu0 0.0
    %1807 = vmatpush.msra.mxu0 0.0
    %1808 = vmatpush.msra.mxu0 0.0
    %1809 = vmatpush.msra.mxu0 0.0
    %1810 = vmatpush.msra.mxu0 0.0
    %1811 = vmatpush.msra.mxu0 0.0
    %1812 = vmatpush.msra.mxu0 0.0
    %1813 = vmatpush.msra.mxu0 %v1719
    %1814 = vmatpush.msra.mxu0 %v1718
    %1815 = vmatpush.msra.mxu0 %v1717
    %1816 = vmatpush.msra.mxu0 %v1716
    %1817 = vmatmul.f32.gmra.mxu0 %v1784
    %v1818 = vpop.f32.mrf.mxu0
    %v1819 = vadd.f32 %v1781, %v1818
    %1820 = vmatmul.f32.gmra.mxu0 %v1787
    %v1821 = vpop.f32.mrf.mxu0
    %v1822 = vadd.f32 %v1781, %v1821
    %1823 = vmatmul.f32.gmra.mxu0 %v1790
    %v1824 = vpop.f32.mrf.mxu0
    %v1825 = vadd.f32 %v1781, %v1824
    %1826 = vmatmul.f32.gmra.mxu0 %v1793
    %v1827 = vpop.f32.mrf.mxu0
    %v1828 = vadd.f32 %v1781, %v1827
    %1829 = vmatmul.f32.gmra.mxu0 %v1796
    %v1830 = vpop.f32.mrf.mxu0
    %v1831 = vadd.f32 %v1781, %v1830
    %1832 = vmatmul.f32.gmra.mxu0 %v1799
    %v1833 = vpop.f32.mrf.mxu0
    %v1834 = vadd.f32 %v1781, %v1833
    %1835 = vdwg.mxu0
    %v1836 = vstv %s1723
    %v1837 = vmul.f32 %v1836, %v1819
    %v1838 = vmul.f32 %v1836, %v1822
    %v1839 = vmul.f32 %v1836, %v1825
    %v1840 = vmul.f32 %v1836, %v1828
    %v1841 = vmul.f32 %v1836, %v1831
    %v1842 = vmul.f32 %v1836, %v1834
    %v1843 = vadd.f32 %v1705, %v1837
    %v1844 = vadd.f32 %v1706, %v1838
    %v1845 = vadd.f32 %v1707, %v1839
    %v1846 = vadd.f32 %v1675, %v1840
    %v1847 = vadd.f32 %v1675, %v1841
    %v1848 = vadd.f32 %v1675, %v1842
    %1849 = vst.msk [vmem:[#allocation3] sm:$0xff] %vm367, %v1843
    %1850 = vst.msk [vmem:[#allocation3 + $0x8] sm:$0xff] %vm367, %v1844
    %1851 = vst.msk [vmem:[#allocation3 + $0x10] sm:$0xff] %vm367, %v1845
    %1852 = vst.msk [vmem:[#allocation3 + $0x18] sm:$0xff] %vm367, %v1846
    %1853 = vst.msk [vmem:[#allocation3 + $0x20] sm:$0xff] %vm367, %v1847
    %1854 = vst.msk [vmem:[#allocation3 + $0x28] sm:$0xff] %vm367, %v1848
    %s1855 = sld [smem:[#allocation8 + $0x1]]
    %s1856 = sld [smem:[#allocation8]]
    %s1857 = ssub.f32 %s1855, %s1856
    %v1859 = vsel %vm367, %v1843, 0
    %v1862 = vsel %vm367, %v1844, 0
    %v1865 = vsel %vm367, %v1845, 0
    %v1868 = vsel %vm367, %v1846, 0
    %v1871 = vsel %vm367, %v1847, 0
    %v1874 = vsel %vm367, %v1848, 0
    %1876 = vmatpush.msra.mxu0 0.0
    %1877 = vmatpush.msra.mxu0 0.0
    %1878 = vmatpush.msra.mxu0 0.0
    %1879 = vmatpush.msra.mxu0 0.0
    %1880 = vmatpush.msra.mxu0 0.0
    %1881 = vmatpush.msra.mxu0 0.0
    %1882 = vmatpush.msra.mxu0 0.0
    %1883 = vmatpush.msra.mxu0 0.0
    %1884 = vmatpush.msra.mxu0 0.0
    %1885 = vmatpush.msra.mxu0 0.0
    %1886 = vmatpush.msra.mxu0 0.0
    %1887 = vmatpush.msra.mxu0 0.0
    %1888 = vmatpush.msra.mxu0 %v1714
    %1889 = vmatpush.msra.mxu0 %v1713
    %1890 = vmatpush.msra.mxu0 %v1712
    %1891 = vmatpush.msra.mxu0 %v1711
    %1892 = vmatmul.f32.gmra.mxu0 %v1859
    %v1893 = vpop.f32.mrf.mxu0
    %v1894 = vadd.f32 %v1725, %v1893
    %1895 = vmatmul.f32.gmra.mxu0 %v1862
    %v1896 = vpop.f32.mrf.mxu0
    %v1897 = vadd.f32 %v1725, %v1896
    %1898 = vmatmul.f32.gmra.mxu0 %v1865
    %v1899 = vpop.f32.mrf.mxu0
    %v1900 = vadd.f32 %v1725, %v1899
    %1901 = vmatmul.f32.gmra.mxu0 %v1868
    %v1902 = vpop.f32.mrf.mxu0
    %v1903 = vadd.f32 %v1725, %v1902
    %1904 = vmatmul.f32.gmra.mxu0 %v1871
    %v1905 = vpop.f32.mrf.mxu0
    %v1906 = vadd.f32 %v1725, %v1905
    %1907 = vmatmul.f32.gmra.mxu0 %v1874
    %v1908 = vpop.f32.mrf.mxu0
    %v1909 = vadd.f32 %v1725, %v1908
    %1910 = vdwg.mxu0
    %v1911 = vtanh.pop %v1894
    %v1912 = vtanh.pop %v1897
    %v1913 = vtanh.pop %v1900
    %v1914 = vtanh.pop %v1903
    %v1915 = vtanh.pop %v1906
    %v1916 = vtanh.pop %v1909
    %v1918 = vsel %vm367, %v1911, 0
    %v1921 = vsel %vm367, %v1912, 0
    %v1924 = vsel %vm367, %v1913, 0
    %v1927 = vsel %vm367, %v1914, 0
    %v1930 = vsel %vm367, %v1915, 0
    %v1933 = vsel %vm367, %v1916, 0
    %1935 = vmatpush.msra.mxu0 0.0
    %1936 = vmatpush.msra.mxu0 0.0
    %1937 = vmatpush.msra.mxu0 0.0
    %1938 = vmatpush.msra.mxu0 0.0
    %1939 = vmatpush.msra.mxu0 0.0
    %1940 = vmatpush.msra.mxu0 0.0
    %1941 = vmatpush.msra.mxu0 0.0
    %1942 = vmatpush.msra.mxu0 0.0
    %1943 = vmatpush.msra.mxu0 0.0
    %1944 = vmatpush.msra.mxu0 0.0
    %1945 = vmatpush.msra.mxu0 0.0
    %1946 = vmatpush.msra.mxu0 0.0
    %1947 = vmatpush.msra.mxu0 %v1719
    %1948 = vmatpush.msra.mxu0 %v1718
    %1949 = vmatpush.msra.mxu0 %v1717
    %1950 = vmatpush.msra.mxu0 %v1716
    %1951 = vmatmul.f32.gmra.mxu0 %v1918
    %v1952 = vpop.f32.mrf.mxu0
    %v1953 = vadd.f32 %v1781, %v1952
    %1954 = vmatmul.f32.gmra.mxu0 %v1921
    %v1955 = vpop.f32.mrf.mxu0
    %v1956 = vadd.f32 %v1781, %v1955
    %1957 = vmatmul.f32.gmra.mxu0 %v1924
    %v1958 = vpop.f32.mrf.mxu0
    %v1959 = vadd.f32 %v1781, %v1958
    %1960 = vmatmul.f32.gmra.mxu0 %v1927
    %v1961 = vpop.f32.mrf.mxu0
    %v1962 = vadd.f32 %v1781, %v1961
    %1963 = vmatmul.f32.gmra.mxu0 %v1930
    %v1964 = vpop.f32.mrf.mxu0
    %v1965 = vadd.f32 %v1781, %v1964
    %1966 = vmatmul.f32.gmra.mxu0 %v1933
    %v1967 = vpop.f32.mrf.mxu0
    %v1968 = vadd.f32 %v1781, %v1967
    %1969 = vdwg.mxu0
    %v1970 = vstv %s1857
    %v1971 = vmul.f32 %v1970, %v1953
    %v1972 = vmul.f32 %v1970, %v1956
    %v1973 = vmul.f32 %v1970, %v1959
    %v1974 = vmul.f32 %v1970, %v1962
    %v1975 = vmul.f32 %v1970, %v1965
    %v1976 = vmul.f32 %v1970, %v1968
    %v1977 = vadd.f32 %v1843, %v1971
    %v1978 = vadd.f32 %v1844, %v1972
    %v1979 = vadd.f32 %v1845, %v1973
    %v1980 = vadd.f32 %v1846, %v1974
    %v1981 = vadd.f32 %v1847, %v1975
    %v1982 = vadd.f32 %v1848, %v1976
    %1983 = vst.msk [vmem:[#allocation3 + $0x30] sm:$0xff] %vm367, %v1977
    %1984 = vst.msk [vmem:[#allocation3 + $0x38] sm:$0xff] %vm367, %v1978
    %1985 = vst.msk [vmem:[#allocation3 + $0x40] sm:$0xff] %vm367, %v1979
    %1986 = vst.msk [vmem:[#allocation3 + $0x48] sm:$0xff] %vm367, %v1980
    %1987 = vst.msk [vmem:[#allocation3 + $0x50] sm:$0xff] %vm367, %v1981
    %1988 = vst.msk [vmem:[#allocation3 + $0x58] sm:$0xff] %vm367, %v1982
    %s1989 = sld [smem:[#allocation8 + $0x2]]
    %s1990 = sld [smem:[#allocation8 + $0x1]]
    %s1991 = ssub.f32 %s1989, %s1990
    %v1993 = vsel %vm367, %v1977, 0
    %v1996 = vsel %vm367, %v1978, 0
    %v1999 = vsel %vm367, %v1979, 0
    %v2002 = vsel %vm367, %v1980, 0
    %v2005 = vsel %vm367, %v1981, 0
    %v2008 = vsel %vm367, %v1982, 0
    %2010 = vmatpush.msra.mxu0 0.0
    %2011 = vmatpush.msra.mxu0 0.0
    %2012 = vmatpush.msra.mxu0 0.0
    %2013 = vmatpush.msra.mxu0 0.0
    %2014 = vmatpush.msra.mxu0 0.0
    %2015 = vmatpush.msra.mxu0 0.0
    %2016 = vmatpush.msra.mxu0 0.0
    %2017 = vmatpush.msra.mxu0 0.0
    %2018 = vmatpush.msra.mxu0 0.0
    %2019 = vmatpush.msra.mxu0 0.0
    %2020 = vmatpush.msra.mxu0 0.0
    %2021 = vmatpush.msra.mxu0 0.0
    %2022 = vmatpush.msra.mxu0 %v1714
    %2023 = vmatpush.msra.mxu0 %v1713
    %2024 = vmatpush.msra.mxu0 %v1712
    %2025 = vmatpush.msra.mxu0 %v1711
    %2026 = vmatmul.f32.gmra.mxu0 %v1993
    %v2027 = vpop.f32.mrf.mxu0
    %v2028 = vadd.f32 %v1725, %v2027
    %2029 = vmatmul.f32.gmra.mxu0 %v1996
    %v2030 = vpop.f32.mrf.mxu0
    %v2031 = vadd.f32 %v1725, %v2030
    %2032 = vmatmul.f32.gmra.mxu0 %v1999
    %v2033 = vpop.f32.mrf.mxu0
    %v2034 = vadd.f32 %v1725, %v2033
    %2035 = vmatmul.f32.gmra.mxu0 %v2002
    %v2036 = vpop.f32.mrf.mxu0
    %v2037 = vadd.f32 %v1725, %v2036
    %2038 = vmatmul.f32.gmra.mxu0 %v2005
    %v2039 = vpop.f32.mrf.mxu0
    %v2040 = vadd.f32 %v1725, %v2039
    %2041 = vmatmul.f32.gmra.mxu0 %v2008
    %v2042 = vpop.f32.mrf.mxu0
    %v2043 = vadd.f32 %v1725, %v2042
    %2044 = vdwg.mxu0
    %v2045 = vtanh.pop %v2028
    %v2046 = vtanh.pop %v2031
    %v2047 = vtanh.pop %v2034
    %v2048 = vtanh.pop %v2037
    %v2049 = vtanh.pop %v2040
    %v2050 = vtanh.pop %v2043
    %v2052 = vsel %vm367, %v2045, 0
    %v2055 = vsel %vm367, %v2046, 0
    %v2058 = vsel %vm367, %v2047, 0
    %v2061 = vsel %vm367, %v2048, 0
    %v2064 = vsel %vm367, %v2049, 0
    %v2067 = vsel %vm367, %v2050, 0
    %2069 = vmatpush.msra.mxu0 0.0
    %2070 = vmatpush.msra.mxu0 0.0
    %2071 = vmatpush.msra.mxu0 0.0
    %2072 = vmatpush.msra.mxu0 0.0
    %2073 = vmatpush.msra.mxu0 0.0
    %2074 = vmatpush.msra.mxu0 0.0
    %2075 = vmatpush.msra.mxu0 0.0
    %2076 = vmatpush.msra.mxu0 0.0
    %2077 = vmatpush.msra.mxu0 0.0
    %2078 = vmatpush.msra.mxu0 0.0
    %2079 = vmatpush.msra.mxu0 0.0
    %2080 = vmatpush.msra.mxu0 0.0
    %2081 = vmatpush.msra.mxu0 %v1719
    %2082 = vmatpush.msra.mxu0 %v1718
    %2083 = vmatpush.msra.mxu0 %v1717
    %2084 = vmatpush.msra.mxu0 %v1716
    %2085 = vmatmul.f32.gmra.mxu0 %v2052
    %v2086 = vpop.f32.mrf.mxu0
    %v2087 = vadd.f32 %v1781, %v2086
    %2088 = vmatmul.f32.gmra.mxu0 %v2055
    %v2089 = vpop.f32.mrf.mxu0
    %v2090 = vadd.f32 %v1781, %v2089
    %2091 = vmatmul.f32.gmra.mxu0 %v2058
    %v2092 = vpop.f32.mrf.mxu0
    %v2093 = vadd.f32 %v1781, %v2092
    %2094 = vmatmul.f32.gmra.mxu0 %v2061
    %v2095 = vpop.f32.mrf.mxu0
    %v2096 = vadd.f32 %v1781, %v2095
    %2097 = vmatmul.f32.gmra.mxu0 %v2064
    %v2098 = vpop.f32.mrf.mxu0
    %v2099 = vadd.f32 %v1781, %v2098
    %2100 = vmatmul.f32.gmra.mxu0 %v2067
    %v2101 = vpop.f32.mrf.mxu0
    %v2102 = vadd.f32 %v1781, %v2101
    %2103 = vdwg.mxu0
    %v2104 = vstv %s1991
    %v2105 = vmul.f32 %v2104, %v2087
    %v2106 = vmul.f32 %v2104, %v2090
    %v2107 = vmul.f32 %v2104, %v2093
    %v2108 = vmul.f32 %v2104, %v2096
    %v2109 = vmul.f32 %v2104, %v2099
    %v2110 = vmul.f32 %v2104, %v2102
    %v2111 = vadd.f32 %v1977, %v2105
    %v2112 = vadd.f32 %v1978, %v2106
    %v2113 = vadd.f32 %v1979, %v2107
    %v2114 = vadd.f32 %v1980, %v2108
    %v2115 = vadd.f32 %v1981, %v2109
    %v2116 = vadd.f32 %v1982, %v2110
    %2117 = vst.msk [vmem:[#allocation3 + $0x60] sm:$0xff] %vm367, %v2111
    %2118 = vst.msk [vmem:[#allocation3 + $0x68] sm:$0xff] %vm367, %v2112
    %2119 = vst.msk [vmem:[#allocation3 + $0x70] sm:$0xff] %vm367, %v2113
    %2120 = vst.msk [vmem:[#allocation3 + $0x78] sm:$0xff] %vm367, %v2114
    %2121 = vst.msk [vmem:[#allocation3 + $0x80] sm:$0xff] %vm367, %v2115
    %2122 = vst.msk [vmem:[#allocation3 + $0x88] sm:$0xff] %vm367, %v2116
    %s2123 = sld [smem:[#allocation8 + $0x3]]
    %s2124 = sld [smem:[#allocation8 + $0x2]]
    %s2125 = ssub.f32 %s2123, %s2124
    %v2127 = vsel %vm367, %v2111, 0
    %v2130 = vsel %vm367, %v2112, 0
    %v2133 = vsel %vm367, %v2113, 0
    %v2136 = vsel %vm367, %v2114, 0
    %v2139 = vsel %vm367, %v2115, 0
    %v2142 = vsel %vm367, %v2116, 0
    %2144 = vmatpush.msra.mxu0 0.0
    %2145 = vmatpush.msra.mxu0 0.0
    %2146 = vmatpush.msra.mxu0 0.0
    %2147 = vmatpush.msra.mxu0 0.0
    %2148 = vmatpush.msra.mxu0 0.0
    %2149 = vmatpush.msra.mxu0 0.0
    %2150 = vmatpush.msra.mxu0 0.0
    %2151 = vmatpush.msra.mxu0 0.0
    %2152 = vmatpush.msra.mxu0 0.0
    %2153 = vmatpush.msra.mxu0 0.0
    %2154 = vmatpush.msra.mxu0 0.0
    %2155 = vmatpush.msra.mxu0 0.0
    %2156 = vmatpush.msra.mxu0 %v1714
    %2157 = vmatpush.msra.mxu0 %v1713
    %2158 = vmatpush.msra.mxu0 %v1712
    %2159 = vmatpush.msra.mxu0 %v1711
    %2160 = vmatmul.f32.gmra.mxu0 %v2127
    %v2161 = vpop.f32.mrf.mxu0
    %v2162 = vadd.f32 %v1725, %v2161
    %2163 = vmatmul.f32.gmra.mxu0 %v2130
    %v2164 = vpop.f32.mrf.mxu0
    %v2165 = vadd.f32 %v1725, %v2164
    %2166 = vmatmul.f32.gmra.mxu0 %v2133
    %v2167 = vpop.f32.mrf.mxu0
    %v2168 = vadd.f32 %v1725, %v2167
    %2169 = vmatmul.f32.gmra.mxu0 %v2136
    %v2170 = vpop.f32.mrf.mxu0
    %v2171 = vadd.f32 %v1725, %v2170
    %2172 = vmatmul.f32.gmra.mxu0 %v2139
    %v2173 = vpop.f32.mrf.mxu0
    %v2174 = vadd.f32 %v1725, %v2173
    %2175 = vmatmul.f32.gmra.mxu0 %v2142
    %v2176 = vpop.f32.mrf.mxu0
    %v2177 = vadd.f32 %v1725, %v2176
    %2178 = vdwg.mxu0
    %v2179 = vtanh.pop %v2162
    %v2180 = vtanh.pop %v2165
    %v2181 = vtanh.pop %v2168
    %v2182 = vtanh.pop %v2171
    %v2183 = vtanh.pop %v2174
    %v2184 = vtanh.pop %v2177
    %v2186 = vsel %vm367, %v2179, 0
    %v2189 = vsel %vm367, %v2180, 0
    %v2192 = vsel %vm367, %v2181, 0
    %v2195 = vsel %vm367, %v2182, 0
    %v2198 = vsel %vm367, %v2183, 0
    %v2201 = vsel %vm367, %v2184, 0
    %2203 = vmatpush.msra.mxu0 0.0
    %2204 = vmatpush.msra.mxu0 0.0
    %2205 = vmatpush.msra.mxu0 0.0
    %2206 = vmatpush.msra.mxu0 0.0
    %2207 = vmatpush.msra.mxu0 0.0
    %2208 = vmatpush.msra.mxu0 0.0
    %2209 = vmatpush.msra.mxu0 0.0
    %2210 = vmatpush.msra.mxu0 0.0
    %2211 = vmatpush.msra.mxu0 0.0
    %2212 = vmatpush.msra.mxu0 0.0
    %2213 = vmatpush.msra.mxu0 0.0
    %2214 = vmatpush.msra.mxu0 0.0
    %2215 = vmatpush.msra.mxu0 %v1719
    %2216 = vmatpush.msra.mxu0 %v1718
    %2217 = vmatpush.msra.mxu0 %v1717
    %2218 = vmatpush.msra.mxu0 %v1716
    %2219 = vmatmul.f32.gmra.mxu0 %v2186
    %v2220 = vpop.f32.mrf.mxu0
    %v2221 = vadd.f32 %v1781, %v2220
    %2222 = vmatmul.f32.gmra.mxu0 %v2189
    %v2223 = vpop.f32.mrf.mxu0
    %v2224 = vadd.f32 %v1781, %v2223
    %2225 = vmatmul.f32.gmra.mxu0 %v2192
    %v2226 = vpop.f32.mrf.mxu0
    %v2227 = vadd.f32 %v1781, %v2226
    %2228 = vmatmul.f32.gmra.mxu0 %v2195
    %v2229 = vpop.f32.mrf.mxu0
    %v2230 = vadd.f32 %v1781, %v2229
    %2231 = vmatmul.f32.gmra.mxu0 %v2198
    %v2232 = vpop.f32.mrf.mxu0
    %v2233 = vadd.f32 %v1781, %v2232
    %2234 = vmatmul.f32.gmra.mxu0 %v2201
    %v2235 = vpop.f32.mrf.mxu0
    %v2236 = vadd.f32 %v1781, %v2235
    %2237 = vdwg.mxu0
    %v2238 = vstv %s2125
    %v2239 = vmul.f32 %v2238, %v2221
    %v2240 = vmul.f32 %v2238, %v2224
    %v2241 = vmul.f32 %v2238, %v2227
    %v2242 = vmul.f32 %v2238, %v2230
    %v2243 = vmul.f32 %v2238, %v2233
    %v2244 = vmul.f32 %v2238, %v2236
    %v2245 = vadd.f32 %v2111, %v2239
    %v2246 = vadd.f32 %v2112, %v2240
    %v2247 = vadd.f32 %v2113, %v2241
    %v2248 = vadd.f32 %v2114, %v2242
    %v2249 = vadd.f32 %v2115, %v2243
    %v2250 = vadd.f32 %v2116, %v2244
    %2251 = vst.msk [vmem:[#allocation3 + $0x90] sm:$0xff] %vm367, %v2245
    %2252 = vst.msk [vmem:[#allocation3 + $0x98] sm:$0xff] %vm367, %v2246
    %2253 = vst.msk [vmem:[#allocation3 + $0xa0] sm:$0xff] %vm367, %v2247
    %2254 = vst.msk [vmem:[#allocation3 + $0xa8] sm:$0xff] %vm367, %v2248
    %2255 = vst.msk [vmem:[#allocation3 + $0xb0] sm:$0xff] %vm367, %v2249
    %2256 = vst.msk [vmem:[#allocation3 + $0xb8] sm:$0xff] %vm367, %v2250
    %s2257 = sld [smem:[#allocation8 + $0x4]]
    %s2258 = sld [smem:[#allocation8 + $0x3]]
    %s2259 = ssub.f32 %s2257, %s2258
    %v2261 = vsel %vm367, %v2245, 0
    %v2264 = vsel %vm367, %v2246, 0
    %v2267 = vsel %vm367, %v2247, 0
    %v2270 = vsel %vm367, %v2248, 0
    %v2273 = vsel %vm367, %v2249, 0
    %v2276 = vsel %vm367, %v2250, 0
    %2278 = vmatpush.msra.mxu0 0.0
    %2279 = vmatpush.msra.mxu0 0.0
    %2280 = vmatpush.msra.mxu0 0.0
    %2281 = vmatpush.msra.mxu0 0.0
    %2282 = vmatpush.msra.mxu0 0.0
    %2283 = vmatpush.msra.mxu0 0.0
    %2284 = vmatpush.msra.mxu0 0.0
    %2285 = vmatpush.msra.mxu0 0.0
    %2286 = vmatpush.msra.mxu0 0.0
    %2287 = vmatpush.msra.mxu0 0.0
    %2288 = vmatpush.msra.mxu0 0.0
    %2289 = vmatpush.msra.mxu0 0.0
    %2290 = vmatpush.msra.mxu0 %v1714
    %2291 = vmatpush.msra.mxu0 %v1713
    %2292 = vmatpush.msra.mxu0 %v1712
    %2293 = vmatpush.msra.mxu0 %v1711
    %2294 = vmatmul.f32.gmra.mxu0 %v2261
    %v2295 = vpop.f32.mrf.mxu0
    %v2296 = vadd.f32 %v1725, %v2295
    %2297 = vmatmul.f32.gmra.mxu0 %v2264
    %v2298 = vpop.f32.mrf.mxu0
    %v2299 = vadd.f32 %v1725, %v2298
    %2300 = vmatmul.f32.gmra.mxu0 %v2267
    %v2301 = vpop.f32.mrf.mxu0
    %v2302 = vadd.f32 %v1725, %v2301
    %2303 = vmatmul.f32.gmra.mxu0 %v2270
    %v2304 = vpop.f32.mrf.mxu0
    %v2305 = vadd.f32 %v1725, %v2304
    %2306 = vmatmul.f32.gmra.mxu0 %v2273
    %v2307 = vpop.f32.mrf.mxu0
    %v2308 = vadd.f32 %v1725, %v2307
    %2309 = vmatmul.f32.gmra.mxu0 %v2276
    %v2310 = vpop.f32.mrf.mxu0
    %v2311 = vadd.f32 %v1725, %v2310
    %2312 = vdwg.mxu0
    %v2313 = vtanh.pop %v2296
    %v2314 = vtanh.pop %v2299
    %v2315 = vtanh.pop %v2302
    %v2316 = vtanh.pop %v2305
    %v2317 = vtanh.pop %v2308
    %v2318 = vtanh.pop %v2311
    %v2320 = vsel %vm367, %v2313, 0
    %v2323 = vsel %vm367, %v2314, 0
    %v2326 = vsel %vm367, %v2315, 0
    %v2329 = vsel %vm367, %v2316, 0
    %v2332 = vsel %vm367, %v2317, 0
    %v2335 = vsel %vm367, %v2318, 0
    %2337 = vmatpush.msra.mxu0 0.0
    %2338 = vmatpush.msra.mxu0 0.0
    %2339 = vmatpush.msra.mxu0 0.0
    %2340 = vmatpush.msra.mxu0 0.0
    %2341 = vmatpush.msra.mxu0 0.0
    %2342 = vmatpush.msra.mxu0 0.0
    %2343 = vmatpush.msra.mxu0 0.0
    %2344 = vmatpush.msra.mxu0 0.0
    %2345 = vmatpush.msra.mxu0 0.0
    %2346 = vmatpush.msra.mxu0 0.0
    %2347 = vmatpush.msra.mxu0 0.0
    %2348 = vmatpush.msra.mxu0 0.0
    %2349 = vmatpush.msra.mxu0 %v1719
    %2350 = vmatpush.msra.mxu0 %v1718
    %2351 = vmatpush.msra.mxu0 %v1717
    %2352 = vmatpush.msra.mxu0 %v1716
    %2353 = vmatmul.f32.gmra.mxu0 %v2320
    %v2354 = vpop.f32.mrf.mxu0
    %v2355 = vadd.f32 %v1781, %v2354
    %2356 = vmatmul.f32.gmra.mxu0 %v2323
    %v2357 = vpop.f32.mrf.mxu0
    %v2358 = vadd.f32 %v1781, %v2357
    %2359 = vmatmul.f32.gmra.mxu0 %v2326
    %v2360 = vpop.f32.mrf.mxu0
    %v2361 = vadd.f32 %v1781, %v2360
    %2362 = vmatmul.f32.gmra.mxu0 %v2329
    %v2363 = vpop.f32.mrf.mxu0
    %v2364 = vadd.f32 %v1781, %v2363
    %2365 = vmatmul.f32.gmra.mxu0 %v2332
    %v2366 = vpop.f32.mrf.mxu0
    %v2367 = vadd.f32 %v1781, %v2366
    %2368 = vmatmul.f32.gmra.mxu0 %v2335
    %v2369 = vpop.f32.mrf.mxu0
    %v2370 = vadd.f32 %v1781, %v2369
    %2371 = vdwg.mxu0
    %v2372 = vstv %s2259
    %v2373 = vmul.f32 %v2372, %v2355
    %v2374 = vmul.f32 %v2372, %v2358
    %v2375 = vmul.f32 %v2372, %v2361
    %v2376 = vmul.f32 %v2372, %v2364
    %v2377 = vmul.f32 %v2372, %v2367
    %v2378 = vmul.f32 %v2372, %v2370
    %v2379 = vadd.f32 %v2245, %v2373
    %v2380 = vadd.f32 %v2246, %v2374
    %v2381 = vadd.f32 %v2247, %v2375
    %v2382 = vadd.f32 %v2248, %v2376
    %v2383 = vadd.f32 %v2249, %v2377
    %v2384 = vadd.f32 %v2250, %v2378
    %2385 = vst.msk [vmem:[#allocation3 + $0xc0] sm:$0xff] %vm367, %v2379
    %2386 = vst.msk [vmem:[#allocation3 + $0xc8] sm:$0xff] %vm367, %v2380
    %2387 = vst.msk [vmem:[#allocation3 + $0xd0] sm:$0xff] %vm367, %v2381
    %2388 = vst.msk [vmem:[#allocation3 + $0xd8] sm:$0xff] %vm367, %v2382
    %2389 = vst.msk [vmem:[#allocation3 + $0xe0] sm:$0xff] %vm367, %v2383
    %2390 = vst.msk [vmem:[#allocation3 + $0xe8] sm:$0xff] %vm367, %v2384
    %s2391 = sld [smem:[#allocation8 + $0x5]]
    %s2392 = sld [smem:[#allocation8 + $0x4]]
    %s2393 = ssub.f32 %s2391, %s2392
    %v2395 = vsel %vm367, %v2379, 0
    %v2398 = vsel %vm367, %v2380, 0
    %v2401 = vsel %vm367, %v2381, 0
    %v2404 = vsel %vm367, %v2382, 0
    %v2407 = vsel %vm367, %v2383, 0
    %v2410 = vsel %vm367, %v2384, 0
    %2412 = vmatpush.msra.mxu0 0.0
    %2413 = vmatpush.msra.mxu0 0.0
    %2414 = vmatpush.msra.mxu0 0.0
    %2415 = vmatpush.msra.mxu0 0.0
    %2416 = vmatpush.msra.mxu0 0.0
    %2417 = vmatpush.msra.mxu0 0.0
    %2418 = vmatpush.msra.mxu0 0.0
    %2419 = vmatpush.msra.mxu0 0.0
    %2420 = vmatpush.msra.mxu0 0.0
    %2421 = vmatpush.msra.mxu0 0.0
    %2422 = vmatpush.msra.mxu0 0.0
    %2423 = vmatpush.msra.mxu0 0.0
    %2424 = vmatpush.msra.mxu0 %v1714
    %2425 = vmatpush.msra.mxu0 %v1713
    %2426 = vmatpush.msra.mxu0 %v1712
    %2427 = vmatpush.msra.mxu0 %v1711
    %2428 = vmatmul.f32.gmra.mxu0 %v2395
    %v2429 = vpop.f32.mrf.mxu0
    %v2430 = vadd.f32 %v1725, %v2429
    %2431 = vmatmul.f32.gmra.mxu0 %v2398
    %v2432 = vpop.f32.mrf.mxu0
    %v2433 = vadd.f32 %v1725, %v2432
    %2434 = vmatmul.f32.gmra.mxu0 %v2401
    %v2435 = vpop.f32.mrf.mxu0
    %v2436 = vadd.f32 %v1725, %v2435
    %2437 = vmatmul.f32.gmra.mxu0 %v2404
    %v2438 = vpop.f32.mrf.mxu0
    %v2439 = vadd.f32 %v1725, %v2438
    %2440 = vmatmul.f32.gmra.mxu0 %v2407
    %v2441 = vpop.f32.mrf.mxu0
    %v2442 = vadd.f32 %v1725, %v2441
    %2443 = vmatmul.f32.gmra.mxu0 %v2410
    %v2444 = vpop.f32.mrf.mxu0
    %v2445 = vadd.f32 %v1725, %v2444
    %2446 = vdwg.mxu0
    %v2447 = vtanh.pop %v2430
    %v2448 = vtanh.pop %v2433
    %v2449 = vtanh.pop %v2436
    %v2450 = vtanh.pop %v2439
    %v2451 = vtanh.pop %v2442
    %v2452 = vtanh.pop %v2445
    %v2454 = vsel %vm367, %v2447, 0
    %v2457 = vsel %vm367, %v2448, 0
    %v2460 = vsel %vm367, %v2449, 0
    %v2463 = vsel %vm367, %v2450, 0
    %v2466 = vsel %vm367, %v2451, 0
    %v2469 = vsel %vm367, %v2452, 0
    %2471 = vmatpush.msra.mxu0 0.0
    %2472 = vmatpush.msra.mxu0 0.0
    %2473 = vmatpush.msra.mxu0 0.0
    %2474 = vmatpush.msra.mxu0 0.0
    %2475 = vmatpush.msra.mxu0 0.0
    %2476 = vmatpush.msra.mxu0 0.0
    %2477 = vmatpush.msra.mxu0 0.0
    %2478 = vmatpush.msra.mxu0 0.0
    %2479 = vmatpush.msra.mxu0 0.0
    %2480 = vmatpush.msra.mxu0 0.0
    %2481 = vmatpush.msra.mxu0 0.0
    %2482 = vmatpush.msra.mxu0 0.0
    %2483 = vmatpush.msra.mxu0 %v1719
    %2484 = vmatpush.msra.mxu0 %v1718
    %2485 = vmatpush.msra.mxu0 %v1717
    %2486 = vmatpush.msra.mxu0 %v1716
    %2487 = vmatmul.f32.gmra.mxu0 %v2454
    %v2488 = vpop.f32.mrf.mxu0
    %v2489 = vadd.f32 %v1781, %v2488
    %2490 = vmatmul.f32.gmra.mxu0 %v2457
    %v2491 = vpop.f32.mrf.mxu0
    %v2492 = vadd.f32 %v1781, %v2491
    %2493 = vmatmul.f32.gmra.mxu0 %v2460
    %v2494 = vpop.f32.mrf.mxu0
    %v2495 = vadd.f32 %v1781, %v2494
    %2496 = vmatmul.f32.gmra.mxu0 %v2463
    %v2497 = vpop.f32.mrf.mxu0
    %v2498 = vadd.f32 %v1781, %v2497
    %2499 = vmatmul.f32.gmra.mxu0 %v2466
    %v2500 = vpop.f32.mrf.mxu0
    %v2501 = vadd.f32 %v1781, %v2500
    %2502 = vmatmul.f32.gmra.mxu0 %v2469
    %v2503 = vpop.f32.mrf.mxu0
    %v2504 = vadd.f32 %v1781, %v2503
    %2505 = vdwg.mxu0
    %v2506 = vstv %s2393
    %v2507 = vmul.f32 %v2506, %v2489
    %v2508 = vmul.f32 %v2506, %v2492
    %v2509 = vmul.f32 %v2506, %v2495
    %v2510 = vmul.f32 %v2506, %v2498
    %v2511 = vmul.f32 %v2506, %v2501
    %v2512 = vmul.f32 %v2506, %v2504
    %v2513 = vadd.f32 %v2379, %v2507
    %v2514 = vadd.f32 %v2380, %v2508
    %v2515 = vadd.f32 %v2381, %v2509
    %v2516 = vadd.f32 %v2382, %v2510
    %v2517 = vadd.f32 %v2383, %v2511
    %v2518 = vadd.f32 %v2384, %v2512
    %2519 = vst.msk [vmem:[#allocation3 + $0xf0] sm:$0xff] %vm367, %v2513
    %2520 = vst.msk [vmem:[#allocation3 + $0xf8] sm:$0xff] %vm367, %v2514
    %2521 = vst.msk [vmem:[#allocation3 + $0x100] sm:$0xff] %vm367, %v2515
    %2522 = vst.msk [vmem:[#allocation3 + $0x108] sm:$0xff] %vm367, %v2516
    %2523 = vst.msk [vmem:[#allocation3 + $0x110] sm:$0xff] %vm367, %v2517
    %2524 = vst.msk [vmem:[#allocation3 + $0x118] sm:$0xff] %vm367, %v2518
    %v2525 = vld [vmem:[#allocation3] sm:$0xff]
    %v2526 = vld [vmem:[#allocation3 + $0x8] sm:$0xff]
    %v2527 = vld [vmem:[#allocation3 + $0x10] sm:$0xff]
    %v2528 = vld [vmem:[#allocation3 + $0x18] sm:$0xff]
    %v2529 = vld [vmem:[#allocation3 + $0x20] sm:$0xff]
    %v2530 = vld [vmem:[#allocation3 + $0x28] sm:$0xff]
    %v2531 = vld [vmem:[#allocation3 + $0x30] sm:$0xff]
    %v2532 = vld [vmem:[#allocation3 + $0x38] sm:$0xff]
    %v2533 = vld [vmem:[#allocation3 + $0x40] sm:$0xff]
    %v2534 = vld [vmem:[#allocation3 + $0x48] sm:$0xff]
    %v2535 = vld [vmem:[#allocation3 + $0x50] sm:$0xff]
    %v2536 = vld [vmem:[#allocation3 + $0x58] sm:$0xff]
    %v2537 = vld [vmem:[#allocation3 + $0x60] sm:$0xff]
    %v2538 = vld [vmem:[#allocation3 + $0x68] sm:$0xff]
    %v2539 = vld [vmem:[#allocation3 + $0x70] sm:$0xff]
    %v2540 = vld [vmem:[#allocation3 + $0x78] sm:$0xff]
    %v2541 = vld [vmem:[#allocation3 + $0x80] sm:$0xff]
    %v2542 = vld [vmem:[#allocation3 + $0x88] sm:$0xff]
    %v2543 = vld [vmem:[#allocation3 + $0x90] sm:$0xff]
    %v2544 = vld [vmem:[#allocation3 + $0x98] sm:$0xff]
    %v2545 = vld [vmem:[#allocation3 + $0xa0] sm:$0xff]
    %v2546 = vld [vmem:[#allocation3 + $0xa8] sm:$0xff]
    %v2547 = vld [vmem:[#allocation3 + $0xb0] sm:$0xff]
    %v2548 = vld [vmem:[#allocation3 + $0xb8] sm:$0xff]
    %v2549 = vld [vmem:[#allocation3 + $0xc0] sm:$0xff]
    %v2550 = vld [vmem:[#allocation3 + $0xc8] sm:$0xff]
    %v2551 = vld [vmem:[#allocation3 + $0xd0] sm:$0xff]
    %v2552 = vld [vmem:[#allocation3 + $0xd8] sm:$0xff]
    %v2553 = vld [vmem:[#allocation3 + $0xe0] sm:$0xff]
    %v2554 = vld [vmem:[#allocation3 + $0xe8] sm:$0xff]
    %v2555 = vld [vmem:[#allocation3 + $0xf0] sm:$0xff]
    %v2556 = vld [vmem:[#allocation3 + $0xf8] sm:$0xff]
    %v2557 = vld [vmem:[#allocation3 + $0x100] sm:$0xff]
    %v2558 = vld [vmem:[#allocation3 + $0x108] sm:$0xff]
    %v2559 = vld [vmem:[#allocation3 + $0x110] sm:$0xff]
    %v2560 = vld [vmem:[#allocation3 + $0x118] sm:$0xff]
    %v2561 = vld [vmem:[%s18] sm:$0xff]
    %v2562 = vld [vmem:[%s18 + $0x8] sm:$0xff]
    %v2563 = vld [vmem:[%s18 + $0x10] sm:$0xff]
    %v2564 = vld [vmem:[%s18 + $0x18] sm:$0xff]
    %v2565 = vld [vmem:[%s19] sm:$0x1]
    %v2567 = vperm.slane %v2565, 0
    %v2570 = vsel %vm367, %v2525, 0
    %v2573 = vsel %vm367, %v2526, 0
    %v2576 = vsel %vm367, %v2527, 0
    %v2579 = vsel %vm367, %v2528, 0
    %v2582 = vsel %vm367, %v2529, 0
    %v2585 = vsel %vm367, %v2530, 0
    %v2588 = vsel %vm367, %v2531, 0
    %v2591 = vsel %vm367, %v2532, 0
    %v2594 = vsel %vm367, %v2533, 0
    %v2597 = vsel %vm367, %v2534, 0
    %v2600 = vsel %vm367, %v2535, 0
    %v2603 = vsel %vm367, %v2536, 0
    %v2606 = vsel %vm367, %v2537, 0
    %v2609 = vsel %vm367, %v2538, 0
    %v2612 = vsel %vm367, %v2539, 0
    %v2615 = vsel %vm367, %v2540, 0
    %v2618 = vsel %vm367, %v2541, 0
    %v2621 = vsel %vm367, %v2542, 0
    %v2624 = vsel %vm367, %v2543, 0
    %v2627 = vsel %vm367, %v2544, 0
    %v2630 = vsel %vm367, %v2545, 0
    %v2633 = vsel %vm367, %v2546, 0
    %v2636 = vsel %vm367, %v2547, 0
    %v2639 = vsel %vm367, %v2548, 0
    %v2642 = vsel %vm367, %v2549, 0
    %v2645 = vsel %vm367, %v2550, 0
    %v2648 = vsel %vm367, %v2551, 0
    %v2651 = vsel %vm367, %v2552, 0
    %v2654 = vsel %vm367, %v2553, 0
    %v2657 = vsel %vm367, %v2554, 0
    %v2660 = vsel %vm367, %v2555, 0
    %v2663 = vsel %vm367, %v2556, 0
    %v2666 = vsel %vm367, %v2557, 0
    %v2669 = vsel %vm367, %v2558, 0
    %v2672 = vsel %vm367, %v2559, 0
    %v2675 = vsel %vm367, %v2560, 0
    %2677 = vmatpush.msra.mxu0 0.0
    %2678 = vmatpush.msra.mxu0 0.0
    %2679 = vmatpush.msra.mxu0 0.0
    %2680 = vmatpush.msra.mxu0 0.0
    %2681 = vmatpush.msra.mxu0 0.0
    %2682 = vmatpush.msra.mxu0 0.0
    %2683 = vmatpush.msra.mxu0 0.0
    %2684 = vmatpush.msra.mxu0 0.0
    %2685 = vmatpush.msra.mxu0 0.0
    %2686 = vmatpush.msra.mxu0 0.0
    %2687 = vmatpush.msra.mxu0 0.0
    %2688 = vmatpush.msra.mxu0 0.0
    %2689 = vmatpush.msra.mxu0 %v2564
    %2690 = vmatpush.msra.mxu0 %v2563
    %2691 = vmatpush.msra.mxu0 %v2562
    %2692 = vmatpush.msra.mxu0 %v2561
    %2693 = vmatmul.f32.gmra.mxu0 %v2570
    %v2694 = vpop.f32.mrf.mxu0
    %v2695 = vadd.f32 %v2567, %v2694
    %2696 = vmatmul.f32.gmra.mxu0 %v2573
    %v2697 = vpop.f32.mrf.mxu0
    %v2698 = vadd.f32 %v2567, %v2697
    %2699 = vmatmul.f32.gmra.mxu0 %v2576
    %v2700 = vpop.f32.mrf.mxu0
    %v2701 = vadd.f32 %v2567, %v2700
    %2702 = vmatmul.f32.gmra.mxu0 %v2579
    %v2703 = vpop.f32.mrf.mxu0
    %v2704 = vadd.f32 %v2567, %v2703
    %2705 = vmatmul.f32.gmra.mxu0 %v2582
    %v2706 = vpop.f32.mrf.mxu0
    %v2707 = vadd.f32 %v2567, %v2706
    %2708 = vmatmul.f32.gmra.mxu0 %v2585
    %v2709 = vpop.f32.mrf.mxu0
    %v2710 = vadd.f32 %v2567, %v2709
    %2711 = vmatmul.f32.gmra.mxu0 %v2588
    %v2712 = vpop.f32.mrf.mxu0
    %v2713 = vadd.f32 %v2567, %v2712
    %2714 = vmatmul.f32.gmra.mxu0 %v2591
    %v2715 = vpop.f32.mrf.mxu0
    %v2716 = vadd.f32 %v2567, %v2715
    %2717 = vmatmul.f32.gmra.mxu0 %v2594
    %v2718 = vpop.f32.mrf.mxu0
    %v2719 = vadd.f32 %v2567, %v2718
    %2720 = vmatmul.f32.gmra.mxu0 %v2597
    %v2721 = vpop.f32.mrf.mxu0
    %v2722 = vadd.f32 %v2567, %v2721
    %2723 = vmatmul.f32.gmra.mxu0 %v2600
    %v2724 = vpop.f32.mrf.mxu0
    %v2725 = vadd.f32 %v2567, %v2724
    %2726 = vmatmul.f32.gmra.mxu0 %v2603
    %v2727 = vpop.f32.mrf.mxu0
    %v2728 = vadd.f32 %v2567, %v2727
    %2729 = vmatmul.f32.gmra.mxu0 %v2606
    %v2730 = vpop.f32.mrf.mxu0
    %v2731 = vadd.f32 %v2567, %v2730
    %2732 = vmatmul.f32.gmra.mxu0 %v2609
    %v2733 = vpop.f32.mrf.mxu0
    %v2734 = vadd.f32 %v2567, %v2733
    %2735 = vmatmul.f32.gmra.mxu0 %v2612
    %v2736 = vpop.f32.mrf.mxu0
    %v2737 = vadd.f32 %v2567, %v2736
    %2738 = vmatmul.f32.gmra.mxu0 %v2615
    %v2739 = vpop.f32.mrf.mxu0
    %v2740 = vadd.f32 %v2567, %v2739
    %2741 = vmatmul.f32.gmra.mxu0 %v2618
    %v2742 = vpop.f32.mrf.mxu0
    %v2743 = vadd.f32 %v2567, %v2742
    %2744 = vmatmul.f32.gmra.mxu0 %v2621
    %v2745 = vpop.f32.mrf.mxu0
    %v2746 = vadd.f32 %v2567, %v2745
    %2747 = vmatmul.f32.gmra.mxu0 %v2624
    %v2748 = vpop.f32.mrf.mxu0
    %v2749 = vadd.f32 %v2567, %v2748
    %2750 = vmatmul.f32.gmra.mxu0 %v2627
    %v2751 = vpop.f32.mrf.mxu0
    %v2752 = vadd.f32 %v2567, %v2751
    %2753 = vmatmul.f32.gmra.mxu0 %v2630
    %v2754 = vpop.f32.mrf.mxu0
    %v2755 = vadd.f32 %v2567, %v2754
    %2756 = vmatmul.f32.gmra.mxu0 %v2633
    %v2757 = vpop.f32.mrf.mxu0
    %v2758 = vadd.f32 %v2567, %v2757
    %2759 = vmatmul.f32.gmra.mxu0 %v2636
    %v2760 = vpop.f32.mrf.mxu0
    %v2761 = vadd.f32 %v2567, %v2760
    %2762 = vmatmul.f32.gmra.mxu0 %v2639
    %v2763 = vpop.f32.mrf.mxu0
    %v2764 = vadd.f32 %v2567, %v2763
    %2765 = vmatmul.f32.gmra.mxu0 %v2642
    %v2766 = vpop.f32.mrf.mxu0
    %v2767 = vadd.f32 %v2567, %v2766
    %2768 = vmatmul.f32.gmra.mxu0 %v2645
    %v2769 = vpop.f32.mrf.mxu0
    %v2770 = vadd.f32 %v2567, %v2769
    %2771 = vmatmul.f32.gmra.mxu0 %v2648
    %v2772 = vpop.f32.mrf.mxu0
    %v2773 = vadd.f32 %v2567, %v2772
    %2774 = vmatmul.f32.gmra.mxu0 %v2651
    %v2775 = vpop.f32.mrf.mxu0
    %v2776 = vadd.f32 %v2567, %v2775
    %2777 = vmatmul.f32.gmra.mxu0 %v2654
    %v2778 = vpop.f32.mrf.mxu0
    %v2779 = vadd.f32 %v2567, %v2778
    %2780 = vmatmul.f32.gmra.mxu0 %v2657
    %v2781 = vpop.f32.mrf.mxu0
    %v2782 = vadd.f32 %v2567, %v2781
    %2783 = vmatmul.f32.gmra.mxu0 %v2660
    %v2784 = vpop.f32.mrf.mxu0
    %v2785 = vadd.f32 %v2567, %v2784
    %2786 = vmatmul.f32.gmra.mxu0 %v2663
    %v2787 = vpop.f32.mrf.mxu0
    %v2788 = vadd.f32 %v2567, %v2787
    %2789 = vmatmul.f32.gmra.mxu0 %v2666
    %v2790 = vpop.f32.mrf.mxu0
    %v2791 = vadd.f32 %v2567, %v2790
    %2792 = vmatmul.f32.gmra.mxu0 %v2669
    %v2793 = vpop.f32.mrf.mxu0
    %v2794 = vadd.f32 %v2567, %v2793
    %2795 = vmatmul.f32.gmra.mxu0 %v2672
    %v2796 = vpop.f32.mrf.mxu0
    %v2797 = vadd.f32 %v2567, %v2796
    %2798 = vmatmul.f32.gmra.mxu0 %v2675
    %v2799 = vpop.f32.mrf.mxu0
    %v2800 = vadd.f32 %v2567, %v2799
    %2801 = vdwg.mxu0
    %v2802 = vtanh.pop %v2695
    %v2803 = vtanh.pop %v2698
    %v2804 = vtanh.pop %v2701
    %v2805 = vtanh.pop %v2704
    %v2806 = vtanh.pop %v2707
    %v2807 = vtanh.pop %v2710
    %v2808 = vtanh.pop %v2713
    %v2809 = vtanh.pop %v2716
    %v2810 = vtanh.pop %v2719
    %v2811 = vtanh.pop %v2722
    %v2812 = vtanh.pop %v2725
    %v2813 = vtanh.pop %v2728
    %v2814 = vtanh.pop %v2731
    %v2815 = vtanh.pop %v2734
    %v2816 = vtanh.pop %v2737
    %v2817 = vtanh.pop %v2740
    %v2818 = vtanh.pop %v2743
    %v2819 = vtanh.pop %v2746
    %v2820 = vtanh.pop %v2749
    %v2821 = vtanh.pop %v2752
    %v2822 = vtanh.pop %v2755
    %v2823 = vtanh.pop %v2758
    %v2824 = vtanh.pop %v2761
    %v2825 = vtanh.pop %v2764
    %v2826 = vtanh.pop %v2767
    %v2827 = vtanh.pop %v2770
    %v2828 = vtanh.pop %v2773
    %v2829 = vtanh.pop %v2776
    %v2830 = vtanh.pop %v2779
    %v2831 = vtanh.pop %v2782
    %v2832 = vtanh.pop %v2785
    %v2833 = vtanh.pop %v2788
    %v2834 = vtanh.pop %v2791
    %v2835 = vtanh.pop %v2794
    %v2836 = vtanh.pop %v2797
    %v2837 = vtanh.pop %v2800
    %v2838 = vld [vmem:[%s20] sm:$0xff]
    %v2839 = vld [vmem:[%s20 + $0x8] sm:$0xff]
    %v2840 = vld [vmem:[%s20 + $0x10] sm:$0xff]
    %v2841 = vld [vmem:[%s20 + $0x18] sm:$0xff]
    %v2842 = vld [vmem:[%s21] sm:$0x1]
    %v2844 = vperm.slane %v2842, 0
    %v2847 = vsel %vm367, %v2802, 0
    %v2850 = vsel %vm367, %v2803, 0
    %v2853 = vsel %vm367, %v2804, 0
    %v2856 = vsel %vm367, %v2805, 0
    %v2859 = vsel %vm367, %v2806, 0
    %v2862 = vsel %vm367, %v2807, 0
    %v2865 = vsel %vm367, %v2808, 0
    %v2868 = vsel %vm367, %v2809, 0
    %v2871 = vsel %vm367, %v2810, 0
    %v2874 = vsel %vm367, %v2811, 0
    %v2877 = vsel %vm367, %v2812, 0
    %v2880 = vsel %vm367, %v2813, 0
    %v2883 = vsel %vm367, %v2814, 0
    %v2886 = vsel %vm367, %v2815, 0
    %v2889 = vsel %vm367, %v2816, 0
    %v2892 = vsel %vm367, %v2817, 0
    %v2895 = vsel %vm367, %v2818, 0
    %v2898 = vsel %vm367, %v2819, 0
    %v2901 = vsel %vm367, %v2820, 0
    %v2904 = vsel %vm367, %v2821, 0
    %v2907 = vsel %vm367, %v2822, 0
    %v2910 = vsel %vm367, %v2823, 0
    %v2913 = vsel %vm367, %v2824, 0
    %v2916 = vsel %vm367, %v2825, 0
    %v2919 = vsel %vm367, %v2826, 0
    %v2922 = vsel %vm367, %v2827, 0
    %v2925 = vsel %vm367, %v2828, 0
    %v2928 = vsel %vm367, %v2829, 0
    %v2931 = vsel %vm367, %v2830, 0
    %v2934 = vsel %vm367, %v2831, 0
    %v2937 = vsel %vm367, %v2832, 0
    %v2940 = vsel %vm367, %v2833, 0
    %v2943 = vsel %vm367, %v2834, 0
    %v2946 = vsel %vm367, %v2835, 0
    %v2949 = vsel %vm367, %v2836, 0
    %v2952 = vsel %vm367, %v2837, 0
    %2954 = vmatpush.msra.mxu0 0.0
    %2955 = vmatpush.msra.mxu0 0.0
    %2956 = vmatpush.msra.mxu0 0.0
    %2957 = vmatpush.msra.mxu0 0.0
    %2958 = vmatpush.msra.mxu0 0.0
    %2959 = vmatpush.msra.mxu0 0.0
    %2960 = vmatpush.msra.mxu0 0.0
    %2961 = vmatpush.msra.mxu0 0.0
    %2962 = vmatpush.msra.mxu0 0.0
    %2963 = vmatpush.msra.mxu0 0.0
    %2964 = vmatpush.msra.mxu0 0.0
    %2965 = vmatpush.msra.mxu0 0.0
    %2966 = vmatpush.msra.mxu0 %v2841
    %2967 = vmatpush.msra.mxu0 %v2840
    %2968 = vmatpush.msra.mxu0 %v2839
    %2969 = vmatpush.msra.mxu0 %v2838
    %2970 = vmatmul.f32.gmra.mxu0 %v2847
    %v2971 = vpop.f32.mrf.mxu0
    %v2972 = vadd.f32 %v2844, %v2971
    %2973 = vmatmul.f32.gmra.mxu0 %v2850
    %v2974 = vpop.f32.mrf.mxu0
    %v2975 = vadd.f32 %v2844, %v2974
    %2976 = vmatmul.f32.gmra.mxu0 %v2853
    %v2977 = vpop.f32.mrf.mxu0
    %v2978 = vadd.f32 %v2844, %v2977
    %2979 = vmatmul.f32.gmra.mxu0 %v2856
    %v2980 = vpop.f32.mrf.mxu0
    %v2981 = vadd.f32 %v2844, %v2980
    %2982 = vmatmul.f32.gmra.mxu0 %v2859
    %v2983 = vpop.f32.mrf.mxu0
    %v2984 = vadd.f32 %v2844, %v2983
    %2985 = vmatmul.f32.gmra.mxu0 %v2862
    %v2986 = vpop.f32.mrf.mxu0
    %v2987 = vadd.f32 %v2844, %v2986
    %2988 = vmatmul.f32.gmra.mxu0 %v2865
    %v2989 = vpop.f32.mrf.mxu0
    %v2990 = vadd.f32 %v2844, %v2989
    %2991 = vmatmul.f32.gmra.mxu0 %v2868
    %v2992 = vpop.f32.mrf.mxu0
    %v2993 = vadd.f32 %v2844, %v2992
    %2994 = vmatmul.f32.gmra.mxu0 %v2871
    %v2995 = vpop.f32.mrf.mxu0
    %v2996 = vadd.f32 %v2844, %v2995
    %2997 = vmatmul.f32.gmra.mxu0 %v2874
    %v2998 = vpop.f32.mrf.mxu0
    %v2999 = vadd.f32 %v2844, %v2998
    %3000 = vmatmul.f32.gmra.mxu0 %v2877
    %v3001 = vpop.f32.mrf.mxu0
    %v3002 = vadd.f32 %v2844, %v3001
    %3003 = vmatmul.f32.gmra.mxu0 %v2880
    %v3004 = vpop.f32.mrf.mxu0
    %v3005 = vadd.f32 %v2844, %v3004
    %3006 = vmatmul.f32.gmra.mxu0 %v2883
    %v3007 = vpop.f32.mrf.mxu0
    %v3008 = vadd.f32 %v2844, %v3007
    %3009 = vmatmul.f32.gmra.mxu0 %v2886
    %v3010 = vpop.f32.mrf.mxu0
    %v3011 = vadd.f32 %v2844, %v3010
    %3012 = vmatmul.f32.gmra.mxu0 %v2889
    %v3013 = vpop.f32.mrf.mxu0
    %v3014 = vadd.f32 %v2844, %v3013
    %3015 = vmatmul.f32.gmra.mxu0 %v2892
    %v3016 = vpop.f32.mrf.mxu0
    %v3017 = vadd.f32 %v2844, %v3016
    %3018 = vmatmul.f32.gmra.mxu0 %v2895
    %v3019 = vpop.f32.mrf.mxu0
    %v3020 = vadd.f32 %v2844, %v3019
    %3021 = vmatmul.f32.gmra.mxu0 %v2898
    %v3022 = vpop.f32.mrf.mxu0
    %v3023 = vadd.f32 %v2844, %v3022
    %3024 = vmatmul.f32.gmra.mxu0 %v2901
    %v3025 = vpop.f32.mrf.mxu0
    %v3026 = vadd.f32 %v2844, %v3025
    %3027 = vmatmul.f32.gmra.mxu0 %v2904
    %v3028 = vpop.f32.mrf.mxu0
    %v3029 = vadd.f32 %v2844, %v3028
    %3030 = vmatmul.f32.gmra.mxu0 %v2907
    %v3031 = vpop.f32.mrf.mxu0
    %v3032 = vadd.f32 %v2844, %v3031
    %3033 = vmatmul.f32.gmra.mxu0 %v2910
    %v3034 = vpop.f32.mrf.mxu0
    %v3035 = vadd.f32 %v2844, %v3034
    %3036 = vmatmul.f32.gmra.mxu0 %v2913
    %v3037 = vpop.f32.mrf.mxu0
    %v3038 = vadd.f32 %v2844, %v3037
    %3039 = vmatmul.f32.gmra.mxu0 %v2916
    %v3040 = vpop.f32.mrf.mxu0
    %v3041 = vadd.f32 %v2844, %v3040
    %3042 = vmatmul.f32.gmra.mxu0 %v2919
    %v3043 = vpop.f32.mrf.mxu0
    %v3044 = vadd.f32 %v2844, %v3043
    %3045 = vmatmul.f32.gmra.mxu0 %v2922
    %v3046 = vpop.f32.mrf.mxu0
    %v3047 = vadd.f32 %v2844, %v3046
    %3048 = vmatmul.f32.gmra.mxu0 %v2925
    %v3049 = vpop.f32.mrf.mxu0
    %v3050 = vadd.f32 %v2844, %v3049
    %3051 = vmatmul.f32.gmra.mxu0 %v2928
    %v3052 = vpop.f32.mrf.mxu0
    %v3053 = vadd.f32 %v2844, %v3052
    %3054 = vmatmul.f32.gmra.mxu0 %v2931
    %v3055 = vpop.f32.mrf.mxu0
    %v3056 = vadd.f32 %v2844, %v3055
    %3057 = vmatmul.f32.gmra.mxu0 %v2934
    %v3058 = vpop.f32.mrf.mxu0
    %v3059 = vadd.f32 %v2844, %v3058
    %3060 = vmatmul.f32.gmra.mxu0 %v2937
    %v3061 = vpop.f32.mrf.mxu0
    %v3062 = vadd.f32 %v2844, %v3061
    %3063 = vmatmul.f32.gmra.mxu0 %v2940
    %v3064 = vpop.f32.mrf.mxu0
    %v3065 = vadd.f32 %v2844, %v3064
    %3066 = vmatmul.f32.gmra.mxu0 %v2943
    %v3067 = vpop.f32.mrf.mxu0
    %v3068 = vadd.f32 %v2844, %v3067
    %3069 = vmatmul.f32.gmra.mxu0 %v2946
    %v3070 = vpop.f32.mrf.mxu0
    %v3071 = vadd.f32 %v2844, %v3070
    %3072 = vmatmul.f32.gmra.mxu0 %v2949
    %v3073 = vpop.f32.mrf.mxu0
    %v3074 = vadd.f32 %v2844, %v3073
    %3075 = vmatmul.f32.gmra.mxu0 %v2952
    %v3076 = vpop.f32.mrf.mxu0
    %v3077 = vadd.f32 %v2844, %v3076
    %3078 = vdwg.mxu0
    %3079 = vst.msk [vmem:[%s22] sm:$0xff] %vm162, %v2972
    %3080 = vst.msk [vmem:[%s22 + $0x8] sm:$0xff] %vm162, %v2975
    %3081 = vst.msk [vmem:[%s22 + $0x10] sm:$0xff] %vm162, %v2978
    %3082 = vst.msk [vmem:[%s22 + $0x18] sm:$0xff] %vm162, %v2981
    %3083 = vst.msk [vmem:[%s22 + $0x20] sm:$0xff] %vm162, %v2984
    %3084 = vst.msk [vmem:[%s22 + $0x28] sm:$0xff] %vm162, %v2987
    %3085 = vst.msk [vmem:[%s22 + $0x30] sm:$0xff] %vm162, %v2990
    %3086 = vst.msk [vmem:[%s22 + $0x38] sm:$0xff] %vm162, %v2993
    %3087 = vst.msk [vmem:[%s22 + $0x40] sm:$0xff] %vm162, %v2996
    %3088 = vst.msk [vmem:[%s22 + $0x48] sm:$0xff] %vm162, %v2999
    %3089 = vst.msk [vmem:[%s22 + $0x50] sm:$0xff] %vm162, %v3002
    %3090 = vst.msk [vmem:[%s22 + $0x58] sm:$0xff] %vm162, %v3005
    %3091 = vst.msk [vmem:[%s22 + $0x60] sm:$0xff] %vm162, %v3008
    %3092 = vst.msk [vmem:[%s22 + $0x68] sm:$0xff] %vm162, %v3011
    %3093 = vst.msk [vmem:[%s22 + $0x70] sm:$0xff] %vm162, %v3014
    %3094 = vst.msk [vmem:[%s22 + $0x78] sm:$0xff] %vm162, %v3017
    %3095 = vst.msk [vmem:[%s22 + $0x80] sm:$0xff] %vm162, %v3020
    %3096 = vst.msk [vmem:[%s22 + $0x88] sm:$0xff] %vm162, %v3023
    %3097 = vst.msk [vmem:[%s22 + $0x90] sm:$0xff] %vm162, %v3026
    %3098 = vst.msk [vmem:[%s22 + $0x98] sm:$0xff] %vm162, %v3029
    %3099 = vst.msk [vmem:[%s22 + $0xa0] sm:$0xff] %vm162, %v3032
    %3100 = vst.msk [vmem:[%s22 + $0xa8] sm:$0xff] %vm162, %v3035
    %3101 = vst.msk [vmem:[%s22 + $0xb0] sm:$0xff] %vm162, %v3038
    %3102 = vst.msk [vmem:[%s22 + $0xb8] sm:$0xff] %vm162, %v3041
    %3103 = vst.msk [vmem:[%s22 + $0xc0] sm:$0xff] %vm162, %v3044
    %3104 = vst.msk [vmem:[%s22 + $0xc8] sm:$0xff] %vm162, %v3047
    %3105 = vst.msk [vmem:[%s22 + $0xd0] sm:$0xff] %vm162, %v3050
    %3106 = vst.msk [vmem:[%s22 + $0xd8] sm:$0xff] %vm162, %v3053
    %3107 = vst.msk [vmem:[%s22 + $0xe0] sm:$0xff] %vm162, %v3056
    %3108 = vst.msk [vmem:[%s22 + $0xe8] sm:$0xff] %vm162, %v3059
    %3109 = vst.msk [vmem:[%s22 + $0xf0] sm:$0xff] %vm162, %v3062
    %3110 = vst.msk [vmem:[%s22 + $0xf8] sm:$0xff] %vm162, %v3065
    %3111 = vst.msk [vmem:[%s22 + $0x100] sm:$0xff] %vm162, %v3068
    %3112 = vst.msk [vmem:[%s22 + $0x108] sm:$0xff] %vm162, %v3071
    %3113 = vst.msk [vmem:[%s22 + $0x110] sm:$0xff] %vm162, %v3074
    %3114 = vst.msk [vmem:[%s22 + $0x118] sm:$0xff] %vm162, %v3077
    // Predicated region
    $region110: #{vae_forward.1} parent=1 // pred_check
      _
    $region111: #{vae_forward.1} parent=1 // pred_check_branch
      %3116 = sbr.rel (0) target = $region113
    $region112: #{vae_forward.1} parent=1 // pred_region
      _
    $region113: #{vae_forward.1} parent=1 // pred_fallthru
      _
    // Predicated region
    $region114: #{vae_forward.1} parent=1 // pred_check
      _
    $region115: #{vae_forward.1} parent=1 // pred_check_branch
      %3118 = sbr.rel (0) target = $region117
    $region116: #{vae_forward.1} parent=1 // pred_region
      %3120 = vsyncadd [#allocation6], 0
      %s3122 = sshll.u32 [#allocation14], 4
      %s3123 = int_to_ptr.vmem [resolvable:$true] %s3122
      %s3124 = sshll.u32 %s23, 4
      %s3125 = int_to_ptr.hbm [resolvable:$true] %s3124
      %3127 = dma.vmem_to_hbm [thread:$0]  %s3123, 128, %s3125, [#allocation6]
    $region117: #{vae_forward.1} parent=1 // pred_fallthru
      _
    // Predicated region
    $region118: #{vae_forward.1} parent=1 // pred_check
      _
    $region119: #{vae_forward.1} parent=1 // pred_check_branch
      %3129 = sbr.rel (0) target = $region121
    $region120: #{vae_forward.1} parent=1 // pred_region
      _
    $region121: #{vae_forward.1} parent=1 // pred_fallthru
      _
    // Predicated region
    $region122: #{vae_forward.1} parent=1 // pred_check
      _
    $region123: #{vae_forward.1} parent=1 // pred_check_branch
      %3131 = sbr.rel (0) target = $region125
    $region124: #{vae_forward.1} parent=1 // pred_region
      %3133 = vsyncadd [#allocation16], 0
      %s3134 = sshll.u32 [#allocation15], 4
      %s3135 = int_to_ptr.vmem [resolvable:$true] %s3134
      %s3136 = sshll.u32 %s25, 4
      %s3137 = int_to_ptr.hbm [resolvable:$true] %s3136
      %3142 = dma.vmem_to_hbm [thread:$0]  %s3135, 384, %s3137, [#allocation16], 128, 128, 8
    $region125: #{vae_forward.1} parent=1 // pred_fallthru
      _
    // Predicated region
    $region126: #{vae_forward.1} parent=1 // pred_check
      _
    $region127: #{vae_forward.1} parent=1 // pred_check_branch
      %3144 = sbr.rel (0) target = $region129
    $region128: #{vae_forward.1} parent=1 // pred_region
      _
    $region129: #{vae_forward.1} parent=1 // pred_fallthru
      _
    // Predicated region
    $region130: #{vae_forward.1} parent=1 // pred_check
      _
    $region131: #{vae_forward.1} parent=1 // pred_check_branch
      %3146 = sbr.rel (0) target = $region133
    $region132: #{vae_forward.1} parent=1 // pred_region
      %3148 = dma.done [#allocation6], 128
    $region133: #{vae_forward.1} parent=1 // pred_fallthru
      _
    // Predicated region
    $region134: #{vae_forward.1} parent=1 // pred_check
      _
    $region135: #{vae_forward.1} parent=1 // pred_check_branch
      %3150 = sbr.rel (0) target = $region137
    $region136: #{vae_forward.1} parent=1 // pred_region
      _
    $region137: #{vae_forward.1} parent=1 // pred_fallthru
      _
    // Predicated region
    $region138: #{vae_forward.1} parent=1 // pred_check
      _
    $region139: #{vae_forward.1} parent=1 // pred_check_branch
      %3152 = sbr.rel (0) target = $region141
    $region140: #{vae_forward.1} parent=1 // pred_region
      %3154 = dma.done [#allocation16], 384
    $region141: #{vae_forward.1} parent=1 // pred_fallthru
      _
    %3155 = vsyncpa [#allocation5], 1
    %3156 = vsyncpa [#allocation12], 1
    %3157 = vsyncpa [#allocation6], 1
    %3158 = vsyncpa [#allocation16], 1
    %3159 = vsyncpa [#allocation7], 1
    %3160 = vsyncpa [#allocation9], 1

</llo_original>
